<compile_context>
chip_gen: v7x
topology: tpu7x:2x2x1
jax: 0.10.0
libtpu: 0.0.40
codegen_flags: <defaults>
</compile_context>

<pallas_src>
import functools
import math

import jax
import jax.numpy as jnp
from jax.experimental import pallas as pl
from jax.experimental.pallas import tpu as pltpu

EPS = 1e-5
RELU_MAX = 20.0  # the module's "ReLU" is Hardtanh(0, 20)


# --------------------------- fused Pallas kernel -----------------------------

def _pad_rows_for(WP):
    # top/bottom zero slab so every shifted tap slice stays in bounds;
    # rounded to 16 rows so the bf16 sublane packing stays tile-aligned.
    return -(-(WP + 1) // 16) * 16


def _make_fused_kernel(*, WP, width, scale, has_sc, pad_rows):
    """WP = padded image width (W+2). The block row axis holds B_blk images,
    each laid out as a zero-haloed (H+2, W+2) map flattened row-major."""

    def kernel(*refs):
        it = iter(refs)
        x_ref = next(it)                         # (M, Cin) f32
        imask_ref = next(it)                     # (M, 1)  f32  (1 = real pixel)
        w1_refs, b1_refs = [], []
        for _ in range(scale):                   # per-branch conv1 columns
            w1_refs.append(next(it)); b1_refs.append(next(it))
        w21_ref, b21_ref = next(it), next(it)    # (9*width, width) bf16, (1, width) f32
        branches = [tuple(next(it) for _ in range(6)) for _ in range(scale - 1)]
        w3_refs = [next(it) for _ in range(scale)]   # per-branch conv3 rows
        b3_ref = next(it)                        # (1, cout) f32
        if has_sc:
            ws_ref, bs_ref = next(it), next(it)
        o_ref = next(it)                         # (M, cout) f32

        M = x_ref.shape[0]
        x = x_ref[...]                           # (M, Cin) f32 (halo rows are zero)
        xb = x.astype(jnp.bfloat16)
        imask = imask_ref[...]                   # (M, 1) f32

        zhalo = jnp.zeros((pad_rows, width), jnp.bfloat16)   # built once

        def relu(v):
            return jnp.clip(v, 0.0, RELU_MAX)

        def im2col(sp):
            """(M, width) f32 map -> (M, 9*width) bf16 im2col slab.

            The halo (pad rows/cols of each image) is re-zeroed ONCE with the
            interior mask, the map is cast to bf16 ONCE, and every 3x3 tap is
            a plain shifted sublane slice (no per-tap wrap masks); the 9 taps
            are lane-concatenated so the conv is a single K=9*width matmul."""
            spb = (sp * imask).astype(jnp.bfloat16)
            xpad = jnp.concatenate([zhalo, spb, zhalo], axis=0)
            taps = []
            for dh in (-1, 0, 1):
                for dw in (-1, 0, 1):
                    s = pad_rows + dh * WP + dw
                    taps.append(xpad[s:s + M, :])
            return jnp.concatenate(taps, axis=-1)            # (M, 9*width)

        # conv1 (1x1) + bn1 + Hardtanh, computed per branch (no lane slices)
        h1 = [relu(jnp.dot(xb, w1_refs[b][...], preferred_element_type=jnp.float32)
                   + b1_refs[b][...])
              for b in range(scale)]                          # each (M, width) f32

        # branch 0: conv2_1 + bn2_1 + relu — one im2col matmul
        sp = relu(jnp.dot(im2col(h1[0]), w21_ref[...],
                          preferred_element_type=jnp.float32) + b21_ref[...])
        # conv3 accumulated per branch with pre-split weights (no concat)
        out3 = jnp.dot(sp.astype(jnp.bfloat16), w3_refs[0][...],
                       preferred_element_type=jnp.float32)

        for i in range(scale - 1):
            aw1, ab1, aw2, ab2, cw, cb = branches[i]
            spx = h1[i + 1]
            # AFF: att = 1 + tanh(BN(conv1x1(SiLU(BN(conv1x1(cat(sp, spx)))))))
            cat = jnp.concatenate([sp, spx], axis=-1).astype(jnp.bfloat16)
            t = jnp.dot(cat, aw1[...], preferred_element_type=jnp.float32) + ab1[...]
            t = t * jax.nn.sigmoid(t)                         # SiLU in f32
            t2 = jnp.dot(t.astype(jnp.bfloat16), aw2[...],
                         preferred_element_type=jnp.float32) + ab2[...]
            att = 1.0 + jnp.tanh(t2)
            sp = sp * att + spx * (2.0 - att)
            # conv + bn + relu — one im2col matmul
            sp = relu(jnp.dot(im2col(sp), cw[...],
                              preferred_element_type=jnp.float32) + cb[...])
            out3 = out3 + jnp.dot(sp.astype(jnp.bfloat16), w3_refs[i + 1][...],
                                  preferred_element_type=jnp.float32)

        out3 = out3 + b3_ref[...]
        if has_sc:
            res = jnp.dot(xb, ws_ref[...], preferred_element_type=jnp.float32) + bs_ref[...]
        else:
            res = x                      # identity shortcut: no matmul at all
        o_ref[...] = relu(out3 + res).astype(o_ref.dtype)

    return kernel


# --------------------------- parameters & BN folding -------------------------

def fold_bn(bn):
    s = bn["gamma"] / jnp.sqrt(bn["var"] + EPS)
    b = bn["beta"] - bn["mean"] * s
    return s, b


def fold_conv_bn(w, bn, conv_bias=None):
    """Fold eval-mode BatchNorm into the preceding conv (weight last dim = Cout)."""
    s, b = fold_bn(bn)
    wf = w * s
    bf = b if conv_bias is None else conv_bias * s + b
    return wf, bf


def init_params(key, in_planes, planes, stride=1, baseWidth=32, scale=2, expansion=2):
    width = int(math.floor(planes * (baseWidth / 64.0)))
    inter = width // 4                        # AFF(channels=width, r=4)
    keys = iter(jax.random.split(key, 64))

    def nk():
        return next(keys)

    def conv_w(shape, fan_in):
        return jax.random.normal(nk(), shape, jnp.float32) / jnp.sqrt(float(fan_in))

    def bn_p(c):
        return dict(gamma=1.0 + 0.1 * jax.random.normal(nk(), (c,), jnp.float32),
                    beta=0.05 * jax.random.normal(nk(), (c,), jnp.float32),
                    mean=0.02 * jax.random.normal(nk(), (c,), jnp.float32),
                    var=0.5 + 0.1 * jnp.abs(jax.random.normal(nk(), (c,), jnp.float32)))

    P = {
        "conv1_w": conv_w((in_planes, width * scale), in_planes),      # 1x1 as (Cin, Cout)
        "bn1": bn_p(width * scale),
        "conv2_1_w": conv_w((3, 3, width, width), 9 * width),          # 3x3 as HWIO
        "bn2_1": bn_p(width),
        "conv3_w": conv_w((width * scale, planes * expansion), width * scale),
        "bn3": bn_p(planes * expansion),
        "convs_w": [], "bns": [], "affs": [],
    }
    for _ in range(scale - 1):
        P["convs_w"].append(conv_w((3, 3, width, width), 9 * width))
        P["bns"].append(bn_p(width))
        P["affs"].append(dict(
            w1=conv_w((2 * width, inter), 2 * width),
            b1=0.05 * jax.random.normal(nk(), (inter,), jnp.float32),
            bn1=bn_p(inter),
            w2=conv_w((inter, width), inter),
            b2=0.05 * jax.random.normal(nk(), (width,), jnp.float32),
            bn2=bn_p(width)))
    has_sc = (stride != 1) or (in_planes != expansion * planes)
    if has_sc:
        P["sc_w"] = conv_w((in_planes, expansion * planes), in_planes)
        P["sc_bn"] = bn_p(expansion * planes)
    return P, width, has_sc


# --------------------------- forward passes ----------------------------------

def _rep_spec(a):
    nd = a.ndim
    return pl.BlockSpec(a.shape, lambda n, _nd=nd: (0,) * _nd)


def _pick_batch_block(N, rows_per_img, m_target=256):
    """Images per grid step.  Grow M = B_blk*rows_per_img toward ~m_target rows
    to fill the MXU/VPU and amortize per-step overhead; keep block rows
    8-aligned; prefer >=2 grid steps (v7x has 2 TensorCores) when that already
    meets the target."""
    def ok(b):
        return N % b == 0 and (b == N or (b * rows_per_img) % 8 == 0)

    cands = [b for b in range(1, N + 1) if ok(b)]
    big_enough = [b for b in cands if b * rows_per_img >= m_target]
    if big_enough:
        two_step = [b for b in big_enough if N // b >= 2]
        return min(two_step) if two_step else min(big_enough)
    return N  # cannot reach target: put everything in one step


def pallas_forward(x_nchw, P, *, in_planes, planes, stride, width, scale,
                   expansion, has_sc):
    x = jnp.transpose(x_nchw, (0, 2, 3, 1)).astype(jnp.float32)   # NCHW -> NHWC
    xs = x[:, ::stride, ::stride, :]        # strided 1x1 conv == subsample then 1x1
    N, H, W, Cin = xs.shape
    HP, WP = H + 2, W + 2
    rows_img = HP * WP
    cout = planes * expansion

    # Per-image 1-pixel zero halo: 3x3 taps become plain shifted slices with no
    # wrap masks and no cross-image contamination when images share a block.
    xp = jnp.pad(xs, ((0, 0), (1, 1), (1, 1), (0, 0)))
    x_flat = xp.reshape(N * rows_img, Cin)

    B_blk = _pick_batch_block(N, rows_img)
    M = B_blk * rows_img
    grid = (N // B_blk,)

    # interior mask (1 at real pixels, 0 at halo), applied once per conv input
    hh = jnp.arange(HP)
    ww = jnp.arange(WP)
    m2d = ((hh[:, None] >= 1) & (hh[:, None] <= H)
           & (ww[None, :] >= 1) & (ww[None, :] <= W)).astype(jnp.float32)
    imask = jnp.tile(m2d.reshape(rows_img, 1), (B_blk, 1))        # (M, 1)

    def bf(w):                              # bf16 weights: half DMA, MXU-native
        return w.astype(jnp.bfloat16)

    def bias2d(b):
        return b.reshape(1, -1).astype(jnp.float32)

    w1f, b1f = fold_conv_bn(P["conv1_w"], P["bn1"])
    w21f, b21f = fold_conv_bn(P["conv2_1_w"], P["bn2_1"])
    w3f, b3f = fold_conv_bn(P["conv3_w"], P["bn3"])

    inputs = [x_flat, imask]
    for b in range(scale):       # conv1 split per branch: no in-kernel lane slices
        inputs += [bf(w1f[:, b * width:(b + 1) * width]),
                   bias2d(b1f[b * width:(b + 1) * width])]
    inputs += [bf(w21f.reshape(9 * width, width)), bias2d(b21f)]
    for i in range(scale - 1):
        A = P["affs"][i]
        aw1, ab1 = fold_conv_bn(A["w1"], A["bn1"], A["b1"])
        aw2, ab2 = fold_conv_bn(A["w2"], A["bn2"], A["b2"])
        wcf, bcf = fold_conv_bn(P["convs_w"][i], P["bns"][i])
        inputs += [bf(aw1), bias2d(ab1), bf(aw2), bias2d(ab2),
                   bf(wcf.reshape(9 * width, width)), bias2d(bcf)]
    for b in range(scale):       # conv3 split per branch (row blocks)
        inputs += [bf(w3f[b * width:(b + 1) * width, :])]
    inputs += [bias2d(b3f)]
    if has_sc:
        wsf, bsf = fold_conv_bn(P["sc_w"], P["sc_bn"])
        inputs += [bf(wsf), bias2d(bsf)]

    in_specs = [pl.BlockSpec((M, Cin), lambda n: (n, 0))]
    in_specs += [_rep_spec(a) for a in inputs[1:]]

    kernel = _make_fused_kernel(WP=WP, width=width, scale=scale, has_sc=has_sc,
                                pad_rows=_pad_rows_for(WP))

    out = pl.pallas_call(
        kernel,
        out_shape=jax.ShapeDtypeStruct((N * rows_img, cout), jnp.float32),
        grid=grid,
        in_specs=in_specs,
        out_specs=pl.BlockSpec((M, cout), lambda n: (n, 0)),
        compiler_params=pltpu.CompilerParams(dimension_semantics=("parallel",)),
    )(*inputs)

    y = out.reshape(N, HP, WP, cout)[:, 1:H + 1, 1:W + 1, :]      # drop the halo
    return jnp.transpose(y, (0, 3, 1, 2))                          # back to NCHW


def ref_forward(x_nchw, P, *, in_planes, planes, stride, width, scale,
                expansion, has_sc):
    """Pure-JAX f32 reference mirroring the PyTorch forward (eval-mode BN)."""
    x = jnp.transpose(x_nchw, (0, 2, 3, 1)).astype(jnp.float32)

    def bn(h, b):
        return (h - b["mean"]) / jnp.sqrt(b["var"] + EPS) * b["gamma"] + b["beta"]

    def relu(h):
        return jnp.clip(h, 0.0, RELU_MAX)

    def conv(h, w_hwio, s=1, p=0):
        return jax.lax.conv_general_dilated(
            h, w_hwio, (s, s), [(p, p), (p, p)],
            dimension_numbers=("NHWC", "HWIO", "NHWC"))

    out = relu(bn(conv(x, P["conv1_w"][None, None], stride), P["bn1"]))
    spx = [out[..., i * width:(i + 1) * width] for i in range(scale)]
    sp = relu(bn(conv(spx[0], P["conv2_1_w"], 1, 1), P["bn2_1"]))
    outs = [sp]
    for i in range(scale - 1):
        A = P["affs"][i]
        xa = jnp.concatenate([sp, spx[i + 1]], axis=-1)
        t = bn(conv(xa, A["w1"][None, None]) + A["b1"], A["bn1"])
        t = t * jax.nn.sigmoid(t)
        t = bn(conv(t, A["w2"][None, None]) + A["b2"], A["bn2"])
        att = 1.0 + jnp.tanh(t)
        sp = sp * att + spx[i + 1] * (2.0 - att)
        sp = relu(bn(conv(sp, P["convs_w"][i], 1, 1), P["bns"][i]))
        outs.append(sp)
    out = jnp.concatenate(outs, axis=-1)
    out = bn(conv(out, P["conv3_w"][None, None]), P["bn3"])
    if has_sc:
        res = bn(conv(x, P["sc_w"][None, None], stride), P["sc_bn"])
    else:
        res = x
    out = relu(out + res)
    return jnp.transpose(out, (0, 3, 1, 2))


# --------------------------- main ---------------------------------------------

if __name__ == "__main__":
    key = jax.random.PRNGKey(0)
    pkey, xkey = jax.random.split(key)

    # Module config: BasicBlockERes2Net_diff_AFF(in_planes=32, planes=32, stride=1,
    #                                            baseWidth=32, scale=2, expansion=2)
    in_planes, planes, stride, baseWidth, scale, expansion = 32, 32, 1, 32, 2, 2
    N, H, W = 2, 8, 8

    P, width, has_sc = init_params(pkey, in_planes, planes, stride, baseWidth,
                                   scale, expansion)
    x = jax.random.normal(xkey, (N, in_planes, H, W), jnp.float32)   # NCHW input

    cfg = dict(in_planes=in_planes, planes=planes, stride=stride, width=width,
               scale=scale, expansion=expansion, has_sc=has_sc)

    fwd = jax.jit(functools.partial(pallas_forward, **cfg))
    y = jax.block_until_ready(fwd(x, P))

    y_ref = ref_forward(x, P, **cfg)
    err = float(jnp.max(jnp.abs(y - y_ref)))
    rel = float(jnp.linalg.norm(y - y_ref) / (jnp.linalg.norm(y_ref) + 1e-12))

    assert y.shape == (N, planes * expansion, H, W), y.shape
    # bf16 MXU matmuls with f32 accumulation -> small quantization error vs f32 ref.
    assert err < 0.35 and rel < 3e-2, (err, rel)

    print("KERNEL_OK")
</pallas_src>

<mosaic_0001>
module attributes {stable_mosaic.version = 11 : i64} {
  func.func @kernel(%arg0: i32, %arg1: memref<200x32xf32, #tpu.memory_space<vmem>>, %arg2: memref<200x1xf32, #tpu.memory_space<vmem>>, %arg3: memref<32x16xbf16, #tpu.memory_space<vmem>>, %arg4: memref<1x16xf32, #tpu.memory_space<vmem>>, %arg5: memref<32x16xbf16, #tpu.memory_space<vmem>>, %arg6: memref<1x16xf32, #tpu.memory_space<vmem>>, %arg7: memref<144x16xbf16, #tpu.memory_space<vmem>>, %arg8: memref<1x16xf32, #tpu.memory_space<vmem>>, %arg9: memref<32x4xbf16, #tpu.memory_space<vmem>>, %arg10: memref<1x4xf32, #tpu.memory_space<vmem>>, %arg11: memref<4x16xbf16, #tpu.memory_space<vmem>>, %arg12: memref<1x16xf32, #tpu.memory_space<vmem>>, %arg13: memref<144x16xbf16, #tpu.memory_space<vmem>>, %arg14: memref<1x16xf32, #tpu.memory_space<vmem>>, %arg15: memref<16x64xbf16, #tpu.memory_space<vmem>>, %arg16: memref<16x64xbf16, #tpu.memory_space<vmem>>, %arg17: memref<1x64xf32, #tpu.memory_space<vmem>>, %arg18: memref<32x64xbf16, #tpu.memory_space<vmem>>, %arg19: memref<1x64xf32, #tpu.memory_space<vmem>>, %arg20: memref<200x64xf32, #tpu.memory_space<vmem>>) attributes {dimension_semantics = [#tpu.dimension_semantics<parallel>], iteration_bounds = array<i64: 1>, scalar_prefetch = 0 : i64, scratch_operands = 0 : i64, tpu.core_type = #tpu.core_type<tc>, window_params = [{transform_indices = @transform_0, window_bounds = array<i64: 200, 32>}, {pipeline_mode = #tpu.pipeline_mode<synchronous>, transform_indices = @transform_1, window_bounds = array<i64: 200, 1>}, {pipeline_mode = #tpu.pipeline_mode<synchronous>, transform_indices = @transform_2, window_bounds = array<i64: 32, 16>}, {pipeline_mode = #tpu.pipeline_mode<synchronous>, transform_indices = @transform_3, window_bounds = array<i64: 1, 16>}, {pipeline_mode = #tpu.pipeline_mode<synchronous>, transform_indices = @transform_4, window_bounds = array<i64: 32, 16>}, {pipeline_mode = #tpu.pipeline_mode<synchronous>, transform_indices = @transform_5, window_bounds = array<i64: 1, 16>}, {pipeline_mode = #tpu.pipeline_mode<synchronous>, transform_indices = @transform_6, window_bounds = array<i64: 144, 16>}, {pipeline_mode = #tpu.pipeline_mode<synchronous>, transform_indices = @transform_7, window_bounds = array<i64: 1, 16>}, {pipeline_mode = #tpu.pipeline_mode<synchronous>, transform_indices = @transform_8, window_bounds = array<i64: 32, 4>}, {pipeline_mode = #tpu.pipeline_mode<synchronous>, transform_indices = @transform_9, window_bounds = array<i64: 1, 4>}, {pipeline_mode = #tpu.pipeline_mode<synchronous>, transform_indices = @transform_10, window_bounds = array<i64: 4, 16>}, {pipeline_mode = #tpu.pipeline_mode<synchronous>, transform_indices = @transform_11, window_bounds = array<i64: 1, 16>}, {pipeline_mode = #tpu.pipeline_mode<synchronous>, transform_indices = @transform_12, window_bounds = array<i64: 144, 16>}, {pipeline_mode = #tpu.pipeline_mode<synchronous>, transform_indices = @transform_13, window_bounds = array<i64: 1, 16>}, {pipeline_mode = #tpu.pipeline_mode<synchronous>, transform_indices = @transform_14, window_bounds = array<i64: 16, 64>}, {pipeline_mode = #tpu.pipeline_mode<synchronous>, transform_indices = @transform_15, window_bounds = array<i64: 16, 64>}, {pipeline_mode = #tpu.pipeline_mode<synchronous>, transform_indices = @transform_16, window_bounds = array<i64: 1, 64>}, {pipeline_mode = #tpu.pipeline_mode<synchronous>, transform_indices = @transform_17, window_bounds = array<i64: 32, 64>}, {pipeline_mode = #tpu.pipeline_mode<synchronous>, transform_indices = @transform_18, window_bounds = array<i64: 1, 64>}, {transform_indices = @transform_19, window_bounds = array<i64: 200, 64>}]} {
    %c0 = arith.constant 0 : index
    %c0_0 = arith.constant 0 : index
    %0 = vector.load %arg1[%c0, %c0_0] : memref<200x32xf32, #tpu.memory_space<vmem>>, vector<200x32xf32>
    %1 = arith.truncf %0 : vector<200x32xf32> to vector<200x32xbf16>
    %c0_1 = arith.constant 0 : index
    %c0_2 = arith.constant 0 : index
    %2 = vector.load %arg2[%c0_1, %c0_2] : memref<200x1xf32, #tpu.memory_space<vmem>>, vector<200x1xf32>
    %cst = arith.constant 0.000000e+00 : bf16
    %3 = vector.broadcast %cst : bf16 to vector<16x16xbf16>
    %c0_3 = arith.constant 0 : index
    %c0_4 = arith.constant 0 : index
    %4 = vector.load %arg3[%c0_3, %c0_4] : memref<32x16xbf16, #tpu.memory_space<vmem>>, vector<32x16xbf16>
    %cst_5 = arith.constant dense<0.000000e+00> : vector<200x16xf32>
    %5 = tpu.matmul %1, %4, %cst_5 {dimension_numbers = #tpu.dot_dimension_numbers<[1], [0], [0], [1], [0, 0, 1, 1], [], []>} : vector<200x32xbf16>, vector<32x16xbf16>, vector<200x16xf32> -> vector<200x16xf32>
    %c0_6 = arith.constant 0 : index
    %c0_7 = arith.constant 0 : index
    %6 = vector.load %arg4[%c0_6, %c0_7] : memref<1x16xf32, #tpu.memory_space<vmem>>, vector<1x16xf32>
    %7 = vector.broadcast %6 : vector<1x16xf32> to vector<200x16xf32>
    %8 = arith.addf %5, %7 : vector<200x16xf32>
    %cst_8 = arith.constant 0.000000e+00 : f32
    %cst_9 = arith.constant 2.000000e+01 : f32
    %9 = vector.broadcast %cst_8 : f32 to vector<200x16xf32>
    %10 = arith.maximumf %9, %8 : vector<200x16xf32>
    %11 = vector.broadcast %cst_9 : f32 to vector<200x16xf32>
    %12 = arith.minimumf %11, %10 : vector<200x16xf32>
    %c0_10 = arith.constant 0 : index
    %c0_11 = arith.constant 0 : index
    %13 = vector.load %arg5[%c0_10, %c0_11] : memref<32x16xbf16, #tpu.memory_space<vmem>>, vector<32x16xbf16>
    %cst_12 = arith.constant dense<0.000000e+00> : vector<200x16xf32>
    %14 = tpu.matmul %1, %13, %cst_12 {dimension_numbers = #tpu.dot_dimension_numbers<[1], [0], [0], [1], [0, 0, 1, 1], [], []>} : vector<200x32xbf16>, vector<32x16xbf16>, vector<200x16xf32> -> vector<200x16xf32>
    %c0_13 = arith.constant 0 : index
    %c0_14 = arith.constant 0 : index
    %15 = vector.load %arg6[%c0_13, %c0_14] : memref<1x16xf32, #tpu.memory_space<vmem>>, vector<1x16xf32>
    %16 = vector.broadcast %15 : vector<1x16xf32> to vector<200x16xf32>
    %17 = arith.addf %14, %16 : vector<200x16xf32>
    %cst_15 = arith.constant 0.000000e+00 : f32
    %cst_16 = arith.constant 2.000000e+01 : f32
    %18 = vector.broadcast %cst_15 : f32 to vector<200x16xf32>
    %19 = arith.maximumf %18, %17 : vector<200x16xf32>
    %20 = vector.broadcast %cst_16 : f32 to vector<200x16xf32>
    %21 = arith.minimumf %20, %19 : vector<200x16xf32>
    %22 = vector.broadcast %2 : vector<200x1xf32> to vector<200x16xf32>
    %23 = arith.mulf %12, %22 : vector<200x16xf32>
    %24 = arith.truncf %23 : vector<200x16xf32> to vector<200x16xbf16>
    %25 = tpu.concatenate %3, %24, %3 in 0 : vector<16x16xbf16>, vector<200x16xbf16>, vector<16x16xbf16> -> vector<232x16xbf16>
    %26 = vector.extract_strided_slice %25 {offsets = [5, 0], sizes = [200, 16], strides = [1, 1]} : vector<232x16xbf16> to vector<200x16xbf16>
    %27 = vector.extract_strided_slice %25 {offsets = [6, 0], sizes = [200, 16], strides = [1, 1]} : vector<232x16xbf16> to vector<200x16xbf16>
    %28 = vector.extract_strided_slice %25 {offsets = [7, 0], sizes = [200, 16], strides = [1, 1]} : vector<232x16xbf16> to vector<200x16xbf16>
    %29 = vector.extract_strided_slice %25 {offsets = [15, 0], sizes = [200, 16], strides = [1, 1]} : vector<232x16xbf16> to vector<200x16xbf16>
    %30 = vector.extract_strided_slice %25 {offsets = [16, 0], sizes = [200, 16], strides = [1, 1]} : vector<232x16xbf16> to vector<200x16xbf16>
    %31 = vector.extract_strided_slice %25 {offsets = [17, 0], sizes = [200, 16], strides = [1, 1]} : vector<232x16xbf16> to vector<200x16xbf16>
    %32 = vector.extract_strided_slice %25 {offsets = [25, 0], sizes = [200, 16], strides = [1, 1]} : vector<232x16xbf16> to vector<200x16xbf16>
    %33 = vector.extract_strided_slice %25 {offsets = [26, 0], sizes = [200, 16], strides = [1, 1]} : vector<232x16xbf16> to vector<200x16xbf16>
    %34 = vector.extract_strided_slice %25 {offsets = [27, 0], sizes = [200, 16], strides = [1, 1]} : vector<232x16xbf16> to vector<200x16xbf16>
    %35 = tpu.concatenate %26, %27, %28, %29, %30, %31, %32, %33, %34 in 1 : vector<200x16xbf16>, vector<200x16xbf16>, vector<200x16xbf16>, vector<200x16xbf16>, vector<200x16xbf16>, vector<200x16xbf16>, vector<200x16xbf16>, vector<200x16xbf16>, vector<200x16xbf16> -> vector<200x144xbf16>
    %c0_17 = arith.constant 0 : index
    %c0_18 = arith.constant 0 : index
    %36 = vector.load %arg7[%c0_17, %c0_18] : memref<144x16xbf16, #tpu.memory_space<vmem>>, vector<144x16xbf16>
    %cst_19 = arith.constant dense<0.000000e+00> : vector<200x16xf32>
    %37 = tpu.matmul %35, %36, %cst_19 {dimension_numbers = #tpu.dot_dimension_numbers<[1], [0], [0], [1], [0, 0, 1, 1], [], []>} : vector<200x144xbf16>, vector<144x16xbf16>, vector<200x16xf32> -> vector<200x16xf32>
    %c0_20 = arith.constant 0 : index
    %c0_21 = arith.constant 0 : index
    %38 = vector.load %arg8[%c0_20, %c0_21] : memref<1x16xf32, #tpu.memory_space<vmem>>, vector<1x16xf32>
    %39 = vector.broadcast %38 : vector<1x16xf32> to vector<200x16xf32>
    %40 = arith.addf %37, %39 : vector<200x16xf32>
    %cst_22 = arith.constant 0.000000e+00 : f32
    %cst_23 = arith.constant 2.000000e+01 : f32
    %41 = vector.broadcast %cst_22 : f32 to vector<200x16xf32>
    %42 = arith.maximumf %41, %40 : vector<200x16xf32>
    %43 = vector.broadcast %cst_23 : f32 to vector<200x16xf32>
    %44 = arith.minimumf %43, %42 : vector<200x16xf32>
    %45 = arith.truncf %44 : vector<200x16xf32> to vector<200x16xbf16>
    %c0_24 = arith.constant 0 : index
    %c0_25 = arith.constant 0 : index
    %46 = vector.load %arg15[%c0_24, %c0_25] : memref<16x64xbf16, #tpu.memory_space<vmem>>, vector<16x64xbf16>
    %cst_26 = arith.constant dense<0.000000e+00> : vector<200x64xf32>
    %47 = tpu.matmul %45, %46, %cst_26 {dimension_numbers = #tpu.dot_dimension_numbers<[1], [0], [0], [1], [0, 0, 1, 1], [], []>} : vector<200x16xbf16>, vector<16x64xbf16>, vector<200x64xf32> -> vector<200x64xf32>
    %48 = tpu.concatenate %44, %21 in 1 : vector<200x16xf32>, vector<200x16xf32> -> vector<200x32xf32>
    %49 = arith.truncf %48 : vector<200x32xf32> to vector<200x32xbf16>
    %c0_27 = arith.constant 0 : index
    %c0_28 = arith.constant 0 : index
    %50 = vector.load %arg9[%c0_27, %c0_28] : memref<32x4xbf16, #tpu.memory_space<vmem>>, vector<32x4xbf16>
    %cst_29 = arith.constant dense<0.000000e+00> : vector<200x4xf32>
    %51 = tpu.matmul %49, %50, %cst_29 {dimension_numbers = #tpu.dot_dimension_numbers<[1], [0], [0], [1], [0, 0, 1, 1], [], []>} : vector<200x32xbf16>, vector<32x4xbf16>, vector<200x4xf32> -> vector<200x4xf32>
    %c0_30 = arith.constant 0 : index
    %c0_31 = arith.constant 0 : index
    %52 = vector.load %arg10[%c0_30, %c0_31] : memref<1x4xf32, #tpu.memory_space<vmem>>, vector<1x4xf32>
    %53 = vector.broadcast %52 : vector<1x4xf32> to vector<200x4xf32>
    %54 = arith.addf %51, %53 : vector<200x4xf32>
    %55 = arith.negf %54 : vector<200x4xf32>
    %56 = math.exp %55 : vector<200x4xf32>
    %cst_32 = arith.constant 1.000000e+00 : f32
    %57 = vector.broadcast %cst_32 : f32 to vector<200x4xf32>
    %58 = arith.addf %57, %56 : vector<200x4xf32>
    %59 = arith.divf %57, %58 : vector<200x4xf32>
    %60 = arith.mulf %54, %59 : vector<200x4xf32>
    %61 = arith.truncf %60 : vector<200x4xf32> to vector<200x4xbf16>
    %c0_33 = arith.constant 0 : index
    %c0_34 = arith.constant 0 : index
    %62 = vector.load %arg11[%c0_33, %c0_34] : memref<4x16xbf16, #tpu.memory_space<vmem>>, vector<4x16xbf16>
    %cst_35 = arith.constant dense<0.000000e+00> : vector<200x16xf32>
    %63 = tpu.matmul %61, %62, %cst_35 {dimension_numbers = #tpu.dot_dimension_numbers<[1], [0], [0], [1], [0, 0, 1, 1], [], []>} : vector<200x4xbf16>, vector<4x16xbf16>, vector<200x16xf32> -> vector<200x16xf32>
    %c0_36 = arith.constant 0 : index
    %c0_37 = arith.constant 0 : index
    %64 = vector.load %arg12[%c0_36, %c0_37] : memref<1x16xf32, #tpu.memory_space<vmem>>, vector<1x16xf32>
    %65 = vector.broadcast %64 : vector<1x16xf32> to vector<200x16xf32>
    %66 = arith.addf %63, %65 : vector<200x16xf32>
    %67 = math.tanh %66 : vector<200x16xf32>
    %cst_38 = arith.constant 1.000000e+00 : f32
    %68 = vector.broadcast %cst_38 : f32 to vector<200x16xf32>
    %69 = arith.addf %68, %67 : vector<200x16xf32>
    %70 = arith.mulf %44, %69 : vector<200x16xf32>
    %cst_39 = arith.constant 2.000000e+00 : f32
    %71 = vector.broadcast %cst_39 : f32 to vector<200x16xf32>
    %72 = arith.subf %71, %69 : vector<200x16xf32>
    %73 = arith.mulf %21, %72 : vector<200x16xf32>
    %74 = arith.addf %70, %73 : vector<200x16xf32>
    %75 = vector.broadcast %2 : vector<200x1xf32> to vector<200x16xf32>
    %76 = arith.mulf %74, %75 : vector<200x16xf32>
    %77 = arith.truncf %76 : vector<200x16xf32> to vector<200x16xbf16>
    %78 = tpu.concatenate %3, %77, %3 in 0 : vector<16x16xbf16>, vector<200x16xbf16>, vector<16x16xbf16> -> vector<232x16xbf16>
    %79 = vector.extract_strided_slice %78 {offsets = [5, 0], sizes = [200, 16], strides = [1, 1]} : vector<232x16xbf16> to vector<200x16xbf16>
    %80 = vector.extract_strided_slice %78 {offsets = [6, 0], sizes = [200, 16], strides = [1, 1]} : vector<232x16xbf16> to vector<200x16xbf16>
    %81 = vector.extract_strided_slice %78 {offsets = [7, 0], sizes = [200, 16], strides = [1, 1]} : vector<232x16xbf16> to vector<200x16xbf16>
    %82 = vector.extract_strided_slice %78 {offsets = [15, 0], sizes = [200, 16], strides = [1, 1]} : vector<232x16xbf16> to vector<200x16xbf16>
    %83 = vector.extract_strided_slice %78 {offsets = [16, 0], sizes = [200, 16], strides = [1, 1]} : vector<232x16xbf16> to vector<200x16xbf16>
    %84 = vector.extract_strided_slice %78 {offsets = [17, 0], sizes = [200, 16], strides = [1, 1]} : vector<232x16xbf16> to vector<200x16xbf16>
    %85 = vector.extract_strided_slice %78 {offsets = [25, 0], sizes = [200, 16], strides = [1, 1]} : vector<232x16xbf16> to vector<200x16xbf16>
    %86 = vector.extract_strided_slice %78 {offsets = [26, 0], sizes = [200, 16], strides = [1, 1]} : vector<232x16xbf16> to vector<200x16xbf16>
    %87 = vector.extract_strided_slice %78 {offsets = [27, 0], sizes = [200, 16], strides = [1, 1]} : vector<232x16xbf16> to vector<200x16xbf16>
    %88 = tpu.concatenate %79, %80, %81, %82, %83, %84, %85, %86, %87 in 1 : vector<200x16xbf16>, vector<200x16xbf16>, vector<200x16xbf16>, vector<200x16xbf16>, vector<200x16xbf16>, vector<200x16xbf16>, vector<200x16xbf16>, vector<200x16xbf16>, vector<200x16xbf16> -> vector<200x144xbf16>
    %c0_40 = arith.constant 0 : index
    %c0_41 = arith.constant 0 : index
    %89 = vector.load %arg13[%c0_40, %c0_41] : memref<144x16xbf16, #tpu.memory_space<vmem>>, vector<144x16xbf16>
    %cst_42 = arith.constant dense<0.000000e+00> : vector<200x16xf32>
    %90 = tpu.matmul %88, %89, %cst_42 {dimension_numbers = #tpu.dot_dimension_numbers<[1], [0], [0], [1], [0, 0, 1, 1], [], []>} : vector<200x144xbf16>, vector<144x16xbf16>, vector<200x16xf32> -> vector<200x16xf32>
    %c0_43 = arith.constant 0 : index
    %c0_44 = arith.constant 0 : index
    %91 = vector.load %arg14[%c0_43, %c0_44] : memref<1x16xf32, #tpu.memory_space<vmem>>, vector<1x16xf32>
    %92 = vector.broadcast %91 : vector<1x16xf32> to vector<200x16xf32>
    %93 = arith.addf %90, %92 : vector<200x16xf32>
    %cst_45 = arith.constant 0.000000e+00 : f32
    %cst_46 = arith.constant 2.000000e+01 : f32
    %94 = vector.broadcast %cst_45 : f32 to vector<200x16xf32>
    %95 = arith.maximumf %94, %93 : vector<200x16xf32>
    %96 = vector.broadcast %cst_46 : f32 to vector<200x16xf32>
    %97 = arith.minimumf %96, %95 : vector<200x16xf32>
    %98 = arith.truncf %97 : vector<200x16xf32> to vector<200x16xbf16>
    %c0_47 = arith.constant 0 : index
    %c0_48 = arith.constant 0 : index
    %99 = vector.load %arg16[%c0_47, %c0_48] : memref<16x64xbf16, #tpu.memory_space<vmem>>, vector<16x64xbf16>
    %cst_49 = arith.constant dense<0.000000e+00> : vector<200x64xf32>
    %100 = tpu.matmul %98, %99, %cst_49 {dimension_numbers = #tpu.dot_dimension_numbers<[1], [0], [0], [1], [0, 0, 1, 1], [], []>} : vector<200x16xbf16>, vector<16x64xbf16>, vector<200x64xf32> -> vector<200x64xf32>
    %101 = arith.addf %47, %100 : vector<200x64xf32>
    %c0_50 = arith.constant 0 : index
    %c0_51 = arith.constant 0 : index
    %102 = vector.load %arg17[%c0_50, %c0_51] : memref<1x64xf32, #tpu.memory_space<vmem>>, vector<1x64xf32>
    %103 = vector.broadcast %102 : vector<1x64xf32> to vector<200x64xf32>
    %104 = arith.addf %101, %103 : vector<200x64xf32>
    %c0_52 = arith.constant 0 : index
    %c0_53 = arith.constant 0 : index
    %105 = vector.load %arg18[%c0_52, %c0_53] : memref<32x64xbf16, #tpu.memory_space<vmem>>, vector<32x64xbf16>
    %cst_54 = arith.constant dense<0.000000e+00> : vector<200x64xf32>
    %106 = tpu.matmul %1, %105, %cst_54 {dimension_numbers = #tpu.dot_dimension_numbers<[1], [0], [0], [1], [0, 0, 1, 1], [], []>} : vector<200x32xbf16>, vector<32x64xbf16>, vector<200x64xf32> -> vector<200x64xf32>
    %c0_55 = arith.constant 0 : index
    %c0_56 = arith.constant 0 : index
    %107 = vector.load %arg19[%c0_55, %c0_56] : memref<1x64xf32, #tpu.memory_space<vmem>>, vector<1x64xf32>
    %108 = vector.broadcast %107 : vector<1x64xf32> to vector<200x64xf32>
    %109 = arith.addf %106, %108 : vector<200x64xf32>
    %110 = arith.addf %104, %109 : vector<200x64xf32>
    %cst_57 = arith.constant 0.000000e+00 : f32
    %cst_58 = arith.constant 2.000000e+01 : f32
    %111 = vector.broadcast %cst_57 : f32 to vector<200x64xf32>
    %112 = arith.maximumf %111, %110 : vector<200x64xf32>
    %113 = vector.broadcast %cst_58 : f32 to vector<200x64xf32>
    %114 = arith.minimumf %113, %112 : vector<200x64xf32>
    %c0_59 = arith.constant 0 : index
    %c0_60 = arith.constant 0 : index
    %115 = vector.load %arg20[%c0_59, %c0_60] : memref<200x64xf32, #tpu.memory_space<vmem>>, vector<200x64xf32>
    tpu.vector_store %arg20[%c0_59, %c0_60], %114 {strides = array<i32>} : memref<200x64xf32, #tpu.memory_space<vmem>>, vector<200x64xf32>,
    return
  }
  func.func @transform_0(%arg0: i32) -> (i32, i32) {
    %c0_i32 = arith.constant 0 : i32
    %c0_i32_0 = arith.constant 0 : i32
    return %arg0, %c0_i32 : i32, i32
  }
  func.func @transform_1(%arg0: i32) -> (i32, i32) {
    %c0_i32 = arith.constant 0 : i32
    %c0_i32_0 = arith.constant 0 : i32
    %c0_i32_1 = arith.constant 0 : i32
    return %c0_i32, %c0_i32_0 : i32, i32
  }
  func.func @transform_2(%arg0: i32) -> (i32, i32) {
    %c0_i32 = arith.constant 0 : i32
    %c0_i32_0 = arith.constant 0 : i32
    %c0_i32_1 = arith.constant 0 : i32
    return %c0_i32, %c0_i32_0 : i32, i32
  }
  func.func @transform_3(%arg0: i32) -> (i32, i32) {
    %c0_i32 = arith.constant 0 : i32
    %c0_i32_0 = arith.constant 0 : i32
    %c0_i32_1 = arith.constant 0 : i32
    return %c0_i32, %c0_i32_0 : i32, i32
  }
  func.func @transform_4(%arg0: i32) -> (i32, i32) {
    %c0_i32 = arith.constant 0 : i32
    %c0_i32_0 = arith.constant 0 : i32
    %c0_i32_1 = arith.constant 0 : i32
    return %c0_i32, %c0_i32_0 : i32, i32
  }
  func.func @transform_5(%arg0: i32) -> (i32, i32) {
    %c0_i32 = arith.constant 0 : i32
    %c0_i32_0 = arith.constant 0 : i32
    %c0_i32_1 = arith.constant 0 : i32
    return %c0_i32, %c0_i32_0 : i32, i32
  }
  func.func @transform_6(%arg0: i32) -> (i32, i32) {
    %c0_i32 = arith.constant 0 : i32
    %c0_i32_0 = arith.constant 0 : i32
    %c0_i32_1 = arith.constant 0 : i32
    return %c0_i32, %c0_i32_0 : i32, i32
  }
  func.func @transform_7(%arg0: i32) -> (i32, i32) {
    %c0_i32 = arith.constant 0 : i32
    %c0_i32_0 = arith.constant 0 : i32
    %c0_i32_1 = arith.constant 0 : i32
    return %c0_i32, %c0_i32_0 : i32, i32
  }
  func.func @transform_8(%arg0: i32) -> (i32, i32) {
    %c0_i32 = arith.constant 0 : i32
    %c0_i32_0 = arith.constant 0 : i32
    %c0_i32_1 = arith.constant 0 : i32
    return %c0_i32, %c0_i32_0 : i32, i32
  }
  func.func @transform_9(%arg0: i32) -> (i32, i32) {
    %c0_i32 = arith.constant 0 : i32
    %c0_i32_0 = arith.constant 0 : i32
    %c0_i32_1 = arith.constant 0 : i32
    return %c0_i32, %c0_i32_0 : i32, i32
  }
  func.func @transform_10(%arg0: i32) -> (i32, i32) {
    %c0_i32 = arith.constant 0 : i32
    %c0_i32_0 = arith.constant 0 : i32
    %c0_i32_1 = arith.constant 0 : i32
    return %c0_i32, %c0_i32_0 : i32, i32
  }
  func.func @transform_11(%arg0: i32) -> (i32, i32) {
    %c0_i32 = arith.constant 0 : i32
    %c0_i32_0 = arith.constant 0 : i32
    %c0_i32_1 = arith.constant 0 : i32
    return %c0_i32, %c0_i32_0 : i32, i32
  }
  func.func @transform_12(%arg0: i32) -> (i32, i32) {
    %c0_i32 = arith.constant 0 : i32
    %c0_i32_0 = arith.constant 0 : i32
    %c0_i32_1 = arith.constant 0 : i32
    return %c0_i32, %c0_i32_0 : i32, i32
  }
  func.func @transform_13(%arg0: i32) -> (i32, i32) {
    %c0_i32 = arith.constant 0 : i32
    %c0_i32_0 = arith.constant 0 : i32
    %c0_i32_1 = arith.constant 0 : i32
    return %c0_i32, %c0_i32_0 : i32, i32
  }
  func.func @transform_14(%arg0: i32) -> (i32, i32) {
    %c0_i32 = arith.constant 0 : i32
    %c0_i32_0 = arith.constant 0 : i32
    %c0_i32_1 = arith.constant 0 : i32
    return %c0_i32, %c0_i32_0 : i32, i32
  }
  func.func @transform_15(%arg0: i32) -> (i32, i32) {
    %c0_i32 = arith.constant 0 : i32
    %c0_i32_0 = arith.constant 0 : i32
    %c0_i32_1 = arith.constant 0 : i32
    return %c0_i32, %c0_i32_0 : i32, i32
  }
  func.func @transform_16(%arg0: i32) -> (i32, i32) {
    %c0_i32 = arith.constant 0 : i32
    %c0_i32_0 = arith.constant 0 : i32
    %c0_i32_1 = arith.constant 0 : i32
    return %c0_i32, %c0_i32_0 : i32, i32
  }
  func.func @transform_17(%arg0: i32) -> (i32, i32) {
    %c0_i32 = arith.constant 0 : i32
    %c0_i32_0 = arith.constant 0 : i32
    %c0_i32_1 = arith.constant 0 : i32
    return %c0_i32, %c0_i32_0 : i32, i32
  }
  func.func @transform_18(%arg0: i32) -> (i32, i32) {
    %c0_i32 = arith.constant 0 : i32
    %c0_i32_0 = arith.constant 0 : i32
    %c0_i32_1 = arith.constant 0 : i32
    return %c0_i32, %c0_i32_0 : i32, i32
  }
  func.func @transform_19(%arg0: i32) -> (i32, i32) {
    %c0_i32 = arith.constant 0 : i32
    %c0_i32_0 = arith.constant 0 : i32
    return %arg0, %c0_i32 : i32, i32
  }
}

</mosaic_0001>

<llo_original>
// kernel: pallas_forward.1
$region0: #{pallas_forward.1}
  #allocation0 [shape = 'u32[]', space=smem, size = 0x4, offset = 0x4, fixed_abs, tag = 'smem constant byte address 0x4 - core index']
  #allocation1 [shape = 'u32[144,128]{1,0:T(1,128)}', space=vmem, size = 0x12000, scoped, tag = 'internal scratch']
  %s0 = inlined_call_operand.vmem [shape: f32[200,32], index: 0, kind: input, shape index: {}]
  %s1 = inlined_call_operand.vmem [shape: f32[200,1], index: 1, kind: input, shape index: {}]
  %s2 = inlined_call_operand.vmem [shape: bf16[32,16], index: 2, kind: input, shape index: {}]
  %s3 = inlined_call_operand.vmem [shape: f32[1,16], index: 3, kind: input, shape index: {}]
  %s4 = inlined_call_operand.vmem [shape: bf16[32,16], index: 4, kind: input, shape index: {}]
  %s5 = inlined_call_operand.vmem [shape: f32[1,16], index: 5, kind: input, shape index: {}]
  %s6 = inlined_call_operand.vmem [shape: bf16[144,16], index: 6, kind: input, shape index: {}]
  %s7 = inlined_call_operand.vmem [shape: f32[1,16], index: 7, kind: input, shape index: {}]
  %s8 = inlined_call_operand.vmem [shape: bf16[32,4], index: 8, kind: input, shape index: {}]
  %s9 = inlined_call_operand.vmem [shape: f32[1,4], index: 9, kind: input, shape index: {}]
  %s10 = inlined_call_operand.vmem [shape: bf16[4,16], index: 10, kind: input, shape index: {}]
  %s11 = inlined_call_operand.vmem [shape: f32[1,16], index: 11, kind: input, shape index: {}]
  %s12 = inlined_call_operand.vmem [shape: bf16[144,16], index: 12, kind: input, shape index: {}]
  %s13 = inlined_call_operand.vmem [shape: f32[1,16], index: 13, kind: input, shape index: {}]
  %s14 = inlined_call_operand.vmem [shape: bf16[16,64], index: 14, kind: input, shape index: {}]
  %s15 = inlined_call_operand.vmem [shape: bf16[16,64], index: 15, kind: input, shape index: {}]
  %s16 = inlined_call_operand.vmem [shape: f32[1,64], index: 16, kind: input, shape index: {}]
  %s17 = inlined_call_operand.vmem [shape: bf16[32,64], index: 17, kind: input, shape index: {}]
  %s18 = inlined_call_operand.vmem [shape: f32[1,64], index: 18, kind: input, shape index: {}]
  %s19 = inlined_call_operand.vmem [shape: f32[200,64], index: 19, kind: output, shape index: {}]
  %s20 = sld [smem:[#allocation0]]
  $region86: #{pallas_forward.1} parent=0
    _
  %s22 = ssub.s32 1, %s20
  %s23 = scalar_select 0, %s22, %s20
  // Predicated region
  $region2: #{pallas_forward.1} parent=0 // pred_check
    _
  $region3: #{pallas_forward.1} parent=0 // pred_check_branch
    %25 = sbr.rel (0) target = $region5
  $region4: #{pallas_forward.1} parent=0 // pred_region
    _
  $region5: #{pallas_forward.1} parent=0 // pred_fallthru
    _
  // Predicated region
  $region6: #{pallas_forward.1} parent=0 // pred_check
    _
  $region7: #{pallas_forward.1} parent=0 // pred_check_branch
    %27 = sbr.rel (0) target = $region9
  $region8: #{pallas_forward.1} parent=0 // pred_region
    _
  $region9: #{pallas_forward.1} parent=0 // pred_fallthru
    _
  // Predicated region
  $region10: #{pallas_forward.1} parent=0 // pred_check
    _
  $region11: #{pallas_forward.1} parent=0 // pred_check_branch
    %29 = sbr.rel (0) target = $region13
  $region12: #{pallas_forward.1} parent=0 // pred_region
    _
  $region13: #{pallas_forward.1} parent=0 // pred_fallthru
    _
  // Predicated region
  $region14: #{pallas_forward.1} parent=0 // pred_check
    _
  $region15: #{pallas_forward.1} parent=0 // pred_check_branch
    %31 = sbr.rel (0) target = $region17
  $region16: #{pallas_forward.1} parent=0 // pred_region
    _
  $region17: #{pallas_forward.1} parent=0 // pred_fallthru
    _
  // Predicated region
  $region18: #{pallas_forward.1} parent=0 // pred_check
    _
  $region19: #{pallas_forward.1} parent=0 // pred_check_branch
    %33 = sbr.rel (0) target = $region21
  $region20: #{pallas_forward.1} parent=0 // pred_region
    _
  $region21: #{pallas_forward.1} parent=0 // pred_fallthru
    _
  // Predicated region
  $region22: #{pallas_forward.1} parent=0 // pred_check
    _
  $region23: #{pallas_forward.1} parent=0 // pred_check_branch
    %35 = sbr.rel (0) target = $region25
  $region24: #{pallas_forward.1} parent=0 // pred_region
    _
  $region25: #{pallas_forward.1} parent=0 // pred_fallthru
    _
  // Predicated region
  $region26: #{pallas_forward.1} parent=0 // pred_check
    _
  $region27: #{pallas_forward.1} parent=0 // pred_check_branch
    %37 = sbr.rel (0) target = $region29
  $region28: #{pallas_forward.1} parent=0 // pred_region
    _
  $region29: #{pallas_forward.1} parent=0 // pred_fallthru
    _
  // Predicated region
  $region30: #{pallas_forward.1} parent=0 // pred_check
    _
  $region31: #{pallas_forward.1} parent=0 // pred_check_branch
    %39 = sbr.rel (0) target = $region33
  $region32: #{pallas_forward.1} parent=0 // pred_region
    _
  $region33: #{pallas_forward.1} parent=0 // pred_fallthru
    _
  // Predicated region
  $region34: #{pallas_forward.1} parent=0 // pred_check
    _
  $region35: #{pallas_forward.1} parent=0 // pred_check_branch
    %41 = sbr.rel (0) target = $region37
  $region36: #{pallas_forward.1} parent=0 // pred_region
    _
  $region37: #{pallas_forward.1} parent=0 // pred_fallthru
    _
  // Predicated region
  $region38: #{pallas_forward.1} parent=0 // pred_check
    _
  $region39: #{pallas_forward.1} parent=0 // pred_check_branch
    %43 = sbr.rel (0) target = $region41
  $region40: #{pallas_forward.1} parent=0 // pred_region
    _
  $region41: #{pallas_forward.1} parent=0 // pred_fallthru
    _
  // Predicated region
  $region42: #{pallas_forward.1} parent=0 // pred_check
    _
  $region43: #{pallas_forward.1} parent=0 // pred_check_branch
    %45 = sbr.rel (0) target = $region45
  $region44: #{pallas_forward.1} parent=0 // pred_region
    _
  $region45: #{pallas_forward.1} parent=0 // pred_fallthru
    _
  // Predicated region
  $region46: #{pallas_forward.1} parent=0 // pred_check
    _
  $region47: #{pallas_forward.1} parent=0 // pred_check_branch
    %47 = sbr.rel (0) target = $region49
  $region48: #{pallas_forward.1} parent=0 // pred_region
    _
  $region49: #{pallas_forward.1} parent=0 // pred_fallthru
    _
  // Predicated region
  $region50: #{pallas_forward.1} parent=0 // pred_check
    _
  $region51: #{pallas_forward.1} parent=0 // pred_check_branch
    %49 = sbr.rel (0) target = $region53
  $region52: #{pallas_forward.1} parent=0 // pred_region
    _
  $region53: #{pallas_forward.1} parent=0 // pred_fallthru
    _
  // Predicated region
  $region54: #{pallas_forward.1} parent=0 // pred_check
    _
  $region55: #{pallas_forward.1} parent=0 // pred_check_branch
    %51 = sbr.rel (0) target = $region57
  $region56: #{pallas_forward.1} parent=0 // pred_region
    _
  $region57: #{pallas_forward.1} parent=0 // pred_fallthru
    _
  // Predicated region
  $region58: #{pallas_forward.1} parent=0 // pred_check
    _
  $region59: #{pallas_forward.1} parent=0 // pred_check_branch
    %53 = sbr.rel (0) target = $region61
  $region60: #{pallas_forward.1} parent=0 // pred_region
    _
  $region61: #{pallas_forward.1} parent=0 // pred_fallthru
    _
  // Predicated region
  $region62: #{pallas_forward.1} parent=0 // pred_check
    _
  $region63: #{pallas_forward.1} parent=0 // pred_check_branch
    %55 = sbr.rel (0) target = $region65
  $region64: #{pallas_forward.1} parent=0 // pred_region
    _
  $region65: #{pallas_forward.1} parent=0 // pred_fallthru
    _
  // Predicated region
  $region66: #{pallas_forward.1} parent=0 // pred_check
    _
  $region67: #{pallas_forward.1} parent=0 // pred_check_branch
    %57 = sbr.rel (0) target = $region69
  $region68: #{pallas_forward.1} parent=0 // pred_region
    _
  $region69: #{pallas_forward.1} parent=0 // pred_fallthru
    _
  // Predicated region
  $region70: #{pallas_forward.1} parent=0 // pred_check
    _
  $region71: #{pallas_forward.1} parent=0 // pred_check_branch
    %59 = sbr.rel (0) target = $region73
  $region72: #{pallas_forward.1} parent=0 // pred_region
    _
  $region73: #{pallas_forward.1} parent=0 // pred_fallthru
    _
  // Predicated region
  $region74: #{pallas_forward.1} parent=0 // pred_check
    _
  $region75: #{pallas_forward.1} parent=0 // pred_check_branch
    %61 = sbr.rel (0) target = $region77
  $region76: #{pallas_forward.1} parent=0 // pred_region
    _
  $region77: #{pallas_forward.1} parent=0 // pred_fallthru
    _
  %v63 = vld [vmem:[%s0] sm:$0xff]
  %v64 = vld [vmem:[%s0 + $0x8] sm:$0xff]
  %v65 = vld [vmem:[%s0 + $0x10] sm:$0xff]
  %v66 = vld [vmem:[%s0 + $0x18] sm:$0xff]
  %v67 = vld [vmem:[%s0 + $0x20] sm:$0xff]
  %v68 = vld [vmem:[%s0 + $0x28] sm:$0xff]
  %v69 = vld [vmem:[%s0 + $0x30] sm:$0xff]
  %v70 = vld [vmem:[%s0 + $0x38] sm:$0xff]
  %v71 = vld [vmem:[%s0 + $0x40] sm:$0xff]
  %v72 = vld [vmem:[%s0 + $0x48] sm:$0xff]
  %v73 = vld [vmem:[%s0 + $0x50] sm:$0xff]
  %v74 = vld [vmem:[%s0 + $0x58] sm:$0xff]
  %v75 = vld [vmem:[%s0 + $0x60] sm:$0xff]
  %v76 = vld [vmem:[%s0 + $0x68] sm:$0xff]
  %v77 = vld [vmem:[%s0 + $0x70] sm:$0xff]
  %v78 = vld [vmem:[%s0 + $0x78] sm:$0xff]
  %v79 = vld [vmem:[%s0 + $0x80] sm:$0xff]
  %v80 = vld [vmem:[%s0 + $0x88] sm:$0xff]
  %v81 = vld [vmem:[%s0 + $0x90] sm:$0xff]
  %v82 = vld [vmem:[%s0 + $0x98] sm:$0xff]
  %v83 = vld [vmem:[%s0 + $0xa0] sm:$0xff]
  %v84 = vld [vmem:[%s0 + $0xa8] sm:$0xff]
  %v85 = vld [vmem:[%s0 + $0xb0] sm:$0xff]
  %v86 = vld [vmem:[%s0 + $0xb8] sm:$0xff]
  %v87 = vld [vmem:[%s0 + $0xc0] sm:$0xff]
  %v88 = vpack.c.bf16 %v64, %v63
  %v89 = vpack.c.bf16 %v66, %v65
  %v90 = vpack.c.bf16 %v68, %v67
  %v91 = vpack.c.bf16 %v70, %v69
  %v92 = vpack.c.bf16 %v72, %v71
  %v93 = vpack.c.bf16 %v74, %v73
  %v94 = vpack.c.bf16 %v76, %v75
  %v95 = vpack.c.bf16 %v78, %v77
  %v96 = vpack.c.bf16 %v80, %v79
  %v97 = vpack.c.bf16 %v82, %v81
  %v98 = vpack.c.bf16 %v84, %v83
  %v99 = vpack.c.bf16 %v86, %v85
  %v100 = vpack.c.bf16 %v87, %v87
  %v101 = vld [vmem:[%s1] sm:$0xff]
  %v102 = vld [vmem:[%s1 + $0x8] sm:$0xff]
  %v103 = vld [vmem:[%s1 + $0x10] sm:$0xff]
  %v104 = vld [vmem:[%s1 + $0x18] sm:$0xff]
  %v105 = vld [vmem:[%s1 + $0x20] sm:$0xff]
  %v106 = vld [vmem:[%s1 + $0x28] sm:$0xff]
  %v107 = vld [vmem:[%s1 + $0x30] sm:$0xff]
  %v108 = vld [vmem:[%s1 + $0x38] sm:$0xff]
  %v109 = vld [vmem:[%s1 + $0x40] sm:$0xff]
  %v110 = vld [vmem:[%s1 + $0x48] sm:$0xff]
  %v111 = vld [vmem:[%s1 + $0x50] sm:$0xff]
  %v112 = vld [vmem:[%s1 + $0x58] sm:$0xff]
  %v113 = vld [vmem:[%s1 + $0x60] sm:$0xff]
  %v114 = vld [vmem:[%s1 + $0x68] sm:$0xff]
  %v115 = vld [vmem:[%s1 + $0x70] sm:$0xff]
  %v116 = vld [vmem:[%s1 + $0x78] sm:$0xff]
  %v117 = vld [vmem:[%s1 + $0x80] sm:$0xff]
  %v118 = vld [vmem:[%s1 + $0x88] sm:$0xff]
  %v119 = vld [vmem:[%s1 + $0x90] sm:$0xff]
  %v120 = vld [vmem:[%s1 + $0x98] sm:$0xff]
  %v121 = vld [vmem:[%s1 + $0xa0] sm:$0xff]
  %v122 = vld [vmem:[%s1 + $0xa8] sm:$0xff]
  %v123 = vld [vmem:[%s1 + $0xb0] sm:$0xff]
  %v124 = vld [vmem:[%s1 + $0xb8] sm:$0xff]
  %v125 = vld [vmem:[%s1 + $0xc0] sm:$0xff]
  %v126 = vld [vmem:[%s2] sm:$0xf]
  %v127 = vld [vmem:[%s2 + $0x4] sm:$0xf]
  %v128 = vld [vmem:[%s2 + $0x8] sm:$0xf]
  %v129 = vld [vmem:[%s2 + $0xc] sm:$0xf]
  %v130 = vld [vmem:[%s3] sm:$0x1]
  %v132 = vlaneseq
  %v133 = vshrl.u32 %v132, 7
  %v134 = vsub.s32 0, %v133
  %v135 = vrot.slane %v130, %v134
  %v141 = vunpack.c.l.b16 %v126
  %v142 = vunpack.c.l.b16 %v127
  %v143 = vunpack.c.l.b16 %v128
  %v144 = vunpack.c.l.b16 %v129
  %v145 = vpack.c.b16 %v142, %v141
  %v146 = vpack.c.b16 %v144, %v143
  %vm149 = vcmask 261120
  %v151 = vsel %vm149, %v88, 0
  %v154 = vsel %vm149, %v89, 0
  %v157 = vsel %vm149, %v90, 0
  %v160 = vsel %vm149, %v91, 0
  %v163 = vsel %vm149, %v92, 0
  %v166 = vsel %vm149, %v93, 0
  %v169 = vsel %vm149, %v94, 0
  %v172 = vsel %vm149, %v95, 0
  %v175 = vsel %vm149, %v96, 0
  %v178 = vsel %vm149, %v97, 0
  %v181 = vsel %vm149, %v98, 0
  %v184 = vsel %vm149, %v99, 0
  %v187 = vsel %vm149, %v100, 0
  %189 = vmatprep.subr.bf16.mxu0 0
  %190 = vmatpush1.bf16.msra.mxu0 %v145
  %191 = vmatprep.subr.bf16.mxu0 0
  %192 = vmatpush1.bf16.msra.mxu0 %v146
  %193 = vmatprep.subr.bf16.mxu0 0
  %194 = vmatpush1.bf16.msra.mxu0 0
  %195 = vmatprep.subr.bf16.mxu0 0
  %196 = vmatpush1.bf16.msra.mxu0 0
  %197 = vmatprep.subr.bf16.mxu0 0
  %198 = vmatpush1.bf16.msra.mxu0 0
  %199 = vmatprep.subr.bf16.mxu0 0
  %200 = vmatpush1.bf16.msra.mxu0 0
  %201 = vmatprep.subr.bf16.mxu0 0
  %202 = vmatpush1.bf16.msra.mxu0 0
  %203 = vmatprep.subr.bf16.mxu0 0
  %204 = vmatpush1.bf16.msra.mxu0 0
  %205 = vmatprep.subr.bf16.mxu0 0
  %206 = vmatpush1.bf16.msra.mxu0 0
  %207 = vmatprep.subr.bf16.mxu0 0
  %208 = vmatpush1.bf16.msra.mxu0 0
  %209 = vmatprep.subr.bf16.mxu0 0
  %210 = vmatpush1.bf16.msra.mxu0 0
  %211 = vmatprep.subr.bf16.mxu0 0
  %212 = vmatpush1.bf16.msra.mxu0 0
  %213 = vmatprep.subr.bf16.mxu0 0
  %214 = vmatpush1.bf16.msra.mxu0 0
  %215 = vmatprep.subr.bf16.mxu0 0
  %216 = vmatpush1.bf16.msra.mxu0 0
  %217 = vmatprep.subr.bf16.mxu0 0
  %218 = vmatpush1.bf16.msra.mxu0 0
  %219 = vmatprep.subr.bf16.mxu0 0
  %220 = vmatpush1.bf16.msra.mxu0 0
  %221 = vmatprep.mubr.bf16.mxu0 0
  %222 = vmatmul.mubr.bf16.gmra.mrb[0].mxu0 %v151
  %v223 = vpop.f32.mrb[0].mxu0
  %v224 = vadd.f32 %v135, %v223
  %v225 = vpop.f32.mrb[0].mxu0
  %v226 = vpop.f32.mrb[0].mxu0
  %v227 = vadd.f32 %v135, %v226
  %v228 = vpop.f32.mrb[0].mxu0
  %229 = vmatprep.mubr.bf16.mxu0 0
  %230 = vmatmul.mubr.bf16.gmra.mrb[0].mxu0 %v154
  %v231 = vpop.f32.mrb[0].mxu0
  %v232 = vadd.f32 %v135, %v231
  %v233 = vpop.f32.mrb[0].mxu0
  %v234 = vpop.f32.mrb[0].mxu0
  %v235 = vadd.f32 %v135, %v234
  %v236 = vpop.f32.mrb[0].mxu0
  %237 = vmatprep.mubr.bf16.mxu0 0
  %238 = vmatmul.mubr.bf16.gmra.mrb[0].mxu0 %v157
  %v239 = vpop.f32.mrb[0].mxu0
  %v240 = vadd.f32 %v135, %v239
  %v241 = vpop.f32.mrb[0].mxu0
  %v242 = vpop.f32.mrb[0].mxu0
  %v243 = vadd.f32 %v135, %v242
  %v244 = vpop.f32.mrb[0].mxu0
  %245 = vmatprep.mubr.bf16.mxu0 0
  %246 = vmatmul.mubr.bf16.gmra.mrb[0].mxu0 %v160
  %v247 = vpop.f32.mrb[0].mxu0
  %v248 = vadd.f32 %v135, %v247
  %v249 = vpop.f32.mrb[0].mxu0
  %v250 = vpop.f32.mrb[0].mxu0
  %v251 = vadd.f32 %v135, %v250
  %v252 = vpop.f32.mrb[0].mxu0
  %253 = vmatprep.mubr.bf16.mxu0 0
  %254 = vmatmul.mubr.bf16.gmra.mrb[0].mxu0 %v163
  %v255 = vpop.f32.mrb[0].mxu0
  %v256 = vadd.f32 %v135, %v255
  %v257 = vpop.f32.mrb[0].mxu0
  %v258 = vpop.f32.mrb[0].mxu0
  %v259 = vadd.f32 %v135, %v258
  %v260 = vpop.f32.mrb[0].mxu0
  %261 = vmatprep.mubr.bf16.mxu0 0
  %262 = vmatmul.mubr.bf16.gmra.mrb[0].mxu0 %v166
  %v263 = vpop.f32.mrb[0].mxu0
  %v264 = vadd.f32 %v135, %v263
  %v265 = vpop.f32.mrb[0].mxu0
  %v266 = vpop.f32.mrb[0].mxu0
  %v267 = vadd.f32 %v135, %v266
  %v268 = vpop.f32.mrb[0].mxu0
  %269 = vmatprep.mubr.bf16.mxu0 0
  %270 = vmatmul.mubr.bf16.gmra.mrb[0].mxu0 %v169
  %v271 = vpop.f32.mrb[0].mxu0
  %v272 = vadd.f32 %v135, %v271
  %v273 = vpop.f32.mrb[0].mxu0
  %v274 = vpop.f32.mrb[0].mxu0
  %v275 = vadd.f32 %v135, %v274
  %v276 = vpop.f32.mrb[0].mxu0
  %277 = vmatprep.mubr.bf16.mxu0 0
  %278 = vmatmul.mubr.bf16.gmra.mrb[0].mxu0 %v172
  %v279 = vpop.f32.mrb[0].mxu0
  %v280 = vadd.f32 %v135, %v279
  %v281 = vpop.f32.mrb[0].mxu0
  %v282 = vpop.f32.mrb[0].mxu0
  %v283 = vadd.f32 %v135, %v282
  %v284 = vpop.f32.mrb[0].mxu0
  %285 = vmatprep.mubr.bf16.mxu0 0
  %286 = vmatmul.mubr.bf16.gmra.mrb[0].mxu0 %v175
  %v287 = vpop.f32.mrb[0].mxu0
  %v288 = vadd.f32 %v135, %v287
  %v289 = vpop.f32.mrb[0].mxu0
  %v290 = vpop.f32.mrb[0].mxu0
  %v291 = vadd.f32 %v135, %v290
  %v292 = vpop.f32.mrb[0].mxu0
  %293 = vmatprep.mubr.bf16.mxu0 0
  %294 = vmatmul.mubr.bf16.gmra.mrb[0].mxu0 %v178
  %v295 = vpop.f32.mrb[0].mxu0
  %v296 = vadd.f32 %v135, %v295
  %v297 = vpop.f32.mrb[0].mxu0
  %v298 = vpop.f32.mrb[0].mxu0
  %v299 = vadd.f32 %v135, %v298
  %v300 = vpop.f32.mrb[0].mxu0
  %301 = vmatprep.mubr.bf16.mxu0 0
  %302 = vmatmul.mubr.bf16.gmra.mrb[0].mxu0 %v181
  %v303 = vpop.f32.mrb[0].mxu0
  %v304 = vadd.f32 %v135, %v303
  %v305 = vpop.f32.mrb[0].mxu0
  %v306 = vpop.f32.mrb[0].mxu0
  %v307 = vadd.f32 %v135, %v306
  %v308 = vpop.f32.mrb[0].mxu0
  %309 = vmatprep.mubr.bf16.mxu0 0
  %310 = vmatmul.mubr.bf16.gmra.mrb[0].mxu0 %v184
  %v311 = vpop.f32.mrb[0].mxu0
  %v312 = vadd.f32 %v135, %v311
  %v313 = vpop.f32.mrb[0].mxu0
  %v314 = vpop.f32.mrb[0].mxu0
  %v315 = vadd.f32 %v135, %v314
  %v316 = vpop.f32.mrb[0].mxu0
  %317 = vmatprep.mubr.bf16.mxu0 0
  %318 = vmatmul.mubr.bf16.gmra.mrb[0].mxu0 %v187
  %v319 = vpop.f32.mrb[0].mxu0
  %v320 = vadd.f32 %v135, %v319
  %v321 = vpop.f32.mrb[0].mxu0
  %v322 = vpop.f32.mrb[0].mxu0
  %v323 = vpop.f32.mrb[0].mxu0
  %324 = vdwg.mxu0
  %v325 = vmax.f32 %v224, 0.0
  %v326 = vmax.f32 %v227, 0.0
  %v327 = vmax.f32 %v232, 0.0
  %v328 = vmax.f32 %v235, 0.0
  %v329 = vmax.f32 %v240, 0.0
  %v330 = vmax.f32 %v243, 0.0
  %v331 = vmax.f32 %v248, 0.0
  %v332 = vmax.f32 %v251, 0.0
  %v333 = vmax.f32 %v256, 0.0
  %v334 = vmax.f32 %v259, 0.0
  %v335 = vmax.f32 %v264, 0.0
  %v336 = vmax.f32 %v267, 0.0
  %v337 = vmax.f32 %v272, 0.0
  %v338 = vmax.f32 %v275, 0.0
  %v339 = vmax.f32 %v280, 0.0
  %v340 = vmax.f32 %v283, 0.0
  %v341 = vmax.f32 %v288, 0.0
  %v342 = vmax.f32 %v291, 0.0
  %v343 = vmax.f32 %v296, 0.0
  %v344 = vmax.f32 %v299, 0.0
  %v345 = vmax.f32 %v304, 0.0
  %v346 = vmax.f32 %v307, 0.0
  %v347 = vmax.f32 %v312, 0.0
  %v348 = vmax.f32 %v315, 0.0
  %v349 = vmax.f32 %v320, 0.0
  %v350 = vmin.f32 %v325, 20.0
  %v351 = vmin.f32 %v326, 20.0
  %v352 = vmin.f32 %v327, 20.0
  %v353 = vmin.f32 %v328, 20.0
  %v354 = vmin.f32 %v329, 20.0
  %v355 = vmin.f32 %v330, 20.0
  %v356 = vmin.f32 %v331, 20.0
  %v357 = vmin.f32 %v332, 20.0
  %v358 = vmin.f32 %v333, 20.0
  %v359 = vmin.f32 %v334, 20.0
  %v360 = vmin.f32 %v335, 20.0
  %v361 = vmin.f32 %v336, 20.0
  %v362 = vmin.f32 %v337, 20.0
  %v363 = vmin.f32 %v338, 20.0
  %v364 = vmin.f32 %v339, 20.0
  %v365 = vmin.f32 %v340, 20.0
  %v366 = vmin.f32 %v341, 20.0
  %v367 = vmin.f32 %v342, 20.0
  %v368 = vmin.f32 %v343, 20.0
  %v369 = vmin.f32 %v344, 20.0
  %v370 = vmin.f32 %v345, 20.0
  %v371 = vmin.f32 %v346, 20.0
  %v372 = vmin.f32 %v347, 20.0
  %v373 = vmin.f32 %v348, 20.0
  %v374 = vmin.f32 %v349, 20.0
  %v375 = vld [vmem:[%s4] sm:$0xf]
  %v376 = vld [vmem:[%s4 + $0x4] sm:$0xf]
  %v377 = vld [vmem:[%s4 + $0x8] sm:$0xf]
  %v378 = vld [vmem:[%s4 + $0xc] sm:$0xf]
  %v379 = vld [vmem:[%s5] sm:$0x1]
  %v381 = vlaneseq
  %v382 = vshrl.u32 %v381, 7
  %v383 = vsub.s32 0, %v382
  %v384 = vrot.slane %v379, %v383
  %v390 = vunpack.c.l.b16 %v375
  %v391 = vunpack.c.l.b16 %v376
  %v392 = vunpack.c.l.b16 %v377
  %v393 = vunpack.c.l.b16 %v378
  %v394 = vpack.c.b16 %v391, %v390
  %v395 = vpack.c.b16 %v393, %v392
  %398 = vmatprep.subr.bf16.mxu0 0
  %399 = vmatpush1.bf16.msra.mxu0 %v394
  %400 = vmatprep.subr.bf16.mxu0 0
  %401 = vmatpush1.bf16.msra.mxu0 %v395
  %402 = vmatprep.subr.bf16.mxu0 0
  %403 = vmatpush1.bf16.msra.mxu0 0
  %404 = vmatprep.subr.bf16.mxu0 0
  %405 = vmatpush1.bf16.msra.mxu0 0
  %406 = vmatprep.subr.bf16.mxu0 0
  %407 = vmatpush1.bf16.msra.mxu0 0
  %408 = vmatprep.subr.bf16.mxu0 0
  %409 = vmatpush1.bf16.msra.mxu0 0
  %410 = vmatprep.subr.bf16.mxu0 0
  %411 = vmatpush1.bf16.msra.mxu0 0
  %412 = vmatprep.subr.bf16.mxu0 0
  %413 = vmatpush1.bf16.msra.mxu0 0
  %414 = vmatprep.subr.bf16.mxu0 0
  %415 = vmatpush1.bf16.msra.mxu0 0
  %416 = vmatprep.subr.bf16.mxu0 0
  %417 = vmatpush1.bf16.msra.mxu0 0
  %418 = vmatprep.subr.bf16.mxu0 0
  %419 = vmatpush1.bf16.msra.mxu0 0
  %420 = vmatprep.subr.bf16.mxu0 0
  %421 = vmatpush1.bf16.msra.mxu0 0
  %422 = vmatprep.subr.bf16.mxu0 0
  %423 = vmatpush1.bf16.msra.mxu0 0
  %424 = vmatprep.subr.bf16.mxu0 0
  %425 = vmatpush1.bf16.msra.mxu0 0
  %426 = vmatprep.subr.bf16.mxu0 0
  %427 = vmatpush1.bf16.msra.mxu0 0
  %428 = vmatprep.subr.bf16.mxu0 0
  %429 = vmatpush1.bf16.msra.mxu0 0
  %430 = vmatprep.mubr.bf16.mxu0 0
  %431 = vmatmul.mubr.bf16.gmra.mrb[0].mxu0 %v151
  %v432 = vpop.f32.mrb[0].mxu0
  %v433 = vadd.f32 %v384, %v432
  %v434 = vpop.f32.mrb[0].mxu0
  %v435 = vpop.f32.mrb[0].mxu0
  %v436 = vadd.f32 %v384, %v435
  %v437 = vpop.f32.mrb[0].mxu0
  %438 = vmatprep.mubr.bf16.mxu0 0
  %439 = vmatmul.mubr.bf16.gmra.mrb[0].mxu0 %v154
  %v440 = vpop.f32.mrb[0].mxu0
  %v441 = vadd.f32 %v384, %v440
  %v442 = vpop.f32.mrb[0].mxu0
  %v443 = vpop.f32.mrb[0].mxu0
  %v444 = vadd.f32 %v384, %v443
  %v445 = vpop.f32.mrb[0].mxu0
  %446 = vmatprep.mubr.bf16.mxu0 0
  %447 = vmatmul.mubr.bf16.gmra.mrb[0].mxu0 %v157
  %v448 = vpop.f32.mrb[0].mxu0
  %v449 = vadd.f32 %v384, %v448
  %v450 = vpop.f32.mrb[0].mxu0
  %v451 = vpop.f32.mrb[0].mxu0
  %v452 = vadd.f32 %v384, %v451
  %v453 = vpop.f32.mrb[0].mxu0
  %454 = vmatprep.mubr.bf16.mxu0 0
  %455 = vmatmul.mubr.bf16.gmra.mrb[0].mxu0 %v160
  %v456 = vpop.f32.mrb[0].mxu0
  %v457 = vadd.f32 %v384, %v456
  %v458 = vpop.f32.mrb[0].mxu0
  %v459 = vpop.f32.mrb[0].mxu0
  %v460 = vadd.f32 %v384, %v459
  %v461 = vpop.f32.mrb[0].mxu0
  %462 = vmatprep.mubr.bf16.mxu0 0
  %463 = vmatmul.mubr.bf16.gmra.mrb[0].mxu0 %v163
  %v464 = vpop.f32.mrb[0].mxu0
  %v465 = vadd.f32 %v384, %v464
  %v466 = vpop.f32.mrb[0].mxu0
  %v467 = vpop.f32.mrb[0].mxu0
  %v468 = vadd.f32 %v384, %v467
  %v469 = vpop.f32.mrb[0].mxu0
  %470 = vmatprep.mubr.bf16.mxu0 0
  %471 = vmatmul.mubr.bf16.gmra.mrb[0].mxu0 %v166
  %v472 = vpop.f32.mrb[0].mxu0
  %v473 = vadd.f32 %v384, %v472
  %v474 = vpop.f32.mrb[0].mxu0
  %v475 = vpop.f32.mrb[0].mxu0
  %v476 = vadd.f32 %v384, %v475
  %v477 = vpop.f32.mrb[0].mxu0
  %478 = vmatprep.mubr.bf16.mxu0 0
  %479 = vmatmul.mubr.bf16.gmra.mrb[0].mxu0 %v169
  %v480 = vpop.f32.mrb[0].mxu0
  %v481 = vadd.f32 %v384, %v480
  %v482 = vpop.f32.mrb[0].mxu0
  %v483 = vpop.f32.mrb[0].mxu0
  %v484 = vadd.f32 %v384, %v483
  %v485 = vpop.f32.mrb[0].mxu0
  %486 = vmatprep.mubr.bf16.mxu0 0
  %487 = vmatmul.mubr.bf16.gmra.mrb[0].mxu0 %v172
  %v488 = vpop.f32.mrb[0].mxu0
  %v489 = vadd.f32 %v384, %v488
  %v490 = vpop.f32.mrb[0].mxu0
  %v491 = vpop.f32.mrb[0].mxu0
  %v492 = vadd.f32 %v384, %v491
  %v493 = vpop.f32.mrb[0].mxu0
  %494 = vmatprep.mubr.bf16.mxu0 0
  %495 = vmatmul.mubr.bf16.gmra.mrb[0].mxu0 %v175
  %v496 = vpop.f32.mrb[0].mxu0
  %v497 = vadd.f32 %v384, %v496
  %v498 = vpop.f32.mrb[0].mxu0
  %v499 = vpop.f32.mrb[0].mxu0
  %v500 = vadd.f32 %v384, %v499
  %v501 = vpop.f32.mrb[0].mxu0
  %502 = vmatprep.mubr.bf16.mxu0 0
  %503 = vmatmul.mubr.bf16.gmra.mrb[0].mxu0 %v178
  %v504 = vpop.f32.mrb[0].mxu0
  %v505 = vadd.f32 %v384, %v504
  %v506 = vpop.f32.mrb[0].mxu0
  %v507 = vpop.f32.mrb[0].mxu0
  %v508 = vadd.f32 %v384, %v507
  %v509 = vpop.f32.mrb[0].mxu0
  %510 = vmatprep.mubr.bf16.mxu0 0
  %511 = vmatmul.mubr.bf16.gmra.mrb[0].mxu0 %v181
  %v512 = vpop.f32.mrb[0].mxu0
  %v513 = vadd.f32 %v384, %v512
  %v514 = vpop.f32.mrb[0].mxu0
  %v515 = vpop.f32.mrb[0].mxu0
  %v516 = vadd.f32 %v384, %v515
  %v517 = vpop.f32.mrb[0].mxu0
  %518 = vmatprep.mubr.bf16.mxu0 0
  %519 = vmatmul.mubr.bf16.gmra.mrb[0].mxu0 %v184
  %v520 = vpop.f32.mrb[0].mxu0
  %v521 = vadd.f32 %v384, %v520
  %v522 = vpop.f32.mrb[0].mxu0
  %v523 = vpop.f32.mrb[0].mxu0
  %v524 = vadd.f32 %v384, %v523
  %v525 = vpop.f32.mrb[0].mxu0
  %526 = vmatprep.mubr.bf16.mxu0 0
  %527 = vmatmul.mubr.bf16.gmra.mrb[0].mxu0 %v187
  %v528 = vpop.f32.mrb[0].mxu0
  %v529 = vadd.f32 %v384, %v528
  %v530 = vpop.f32.mrb[0].mxu0
  %v531 = vpop.f32.mrb[0].mxu0
  %v532 = vpop.f32.mrb[0].mxu0
  %533 = vdwg.mxu0
  %v534 = vmax.f32 %v433, 0.0
  %v535 = vmax.f32 %v436, 0.0
  %v536 = vmax.f32 %v441, 0.0
  %v537 = vmax.f32 %v444, 0.0
  %v538 = vmax.f32 %v449, 0.0
  %v539 = vmax.f32 %v452, 0.0
  %v540 = vmax.f32 %v457, 0.0
  %v541 = vmax.f32 %v460, 0.0
  %v542 = vmax.f32 %v465, 0.0
  %v543 = vmax.f32 %v468, 0.0
  %v544 = vmax.f32 %v473, 0.0
  %v545 = vmax.f32 %v476, 0.0
  %v546 = vmax.f32 %v481, 0.0
  %v547 = vmax.f32 %v484, 0.0
  %v548 = vmax.f32 %v489, 0.0
  %v549 = vmax.f32 %v492, 0.0
  %v550 = vmax.f32 %v497, 0.0
  %v551 = vmax.f32 %v500, 0.0
  %v552 = vmax.f32 %v505, 0.0
  %v553 = vmax.f32 %v508, 0.0
  %v554 = vmax.f32 %v513, 0.0
  %v555 = vmax.f32 %v516, 0.0
  %v556 = vmax.f32 %v521, 0.0
  %v557 = vmax.f32 %v524, 0.0
  %v558 = vmax.f32 %v529, 0.0
  %v559 = vmin.f32 %v534, 20.0
  %v560 = vmin.f32 %v535, 20.0
  %v561 = vmin.f32 %v536, 20.0
  %v562 = vmin.f32 %v537, 20.0
  %v563 = vmin.f32 %v538, 20.0
  %v564 = vmin.f32 %v539, 20.0
  %v565 = vmin.f32 %v540, 20.0
  %v566 = vmin.f32 %v541, 20.0
  %v567 = vmin.f32 %v542, 20.0
  %v568 = vmin.f32 %v543, 20.0
  %v569 = vmin.f32 %v544, 20.0
  %v570 = vmin.f32 %v545, 20.0
  %v571 = vmin.f32 %v546, 20.0
  %v572 = vmin.f32 %v547, 20.0
  %v573 = vmin.f32 %v548, 20.0
  %v574 = vmin.f32 %v549, 20.0
  %v575 = vmin.f32 %v550, 20.0
  %v576 = vmin.f32 %v551, 20.0
  %v577 = vmin.f32 %v552, 20.0
  %v578 = vmin.f32 %v553, 20.0
  %v579 = vmin.f32 %v554, 20.0
  %v580 = vmin.f32 %v555, 20.0
  %v581 = vmin.f32 %v556, 20.0
  %v582 = vmin.f32 %v557, 20.0
  %v583 = vmin.f32 %v558, 20.0
  %585 = vset.pattern.permute.xlu0 0
  %586 = vperm.xlu0 %585, %v101
  %v587 = vpop.permute.xlu0 %586
  %590 = vset.pattern.permute.xlu0 0
  %591 = vperm.xlu0 %590, %v102
  %v592 = vpop.permute.xlu0 %591
  %595 = vset.pattern.permute.xlu0 0
  %596 = vperm.xlu0 %595, %v103
  %v597 = vpop.permute.xlu0 %596
  %600 = vset.pattern.permute.xlu0 0
  %601 = vperm.xlu0 %600, %v104
  %v602 = vpop.permute.xlu0 %601
  %605 = vset.pattern.permute.xlu0 0
  %606 = vperm.xlu0 %605, %v105
  %v607 = vpop.permute.xlu0 %606
  %610 = vset.pattern.permute.xlu0 0
  %611 = vperm.xlu0 %610, %v106
  %v612 = vpop.permute.xlu0 %611
  %615 = vset.pattern.permute.xlu0 0
  %616 = vperm.xlu0 %615, %v107
  %v617 = vpop.permute.xlu0 %616
  %620 = vset.pattern.permute.xlu0 0
  %621 = vperm.xlu0 %620, %v108
  %v622 = vpop.permute.xlu0 %621
  %625 = vset.pattern.permute.xlu0 0
  %626 = vperm.xlu0 %625, %v109
  %v627 = vpop.permute.xlu0 %626
  %630 = vset.pattern.permute.xlu0 0
  %631 = vperm.xlu0 %630, %v110
  %v632 = vpop.permute.xlu0 %631
  %635 = vset.pattern.permute.xlu0 0
  %636 = vperm.xlu0 %635, %v111
  %v637 = vpop.permute.xlu0 %636
  %640 = vset.pattern.permute.xlu0 0
  %641 = vperm.xlu0 %640, %v112
  %v642 = vpop.permute.xlu0 %641
  %645 = vset.pattern.permute.xlu0 0
  %646 = vperm.xlu0 %645, %v113
  %v647 = vpop.permute.xlu0 %646
  %650 = vset.pattern.permute.xlu0 0
  %651 = vperm.xlu0 %650, %v114
  %v652 = vpop.permute.xlu0 %651
  %655 = vset.pattern.permute.xlu0 0
  %656 = vperm.xlu0 %655, %v115
  %v657 = vpop.permute.xlu0 %656
  %660 = vset.pattern.permute.xlu0 0
  %661 = vperm.xlu0 %660, %v116
  %v662 = vpop.permute.xlu0 %661
  %665 = vset.pattern.permute.xlu0 0
  %666 = vperm.xlu0 %665, %v117
  %v667 = vpop.permute.xlu0 %666
  %670 = vset.pattern.permute.xlu0 0
  %671 = vperm.xlu0 %670, %v118
  %v672 = vpop.permute.xlu0 %671
  %675 = vset.pattern.permute.xlu0 0
  %676 = vperm.xlu0 %675, %v119
  %v677 = vpop.permute.xlu0 %676
  %680 = vset.pattern.permute.xlu0 0
  %681 = vperm.xlu0 %680, %v120
  %v682 = vpop.permute.xlu0 %681
  %685 = vset.pattern.permute.xlu0 0
  %686 = vperm.xlu0 %685, %v121
  %v687 = vpop.permute.xlu0 %686
  %690 = vset.pattern.permute.xlu0 0
  %691 = vperm.xlu0 %690, %v122
  %v692 = vpop.permute.xlu0 %691
  %695 = vset.pattern.permute.xlu0 0
  %696 = vperm.xlu0 %695, %v123
  %v697 = vpop.permute.xlu0 %696
  %700 = vset.pattern.permute.xlu0 0
  %701 = vperm.xlu0 %700, %v124
  %v702 = vpop.permute.xlu0 %701
  %705 = vset.pattern.permute.xlu0 0
  %706 = vperm.xlu0 %705, %v125
  %v707 = vpop.permute.xlu0 %706
  %v709 = vmul.f32 %v350, %v587
  %v710 = vmul.f32 %v351, %v592
  %v711 = vmul.f32 %v352, %v597
  %v712 = vmul.f32 %v353, %v602
  %v713 = vmul.f32 %v354, %v607
  %v714 = vmul.f32 %v355, %v612
  %v715 = vmul.f32 %v356, %v617
  %v716 = vmul.f32 %v357, %v622
  %v717 = vmul.f32 %v358, %v627
  %v718 = vmul.f32 %v359, %v632
  %v719 = vmul.f32 %v360, %v637
  %v720 = vmul.f32 %v361, %v642
  %v721 = vmul.f32 %v362, %v647
  %v722 = vmul.f32 %v363, %v652
  %v723 = vmul.f32 %v364, %v657
  %v724 = vmul.f32 %v365, %v662
  %v725 = vmul.f32 %v366, %v667
  %v726 = vmul.f32 %v367, %v672
  %v727 = vmul.f32 %v368, %v677
  %v728 = vmul.f32 %v369, %v682
  %v729 = vmul.f32 %v370, %v687
  %v730 = vmul.f32 %v371, %v692
  %v731 = vmul.f32 %v372, %v697
  %v732 = vmul.f32 %v373, %v702
  %v733 = vmul.f32 %v374, %v707
  %v734 = vpack.c.bf16 %v710, %v709
  %v735 = vpack.c.bf16 %v712, %v711
  %v736 = vpack.c.bf16 %v714, %v713
  %v737 = vpack.c.bf16 %v716, %v715
  %v738 = vpack.c.bf16 %v718, %v717
  %v739 = vpack.c.bf16 %v720, %v719
  %v740 = vpack.c.bf16 %v722, %v721
  %v741 = vpack.c.bf16 %v724, %v723
  %v742 = vpack.c.bf16 %v726, %v725
  %v743 = vpack.c.bf16 %v728, %v727
  %v744 = vpack.c.bf16 %v730, %v729
  %v745 = vpack.c.bf16 %v732, %v731
  %v746 = vpack.c.bf16 %v733, %v733
  %vm747 = vcmask 1043456
  %v750 = vsel %vm747, %v746, 0
  %vm751 = vsmask.f32 7424
  %v752 = vshrl.u32 0, 16
  %v754 = vshll.u32 0, 16
  %v756 = vrot.slane %v754, 1
  %v757 = vor.u32 %v752, %v756
  %v759 = vshll.u32 %v734, 16
  %v761 = vrot.slane %v759, 1
  %v762 = vsel %vm751, %v757, %v761
  %v763 = vshrl.u32 %v734, 16
  %v765 = vor.u32 %v763, %v761
  %v767 = vshll.u32 %v735, 16
  %v769 = vrot.slane %v767, 1
  %v770 = vsel %vm751, %v765, %v769
  %v771 = vshrl.u32 %v735, 16
  %v773 = vor.u32 %v771, %v769
  %v775 = vshll.u32 %v736, 16
  %v777 = vrot.slane %v775, 1
  %v778 = vsel %vm751, %v773, %v777
  %v779 = vshrl.u32 %v736, 16
  %v781 = vor.u32 %v779, %v777
  %v783 = vshll.u32 %v737, 16
  %v785 = vrot.slane %v783, 1
  %v786 = vsel %vm751, %v781, %v785
  %v787 = vshrl.u32 %v737, 16
  %v789 = vor.u32 %v787, %v785
  %v791 = vshll.u32 %v738, 16
  %v793 = vrot.slane %v791, 1
  %v794 = vsel %vm751, %v789, %v793
  %v795 = vshrl.u32 %v738, 16
  %v797 = vor.u32 %v795, %v793
  %v799 = vshll.u32 %v739, 16
  %v801 = vrot.slane %v799, 1
  %v802 = vsel %vm751, %v797, %v801
  %v803 = vshrl.u32 %v739, 16
  %v805 = vor.u32 %v803, %v801
  %v807 = vshll.u32 %v740, 16
  %v809 = vrot.slane %v807, 1
  %v810 = vsel %vm751, %v805, %v809
  %v811 = vshrl.u32 %v740, 16
  %v813 = vor.u32 %v811, %v809
  %v815 = vshll.u32 %v741, 16
  %v817 = vrot.slane %v815, 1
  %v818 = vsel %vm751, %v813, %v817
  %v819 = vshrl.u32 %v741, 16
  %v821 = vor.u32 %v819, %v817
  %v823 = vshll.u32 %v742, 16
  %v825 = vrot.slane %v823, 1
  %v826 = vsel %vm751, %v821, %v825
  %v827 = vshrl.u32 %v742, 16
  %v829 = vor.u32 %v827, %v825
  %v831 = vshll.u32 %v743, 16
  %v833 = vrot.slane %v831, 1
  %v834 = vsel %vm751, %v829, %v833
  %v835 = vshrl.u32 %v743, 16
  %v837 = vor.u32 %v835, %v833
  %v839 = vshll.u32 %v744, 16
  %v841 = vrot.slane %v839, 1
  %v842 = vsel %vm751, %v837, %v841
  %v843 = vshrl.u32 %v744, 16
  %v845 = vor.u32 %v843, %v841
  %v847 = vshll.u32 %v745, 16
  %v849 = vrot.slane %v847, 1
  %v850 = vsel %vm751, %v845, %v849
  %v851 = vshrl.u32 %v745, 16
  %v853 = vor.u32 %v851, %v849
  %854 = vrot.lane.b32.xlu0 %v762, 16
  %v855 = vpop.permute.xlu0 %854
  %856 = vrot.lane.b32.xlu0 %v770, 16
  %v857 = vpop.permute.xlu0 %856
  %858 = vrot.lane.b32.xlu0 %v778, 16
  %v859 = vpop.permute.xlu0 %858
  %860 = vrot.lane.b32.xlu0 %v786, 16
  %v861 = vpop.permute.xlu0 %860
  %862 = vrot.lane.b32.xlu0 %v794, 16
  %v863 = vpop.permute.xlu0 %862
  %864 = vrot.lane.b32.xlu0 %v802, 16
  %v865 = vpop.permute.xlu0 %864
  %866 = vrot.lane.b32.xlu0 %v810, 16
  %v867 = vpop.permute.xlu0 %866
  %868 = vrot.lane.b32.xlu0 %v818, 16
  %v869 = vpop.permute.xlu0 %868
  %870 = vrot.lane.b32.xlu0 %v826, 16
  %v871 = vpop.permute.xlu0 %870
  %872 = vrot.lane.b32.xlu0 %v834, 16
  %v873 = vpop.permute.xlu0 %872
  %874 = vrot.lane.b32.xlu0 %v842, 16
  %v875 = vpop.permute.xlu0 %874
  %876 = vrot.lane.b32.xlu0 %v850, 16
  %v877 = vpop.permute.xlu0 %876
  %878 = vrot.lane.b32.xlu0 %v853, 16
  %v879 = vpop.permute.xlu0 %878
  %vm893 = vcmask 1046528
  %v894 = vrot.slane 0, 1
  %v895 = vrot.slane %v734, 1
  %v896 = vsel %vm893, %v894, %v895
  %v897 = vrot.slane %v735, 1
  %v898 = vsel %vm893, %v895, %v897
  %v899 = vrot.slane %v736, 1
  %v900 = vsel %vm893, %v897, %v899
  %v901 = vrot.slane %v737, 1
  %v902 = vsel %vm893, %v899, %v901
  %v903 = vrot.slane %v738, 1
  %v904 = vsel %vm893, %v901, %v903
  %v905 = vrot.slane %v739, 1
  %v906 = vsel %vm893, %v903, %v905
  %v907 = vrot.slane %v740, 1
  %v908 = vsel %vm893, %v905, %v907
  %v909 = vrot.slane %v741, 1
  %v910 = vsel %vm893, %v907, %v909
  %v911 = vrot.slane %v742, 1
  %v912 = vsel %vm893, %v909, %v911
  %v913 = vrot.slane %v743, 1
  %v914 = vsel %vm893, %v911, %v913
  %v915 = vrot.slane %v744, 1
  %v916 = vsel %vm893, %v913, %v915
  %v917 = vrot.slane %v745, 1
  %v918 = vsel %vm893, %v915, %v917
  %919 = vrot.lane.b32.xlu0 %v896, 32
  %v920 = vpop.permute.xlu0 %919
  %921 = vrot.lane.b32.xlu0 %v898, 32
  %v922 = vpop.permute.xlu0 %921
  %923 = vrot.lane.b32.xlu0 %v900, 32
  %v924 = vpop.permute.xlu0 %923
  %925 = vrot.lane.b32.xlu0 %v902, 32
  %v926 = vpop.permute.xlu0 %925
  %927 = vrot.lane.b32.xlu0 %v904, 32
  %v928 = vpop.permute.xlu0 %927
  %929 = vrot.lane.b32.xlu0 %v906, 32
  %v930 = vpop.permute.xlu0 %929
  %931 = vrot.lane.b32.xlu0 %v908, 32
  %v932 = vpop.permute.xlu0 %931
  %933 = vrot.lane.b32.xlu0 %v910, 32
  %v934 = vpop.permute.xlu0 %933
  %935 = vrot.lane.b32.xlu0 %v912, 32
  %v936 = vpop.permute.xlu0 %935
  %937 = vrot.lane.b32.xlu0 %v914, 32
  %v938 = vpop.permute.xlu0 %937
  %939 = vrot.lane.b32.xlu0 %v916, 32
  %v940 = vpop.permute.xlu0 %939
  %941 = vrot.lane.b32.xlu0 %v918, 32
  %v942 = vpop.permute.xlu0 %941
  %943 = vrot.lane.b32.xlu0 %v917, 32
  %v944 = vpop.permute.xlu0 %943
  %vm946 = vcmask 1042432
  %v947 = vrot.slane 0, 5
  %v948 = vrot.slane %v734, 5
  %v949 = vsel %vm946, %v947, %v948
  %v950 = vrot.slane %v735, 5
  %v951 = vsel %vm946, %v948, %v950
  %v952 = vrot.slane %v736, 5
  %v953 = vsel %vm946, %v950, %v952
  %v954 = vrot.slane %v737, 5
  %v955 = vsel %vm946, %v952, %v954
  %v956 = vrot.slane %v738, 5
  %v957 = vsel %vm946, %v954, %v956
  %v958 = vrot.slane %v739, 5
  %v959 = vsel %vm946, %v956, %v958
  %v960 = vrot.slane %v740, 5
  %v961 = vsel %vm946, %v958, %v960
  %v962 = vrot.slane %v741, 5
  %v963 = vsel %vm946, %v960, %v962
  %v964 = vrot.slane %v742, 5
  %v965 = vsel %vm946, %v962, %v964
  %v966 = vrot.slane %v743, 5
  %v967 = vsel %vm946, %v964, %v966
  %v968 = vrot.slane %v744, 5
  %v969 = vsel %vm946, %v966, %v968
  %v970 = vrot.slane %v745, 5
  %v971 = vsel %vm946, %v968, %v970
  %v972 = vrot.slane %v750, 5
  %v973 = vsel %vm946, %v970, %v972
  %974 = vrot.lane.b32.xlu0 %v949, 48
  %v975 = vpop.permute.xlu0 %974
  %976 = vrot.lane.b32.xlu0 %v951, 48
  %v977 = vpop.permute.xlu0 %976
  %978 = vrot.lane.b32.xlu0 %v953, 48
  %v979 = vpop.permute.xlu0 %978
  %980 = vrot.lane.b32.xlu0 %v955, 48
  %v981 = vpop.permute.xlu0 %980
  %982 = vrot.lane.b32.xlu0 %v957, 48
  %v983 = vpop.permute.xlu0 %982
  %984 = vrot.lane.b32.xlu0 %v959, 48
  %v985 = vpop.permute.xlu0 %984
  %986 = vrot.lane.b32.xlu0 %v961, 48
  %v987 = vpop.permute.xlu0 %986
  %988 = vrot.lane.b32.xlu0 %v963, 48
  %v989 = vpop.permute.xlu0 %988
  %990 = vrot.lane.b32.xlu0 %v965, 48
  %v991 = vpop.permute.xlu0 %990
  %992 = vrot.lane.b32.xlu0 %v967, 48
  %v993 = vpop.permute.xlu0 %992
  %994 = vrot.lane.b32.xlu0 %v969, 48
  %v995 = vpop.permute.xlu0 %994
  %996 = vrot.lane.b32.xlu0 %v971, 48
  %v997 = vpop.permute.xlu0 %996
  %998 = vrot.lane.b32.xlu0 %v973, 48
  %v999 = vpop.permute.xlu0 %998
  %vm1000 = vsmask.f32 2304
  %v1001 = vrot.slane %v763, 5
  %v1002 = vrot.slane %v759, 6
  %v1003 = vor.u32 %v1001, %v1002
  %v1004 = vrot.slane %v771, 5
  %v1005 = vrot.slane %v767, 6
  %v1006 = vor.u32 %v1004, %v1005
  %v1007 = vsel %vm1000, %v1003, %v1006
  %v1008 = vrot.slane %v779, 5
  %v1009 = vrot.slane %v775, 6
  %v1010 = vor.u32 %v1008, %v1009
  %v1011 = vsel %vm1000, %v1006, %v1010
  %v1012 = vrot.slane %v787, 5
  %v1013 = vrot.slane %v783, 6
  %v1014 = vor.u32 %v1012, %v1013
  %v1015 = vsel %vm1000, %v1010, %v1014
  %v1016 = vrot.slane %v795, 5
  %v1017 = vrot.slane %v791, 6
  %v1018 = vor.u32 %v1016, %v1017
  %v1019 = vsel %vm1000, %v1014, %v1018
  %v1020 = vrot.slane %v803, 5
  %v1021 = vrot.slane %v799, 6
  %v1022 = vor.u32 %v1020, %v1021
  %v1023 = vsel %vm1000, %v1018, %v1022
  %v1024 = vrot.slane %v811, 5
  %v1025 = vrot.slane %v807, 6
  %v1026 = vor.u32 %v1024, %v1025
  %v1027 = vsel %vm1000, %v1022, %v1026
  %v1028 = vrot.slane %v819, 5
  %v1029 = vrot.slane %v815, 6
  %v1030 = vor.u32 %v1028, %v1029
  %v1031 = vsel %vm1000, %v1026, %v1030
  %v1032 = vrot.slane %v827, 5
  %v1033 = vrot.slane %v823, 6
  %v1034 = vor.u32 %v1032, %v1033
  %v1035 = vsel %vm1000, %v1030, %v1034
  %v1036 = vrot.slane %v835, 5
  %v1037 = vrot.slane %v831, 6
  %v1038 = vor.u32 %v1036, %v1037
  %v1039 = vsel %vm1000, %v1034, %v1038
  %v1040 = vrot.slane %v843, 5
  %v1041 = vrot.slane %v839, 6
  %v1042 = vor.u32 %v1040, %v1041
  %v1043 = vsel %vm1000, %v1038, %v1042
  %v1044 = vrot.slane %v851, 5
  %v1045 = vrot.slane %v847, 6
  %v1046 = vor.u32 %v1044, %v1045
  %v1047 = vsel %vm1000, %v1042, %v1046
  %v1048 = vshrl.u32 %v750, 16
  %v1050 = vrot.slane %v1048, 5
  %v1051 = vshll.u32 %v750, 16
  %v1053 = vrot.slane %v1051, 6
  %v1054 = vor.u32 %v1050, %v1053
  %v1055 = vsel %vm1000, %v1046, %v1054
  %1056 = vrot.lane.b32.xlu0 %v1003, 64
  %v1057 = vpop.permute.xlu0 %1056
  %1058 = vrot.lane.b32.xlu0 %v1007, 64
  %v1059 = vpop.permute.xlu0 %1058
  %1060 = vrot.lane.b32.xlu0 %v1011, 64
  %v1061 = vpop.permute.xlu0 %1060
  %1062 = vrot.lane.b32.xlu0 %v1015, 64
  %v1063 = vpop.permute.xlu0 %1062
  %1064 = vrot.lane.b32.xlu0 %v1019, 64
  %v1065 = vpop.permute.xlu0 %1064
  %1066 = vrot.lane.b32.xlu0 %v1023, 64
  %v1067 = vpop.permute.xlu0 %1066
  %1068 = vrot.lane.b32.xlu0 %v1027, 64
  %v1069 = vpop.permute.xlu0 %1068
  %1070 = vrot.lane.b32.xlu0 %v1031, 64
  %v1071 = vpop.permute.xlu0 %1070
  %1072 = vrot.lane.b32.xlu0 %v1035, 64
  %v1073 = vpop.permute.xlu0 %1072
  %1074 = vrot.lane.b32.xlu0 %v1039, 64
  %v1075 = vpop.permute.xlu0 %1074
  %1076 = vrot.lane.b32.xlu0 %v1043, 64
  %v1077 = vpop.permute.xlu0 %1076
  %1078 = vrot.lane.b32.xlu0 %v1047, 64
  %v1079 = vpop.permute.xlu0 %1078
  %1080 = vrot.lane.b32.xlu0 %v1055, 64
  %v1081 = vpop.permute.xlu0 %1080
  %vm1082 = vcmask 1041408
  %v1083 = vrot.slane %v734, 6
  %v1084 = vrot.slane %v735, 6
  %v1085 = vsel %vm1082, %v1083, %v1084
  %v1086 = vrot.slane %v736, 6
  %v1087 = vsel %vm1082, %v1084, %v1086
  %v1088 = vrot.slane %v737, 6
  %v1089 = vsel %vm1082, %v1086, %v1088
  %v1090 = vrot.slane %v738, 6
  %v1091 = vsel %vm1082, %v1088, %v1090
  %v1092 = vrot.slane %v739, 6
  %v1093 = vsel %vm1082, %v1090, %v1092
  %v1094 = vrot.slane %v740, 6
  %v1095 = vsel %vm1082, %v1092, %v1094
  %v1096 = vrot.slane %v741, 6
  %v1097 = vsel %vm1082, %v1094, %v1096
  %v1098 = vrot.slane %v742, 6
  %v1099 = vsel %vm1082, %v1096, %v1098
  %v1100 = vrot.slane %v743, 6
  %v1101 = vsel %vm1082, %v1098, %v1100
  %v1102 = vrot.slane %v744, 6
  %v1103 = vsel %vm1082, %v1100, %v1102
  %v1104 = vrot.slane %v745, 6
  %v1105 = vsel %vm1082, %v1102, %v1104
  %v1106 = vrot.slane %v750, 6
  %v1107 = vsel %vm1082, %v1104, %v1106
  %1108 = vrot.lane.b32.xlu0 %v1083, 80
  %v1109 = vpop.permute.xlu0 %1108
  %1110 = vrot.lane.b32.xlu0 %v1085, 80
  %v1111 = vpop.permute.xlu0 %1110
  %1112 = vrot.lane.b32.xlu0 %v1087, 80
  %v1113 = vpop.permute.xlu0 %1112
  %1114 = vrot.lane.b32.xlu0 %v1089, 80
  %v1115 = vpop.permute.xlu0 %1114
  %1116 = vrot.lane.b32.xlu0 %v1091, 80
  %v1117 = vpop.permute.xlu0 %1116
  %1118 = vrot.lane.b32.xlu0 %v1093, 80
  %v1119 = vpop.permute.xlu0 %1118
  %1120 = vrot.lane.b32.xlu0 %v1095, 80
  %v1121 = vpop.permute.xlu0 %1120
  %1122 = vrot.lane.b32.xlu0 %v1097, 80
  %v1123 = vpop.permute.xlu0 %1122
  %1124 = vrot.lane.b32.xlu0 %v1099, 80
  %v1125 = vpop.permute.xlu0 %1124
  %1126 = vrot.lane.b32.xlu0 %v1101, 80
  %v1127 = vpop.permute.xlu0 %1126
  %1128 = vrot.lane.b32.xlu0 %v1103, 80
  %v1129 = vpop.permute.xlu0 %1128
  %1130 = vrot.lane.b32.xlu0 %v1105, 80
  %v1131 = vpop.permute.xlu0 %1130
  %1132 = vrot.lane.b32.xlu0 %v1107, 80
  %v1133 = vpop.permute.xlu0 %1132
  %vm1134 = vcmask 1045504
  %v1135 = vrot.slane %v734, 2
  %v1136 = vrot.slane %v735, 2
  %v1137 = vsel %vm1134, %v1135, %v1136
  %v1138 = vrot.slane %v736, 2
  %v1139 = vsel %vm1134, %v1136, %v1138
  %v1140 = vrot.slane %v737, 2
  %v1141 = vsel %vm1134, %v1138, %v1140
  %v1142 = vrot.slane %v738, 2
  %v1143 = vsel %vm1134, %v1140, %v1142
  %v1144 = vrot.slane %v739, 2
  %v1145 = vsel %vm1134, %v1142, %v1144
  %v1146 = vrot.slane %v740, 2
  %v1147 = vsel %vm1134, %v1144, %v1146
  %v1148 = vrot.slane %v741, 2
  %v1149 = vsel %vm1134, %v1146, %v1148
  %v1150 = vrot.slane %v742, 2
  %v1151 = vsel %vm1134, %v1148, %v1150
  %v1152 = vrot.slane %v743, 2
  %v1153 = vsel %vm1134, %v1150, %v1152
  %v1154 = vrot.slane %v744, 2
  %v1155 = vsel %vm1134, %v1152, %v1154
  %v1156 = vrot.slane %v745, 2
  %v1157 = vsel %vm1134, %v1154, %v1156
  %v1158 = vrot.slane %v750, 2
  %v1159 = vsel %vm1134, %v1156, %v1158
  %v1160 = vrot.slane 0, 2
  %v1161 = vsel %vm1134, %v1158, %v1160
  %1162 = vrot.lane.b32.xlu0 %v1137, 96
  %v1163 = vpop.permute.xlu0 %1162
  %1164 = vrot.lane.b32.xlu0 %v1139, 96
  %v1165 = vpop.permute.xlu0 %1164
  %1166 = vrot.lane.b32.xlu0 %v1141, 96
  %v1167 = vpop.permute.xlu0 %1166
  %1168 = vrot.lane.b32.xlu0 %v1143, 96
  %v1169 = vpop.permute.xlu0 %1168
  %1170 = vrot.lane.b32.xlu0 %v1145, 96
  %v1171 = vpop.permute.xlu0 %1170
  %1172 = vrot.lane.b32.xlu0 %v1147, 96
  %v1173 = vpop.permute.xlu0 %1172
  %1174 = vrot.lane.b32.xlu0 %v1149, 96
  %v1175 = vpop.permute.xlu0 %1174
  %1176 = vrot.lane.b32.xlu0 %v1151, 96
  %v1177 = vpop.permute.xlu0 %1176
  %1178 = vrot.lane.b32.xlu0 %v1153, 96
  %v1179 = vpop.permute.xlu0 %1178
  %1180 = vrot.lane.b32.xlu0 %v1155, 96
  %v1181 = vpop.permute.xlu0 %1180
  %1182 = vrot.lane.b32.xlu0 %v1157, 96
  %v1183 = vpop.permute.xlu0 %1182
  %1184 = vrot.lane.b32.xlu0 %v1159, 96
  %v1185 = vpop.permute.xlu0 %1184
  %1186 = vrot.lane.b32.xlu0 %v1161, 96
  %v1187 = vpop.permute.xlu0 %1186
  %vm1188 = vsmask.f32 5376
  %v1189 = vrot.slane %v763, 2
  %v1190 = vrot.slane %v759, 3
  %v1191 = vor.u32 %v1189, %v1190
  %v1192 = vrot.slane %v771, 2
  %v1193 = vrot.slane %v767, 3
  %v1194 = vor.u32 %v1192, %v1193
  %v1195 = vsel %vm1188, %v1191, %v1194
  %v1196 = vrot.slane %v779, 2
  %v1197 = vrot.slane %v775, 3
  %v1198 = vor.u32 %v1196, %v1197
  %v1199 = vsel %vm1188, %v1194, %v1198
  %v1200 = vrot.slane %v787, 2
  %v1201 = vrot.slane %v783, 3
  %v1202 = vor.u32 %v1200, %v1201
  %v1203 = vsel %vm1188, %v1198, %v1202
  %v1204 = vrot.slane %v795, 2
  %v1205 = vrot.slane %v791, 3
  %v1206 = vor.u32 %v1204, %v1205
  %v1207 = vsel %vm1188, %v1202, %v1206
  %v1208 = vrot.slane %v803, 2
  %v1209 = vrot.slane %v799, 3
  %v1210 = vor.u32 %v1208, %v1209
  %v1211 = vsel %vm1188, %v1206, %v1210
  %v1212 = vrot.slane %v811, 2
  %v1213 = vrot.slane %v807, 3
  %v1214 = vor.u32 %v1212, %v1213
  %v1215 = vsel %vm1188, %v1210, %v1214
  %v1216 = vrot.slane %v819, 2
  %v1217 = vrot.slane %v815, 3
  %v1218 = vor.u32 %v1216, %v1217
  %v1219 = vsel %vm1188, %v1214, %v1218
  %v1220 = vrot.slane %v827, 2
  %v1221 = vrot.slane %v823, 3
  %v1222 = vor.u32 %v1220, %v1221
  %v1223 = vsel %vm1188, %v1218, %v1222
  %v1224 = vrot.slane %v835, 2
  %v1225 = vrot.slane %v831, 3
  %v1226 = vor.u32 %v1224, %v1225
  %v1227 = vsel %vm1188, %v1222, %v1226
  %v1228 = vrot.slane %v843, 2
  %v1229 = vrot.slane %v839, 3
  %v1230 = vor.u32 %v1228, %v1229
  %v1231 = vsel %vm1188, %v1226, %v1230
  %v1232 = vrot.slane %v851, 2
  %v1233 = vrot.slane %v847, 3
  %v1234 = vor.u32 %v1232, %v1233
  %v1235 = vsel %vm1188, %v1230, %v1234
  %v1236 = vrot.slane %v1048, 2
  %v1237 = vrot.slane %v1051, 3
  %v1238 = vor.u32 %v1236, %v1237
  %v1239 = vsel %vm1188, %v1234, %v1238
  %v1240 = vrot.slane %v752, 2
  %v1241 = vrot.slane %v754, 3
  %v1242 = vor.u32 %v1240, %v1241
  %v1243 = vsel %vm1188, %v1238, %v1242
  %1244 = vrot.lane.b32.xlu0 %v1195, 112
  %v1245 = vpop.permute.xlu0 %1244
  %1246 = vrot.lane.b32.xlu0 %v1199, 112
  %v1247 = vpop.permute.xlu0 %1246
  %1248 = vrot.lane.b32.xlu0 %v1203, 112
  %v1249 = vpop.permute.xlu0 %1248
  %1250 = vrot.lane.b32.xlu0 %v1207, 112
  %v1251 = vpop.permute.xlu0 %1250
  %1252 = vrot.lane.b32.xlu0 %v1211, 112
  %v1253 = vpop.permute.xlu0 %1252
  %1254 = vrot.lane.b32.xlu0 %v1215, 112
  %v1255 = vpop.permute.xlu0 %1254
  %1256 = vrot.lane.b32.xlu0 %v1219, 112
  %v1257 = vpop.permute.xlu0 %1256
  %1258 = vrot.lane.b32.xlu0 %v1223, 112
  %v1259 = vpop.permute.xlu0 %1258
  %1260 = vrot.lane.b32.xlu0 %v1227, 112
  %v1261 = vpop.permute.xlu0 %1260
  %1262 = vrot.lane.b32.xlu0 %v1231, 112
  %v1263 = vpop.permute.xlu0 %1262
  %1264 = vrot.lane.b32.xlu0 %v1235, 112
  %v1265 = vpop.permute.xlu0 %1264
  %1266 = vrot.lane.b32.xlu0 %v1239, 112
  %v1267 = vpop.permute.xlu0 %1266
  %1268 = vrot.lane.b32.xlu0 %v1243, 112
  %v1269 = vpop.permute.xlu0 %1268
  %vm1270 = vcmask 1044480
  %v1271 = vrot.slane %v734, 3
  %v1272 = vrot.slane %v735, 3
  %v1273 = vsel %vm1270, %v1271, %v1272
  %v1274 = vrot.slane %v736, 3
  %v1275 = vsel %vm1270, %v1272, %v1274
  %v1276 = vrot.slane %v737, 3
  %v1277 = vsel %vm1270, %v1274, %v1276
  %v1278 = vrot.slane %v738, 3
  %v1279 = vsel %vm1270, %v1276, %v1278
  %v1280 = vrot.slane %v739, 3
  %v1281 = vsel %vm1270, %v1278, %v1280
  %v1282 = vrot.slane %v740, 3
  %v1283 = vsel %vm1270, %v1280, %v1282
  %v1284 = vrot.slane %v741, 3
  %v1285 = vsel %vm1270, %v1282, %v1284
  %v1286 = vrot.slane %v742, 3
  %v1287 = vsel %vm1270, %v1284, %v1286
  %v1288 = vrot.slane %v743, 3
  %v1289 = vsel %vm1270, %v1286, %v1288
  %v1290 = vrot.slane %v744, 3
  %v1291 = vsel %vm1270, %v1288, %v1290
  %v1292 = vrot.slane %v745, 3
  %v1293 = vsel %vm1270, %v1290, %v1292
  %v1294 = vrot.slane %v750, 3
  %v1295 = vsel %vm1270, %v1292, %v1294
  %v1296 = vrot.slane 0, 3
  %v1297 = vsel %vm1270, %v1294, %v1296
  %vm1298 = vcmask 130048
  %v1300 = vsel %vm1298, 0, %v855
  %v1302 = vsel %vm1298, %v734, %v857
  %v1304 = vsel %vm1298, %v735, %v859
  %v1306 = vsel %vm1298, %v736, %v861
  %v1308 = vsel %vm1298, %v737, %v863
  %v1310 = vsel %vm1298, %v738, %v865
  %v1312 = vsel %vm1298, %v739, %v867
  %v1314 = vsel %vm1298, %v740, %v869
  %v1316 = vsel %vm1298, %v741, %v871
  %v1318 = vsel %vm1298, %v742, %v873
  %v1320 = vsel %vm1298, %v743, %v875
  %v1322 = vsel %vm1298, %v744, %v877
  %v1324 = vsel %vm1298, %v745, %v879
  %v1326 = vsel %vm149, %v1300, %v920
  %v1328 = vsel %vm149, %v1302, %v922
  %v1330 = vsel %vm149, %v1304, %v924
  %v1332 = vsel %vm149, %v1306, %v926
  %v1334 = vsel %vm149, %v1308, %v928
  %v1336 = vsel %vm149, %v1310, %v930
  %v1338 = vsel %vm149, %v1312, %v932
  %v1340 = vsel %vm149, %v1314, %v934
  %v1342 = vsel %vm149, %v1316, %v936
  %v1344 = vsel %vm149, %v1318, %v938
  %v1346 = vsel %vm149, %v1320, %v940
  %v1348 = vsel %vm149, %v1322, %v942
  %v1350 = vsel %vm149, %v1324, %v944
  %vm1351 = vcmask 392192
  %v1353 = vsel %vm1351, %v1326, %v975
  %v1355 = vsel %vm1351, %v1328, %v977
  %v1357 = vsel %vm1351, %v1330, %v979
  %v1359 = vsel %vm1351, %v1332, %v981
  %v1361 = vsel %vm1351, %v1334, %v983
  %v1363 = vsel %vm1351, %v1336, %v985
  %v1365 = vsel %vm1351, %v1338, %v987
  %v1367 = vsel %vm1351, %v1340, %v989
  %v1369 = vsel %vm1351, %v1342, %v991
  %v1371 = vsel %vm1351, %v1344, %v993
  %v1373 = vsel %vm1351, %v1346, %v995
  %v1375 = vsel %vm1351, %v1348, %v997
  %v1377 = vsel %vm1351, %v1350, %v999
  %vm1378 = vcmask 523264
  %v1380 = vsel %vm1378, %v1353, %v1057
  %v1382 = vsel %vm1378, %v1355, %v1059
  %v1384 = vsel %vm1378, %v1357, %v1061
  %v1386 = vsel %vm1378, %v1359, %v1063
  %v1388 = vsel %vm1378, %v1361, %v1065
  %v1390 = vsel %vm1378, %v1363, %v1067
  %v1392 = vsel %vm1378, %v1365, %v1069
  %v1394 = vsel %vm1378, %v1367, %v1071
  %v1396 = vsel %vm1378, %v1369, %v1073
  %v1398 = vsel %vm1378, %v1371, %v1075
  %v1400 = vsel %vm1378, %v1373, %v1077
  %v1402 = vsel %vm1378, %v1375, %v1079
  %v1404 = vsel %vm1378, %v1377, %v1081
  %vm1405 = vcmask 654336
  %v1407 = vsel %vm1405, %v1380, %v1109
  %v1409 = vsel %vm1405, %v1382, %v1111
  %v1411 = vsel %vm1405, %v1384, %v1113
  %v1413 = vsel %vm1405, %v1386, %v1115
  %v1415 = vsel %vm1405, %v1388, %v1117
  %v1417 = vsel %vm1405, %v1390, %v1119
  %v1419 = vsel %vm1405, %v1392, %v1121
  %v1421 = vsel %vm1405, %v1394, %v1123
  %v1423 = vsel %vm1405, %v1396, %v1125
  %v1425 = vsel %vm1405, %v1398, %v1127
  %v1427 = vsel %vm1405, %v1400, %v1129
  %v1429 = vsel %vm1405, %v1402, %v1131
  %v1431 = vsel %vm1405, %v1404, %v1133
  %vm1432 = vcmask 785408
  %v1434 = vsel %vm1432, %v1407, %v1163
  %v1436 = vsel %vm1432, %v1409, %v1165
  %v1438 = vsel %vm1432, %v1411, %v1167
  %v1440 = vsel %vm1432, %v1413, %v1169
  %v1442 = vsel %vm1432, %v1415, %v1171
  %v1444 = vsel %vm1432, %v1417, %v1173
  %v1446 = vsel %vm1432, %v1419, %v1175
  %v1448 = vsel %vm1432, %v1421, %v1177
  %v1450 = vsel %vm1432, %v1423, %v1179
  %v1452 = vsel %vm1432, %v1425, %v1181
  %v1454 = vsel %vm1432, %v1427, %v1183
  %v1456 = vsel %vm1432, %v1429, %v1185
  %v1458 = vsel %vm1432, %v1431, %v1187
  %vm1459 = vcmask 916480
  %v1461 = vsel %vm1459, %v1434, %v1245
  %v1463 = vsel %vm1459, %v1436, %v1247
  %v1465 = vsel %vm1459, %v1438, %v1249
  %v1467 = vsel %vm1459, %v1440, %v1251
  %v1469 = vsel %vm1459, %v1442, %v1253
  %v1471 = vsel %vm1459, %v1444, %v1255
  %v1473 = vsel %vm1459, %v1446, %v1257
  %v1475 = vsel %vm1459, %v1448, %v1259
  %v1477 = vsel %vm1459, %v1450, %v1261
  %v1479 = vsel %vm1459, %v1452, %v1263
  %v1481 = vsel %vm1459, %v1454, %v1265
  %v1483 = vsel %vm1459, %v1456, %v1267
  %v1485 = vsel %vm1459, %v1458, %v1269
  %v1486 = vld [vmem:[%s6] sm:$0xf]
  %v1487 = vld [vmem:[%s6 + $0x4] sm:$0xf]
  %v1488 = vld [vmem:[%s6 + $0x8] sm:$0xf]
  %v1489 = vld [vmem:[%s6 + $0xc] sm:$0xf]
  %v1490 = vld [vmem:[%s6 + $0x10] sm:$0xf]
  %v1491 = vld [vmem:[%s6 + $0x14] sm:$0xf]
  %v1492 = vld [vmem:[%s6 + $0x18] sm:$0xf]
  %v1493 = vld [vmem:[%s6 + $0x1c] sm:$0xf]
  %v1494 = vld [vmem:[%s6 + $0x20] sm:$0xf]
  %v1495 = vld [vmem:[%s6 + $0x24] sm:$0xf]
  %v1496 = vld [vmem:[%s6 + $0x28] sm:$0xf]
  %v1497 = vld [vmem:[%s6 + $0x2c] sm:$0xf]
  %v1498 = vld [vmem:[%s6 + $0x30] sm:$0xf]
  %v1499 = vld [vmem:[%s6 + $0x34] sm:$0xf]
  %v1500 = vld [vmem:[%s6 + $0x38] sm:$0xf]
  %v1501 = vld [vmem:[%s6 + $0x3c] sm:$0xf]
  %v1502 = vld [vmem:[%s6 + $0x40] sm:$0xf]
  %v1503 = vld [vmem:[%s6 + $0x44] sm:$0xf]
  %v1504 = vld [vmem:[%s7] sm:$0x1]
  %v1506 = vlaneseq
  %v1507 = vshrl.u32 %v1506, 7
  %v1508 = vsub.s32 0, %v1507
  %v1509 = vrot.slane %v1504, %v1508
  %v1511 = vshrl.u32 %v1461, 16
  %v1513 = vrot.slane %v1511, 2
  %v1514 = vshll.u32 %v1461, 16
  %v1516 = vrot.slane %v1514, 3
  %v1517 = vor.u32 %v1513, %v1516
  %v1518 = vshrl.u32 %v1463, 16
  %v1520 = vrot.slane %v1518, 2
  %v1521 = vshll.u32 %v1463, 16
  %v1523 = vrot.slane %v1521, 3
  %v1524 = vor.u32 %v1520, %v1523
  %v1525 = vsel %vm1188, %v1517, %v1524
  %v1527 = vshrl.u32 %v1273, 16
  %v1529 = vrot.slane %v1527, 2
  %v1530 = vshll.u32 %v1273, 16
  %v1532 = vrot.slane %v1530, 3
  %v1533 = vor.u32 %v1529, %v1532
  %v1535 = vshrl.u32 %v1275, 16
  %v1537 = vrot.slane %v1535, 2
  %v1538 = vshll.u32 %v1275, 16
  %v1540 = vrot.slane %v1538, 3
  %v1541 = vor.u32 %v1537, %v1540
  %v1542 = vsel %vm1188, %v1533, %v1541
  %v1543 = vshrl.u32 %v1465, 16
  %v1545 = vrot.slane %v1543, 2
  %v1546 = vshll.u32 %v1465, 16
  %v1548 = vrot.slane %v1546, 3
  %v1549 = vor.u32 %v1545, %v1548
  %v1550 = vsel %vm1188, %v1524, %v1549
  %v1552 = vshrl.u32 %v1277, 16
  %v1554 = vrot.slane %v1552, 2
  %v1555 = vshll.u32 %v1277, 16
  %v1557 = vrot.slane %v1555, 3
  %v1558 = vor.u32 %v1554, %v1557
  %v1559 = vsel %vm1188, %v1541, %v1558
  %v1560 = vshrl.u32 %v1467, 16
  %v1562 = vrot.slane %v1560, 2
  %v1563 = vshll.u32 %v1467, 16
  %v1565 = vrot.slane %v1563, 3
  %v1566 = vor.u32 %v1562, %v1565
  %v1567 = vsel %vm1188, %v1549, %v1566
  %v1569 = vshrl.u32 %v1279, 16
  %v1571 = vrot.slane %v1569, 2
  %v1572 = vshll.u32 %v1279, 16
  %v1574 = vrot.slane %v1572, 3
  %v1575 = vor.u32 %v1571, %v1574
  %v1576 = vsel %vm1188, %v1558, %v1575
  %v1577 = vshrl.u32 %v1469, 16
  %v1579 = vrot.slane %v1577, 2
  %v1580 = vshll.u32 %v1469, 16
  %v1582 = vrot.slane %v1580, 3
  %v1583 = vor.u32 %v1579, %v1582
  %v1584 = vsel %vm1188, %v1566, %v1583
  %v1586 = vshrl.u32 %v1281, 16
  %v1588 = vrot.slane %v1586, 2
  %v1589 = vshll.u32 %v1281, 16
  %v1591 = vrot.slane %v1589, 3
  %v1592 = vor.u32 %v1588, %v1591
  %v1593 = vsel %vm1188, %v1575, %v1592
  %v1594 = vshrl.u32 %v1471, 16
  %v1596 = vrot.slane %v1594, 2
  %v1597 = vshll.u32 %v1471, 16
  %v1599 = vrot.slane %v1597, 3
  %v1600 = vor.u32 %v1596, %v1599
  %v1601 = vsel %vm1188, %v1583, %v1600
  %v1603 = vshrl.u32 %v1283, 16
  %v1605 = vrot.slane %v1603, 2
  %v1606 = vshll.u32 %v1283, 16
  %v1608 = vrot.slane %v1606, 3
  %v1609 = vor.u32 %v1605, %v1608
  %v1610 = vsel %vm1188, %v1592, %v1609
  %v1611 = vshrl.u32 %v1473, 16
  %v1613 = vrot.slane %v1611, 2
  %v1614 = vshll.u32 %v1473, 16
  %v1616 = vrot.slane %v1614, 3
  %v1617 = vor.u32 %v1613, %v1616
  %v1618 = vsel %vm1188, %v1600, %v1617
  %v1620 = vshrl.u32 %v1285, 16
  %v1622 = vrot.slane %v1620, 2
  %v1623 = vshll.u32 %v1285, 16
  %v1625 = vrot.slane %v1623, 3
  %v1626 = vor.u32 %v1622, %v1625
  %v1627 = vsel %vm1188, %v1609, %v1626
  %v1628 = vshrl.u32 %v1475, 16
  %v1630 = vrot.slane %v1628, 2
  %v1631 = vshll.u32 %v1475, 16
  %v1633 = vrot.slane %v1631, 3
  %v1634 = vor.u32 %v1630, %v1633
  %v1635 = vsel %vm1188, %v1617, %v1634
  %v1637 = vshrl.u32 %v1287, 16
  %v1639 = vrot.slane %v1637, 2
  %v1640 = vshll.u32 %v1287, 16
  %v1642 = vrot.slane %v1640, 3
  %v1643 = vor.u32 %v1639, %v1642
  %v1644 = vsel %vm1188, %v1626, %v1643
  %v1645 = vshrl.u32 %v1477, 16
  %v1647 = vrot.slane %v1645, 2
  %v1648 = vshll.u32 %v1477, 16
  %v1650 = vrot.slane %v1648, 3
  %v1651 = vor.u32 %v1647, %v1650
  %v1652 = vsel %vm1188, %v1634, %v1651
  %v1654 = vshrl.u32 %v1289, 16
  %v1656 = vrot.slane %v1654, 2
  %v1657 = vshll.u32 %v1289, 16
  %v1659 = vrot.slane %v1657, 3
  %v1660 = vor.u32 %v1656, %v1659
  %v1661 = vsel %vm1188, %v1643, %v1660
  %v1662 = vshrl.u32 %v1479, 16
  %v1664 = vrot.slane %v1662, 2
  %v1665 = vshll.u32 %v1479, 16
  %v1667 = vrot.slane %v1665, 3
  %v1668 = vor.u32 %v1664, %v1667
  %v1669 = vsel %vm1188, %v1651, %v1668
  %v1671 = vshrl.u32 %v1291, 16
  %v1673 = vrot.slane %v1671, 2
  %v1674 = vshll.u32 %v1291, 16
  %v1676 = vrot.slane %v1674, 3
  %v1677 = vor.u32 %v1673, %v1676
  %v1678 = vsel %vm1188, %v1660, %v1677
  %v1679 = vshrl.u32 %v1481, 16
  %v1681 = vrot.slane %v1679, 2
  %v1682 = vshll.u32 %v1481, 16
  %v1684 = vrot.slane %v1682, 3
  %v1685 = vor.u32 %v1681, %v1684
  %v1686 = vsel %vm1188, %v1668, %v1685
  %v1688 = vshrl.u32 %v1293, 16
  %v1690 = vrot.slane %v1688, 2
  %v1691 = vshll.u32 %v1293, 16
  %v1693 = vrot.slane %v1691, 3
  %v1694 = vor.u32 %v1690, %v1693
  %v1695 = vsel %vm1188, %v1677, %v1694
  %v1696 = vshrl.u32 %v1483, 16
  %v1698 = vrot.slane %v1696, 2
  %v1699 = vshll.u32 %v1483, 16
  %v1701 = vrot.slane %v1699, 3
  %v1702 = vor.u32 %v1698, %v1701
  %v1703 = vsel %vm1188, %v1685, %v1702
  %v1705 = vshrl.u32 %v1295, 16
  %v1707 = vrot.slane %v1705, 2
  %v1708 = vshll.u32 %v1295, 16
  %v1710 = vrot.slane %v1708, 3
  %v1711 = vor.u32 %v1707, %v1710
  %v1712 = vsel %vm1188, %v1694, %v1711
  %v1713 = vshrl.u32 %v1485, 16
  %v1715 = vrot.slane %v1713, 2
  %v1716 = vshll.u32 %v1485, 16
  %v1718 = vrot.slane %v1716, 3
  %v1719 = vor.u32 %v1715, %v1718
  %v1720 = vsel %vm1188, %v1702, %v1719
  %v1722 = vshrl.u32 %v1297, 16
  %v1724 = vrot.slane %v1722, 2
  %v1725 = vshll.u32 %v1297, 16
  %v1727 = vrot.slane %v1725, 3
  %v1728 = vor.u32 %v1724, %v1727
  %v1729 = vsel %vm1188, %v1711, %v1728
  %v1761 = vunpack.c.l.b16 %v1486
  %v1762 = vunpack.c.l.b16 %v1487
  %v1763 = vunpack.c.l.b16 %v1488
  %v1764 = vunpack.c.l.b16 %v1489
  %v1765 = vunpack.c.l.b16 %v1490
  %v1766 = vunpack.c.l.b16 %v1491
  %v1767 = vunpack.c.l.b16 %v1492
  %v1768 = vunpack.c.l.b16 %v1493
  %v1769 = vunpack.c.l.b16 %v1494
  %v1770 = vunpack.c.l.b16 %v1495
  %v1771 = vunpack.c.l.b16 %v1496
  %v1772 = vunpack.c.l.b16 %v1497
  %v1773 = vunpack.c.l.b16 %v1498
  %v1774 = vunpack.c.l.b16 %v1499
  %v1775 = vunpack.c.l.b16 %v1500
  %v1776 = vunpack.c.l.b16 %v1501
  %v1777 = vunpack.c.l.b16 %v1502
  %v1778 = vunpack.c.l.b16 %v1503
  %v1779 = vpack.c.b16 %v1762, %v1761
  %v1780 = vpack.c.b16 %v1764, %v1763
  %v1781 = vpack.c.b16 %v1766, %v1765
  %v1782 = vpack.c.b16 %v1768, %v1767
  %v1783 = vpack.c.b16 %v1770, %v1769
  %v1784 = vpack.c.b16 %v1772, %v1771
  %v1785 = vpack.c.b16 %v1774, %v1773
  %v1786 = vpack.c.b16 %v1776, %v1775
  %v1787 = vpack.c.b16 %v1778, %v1777
  %v1798 = vsel %vm1298, %v1542, 0
  %v1801 = vsel %vm1298, %v1559, 0
  %v1804 = vsel %vm1298, %v1576, 0
  %v1807 = vsel %vm1298, %v1593, 0
  %v1810 = vsel %vm1298, %v1610, 0
  %v1813 = vsel %vm1298, %v1627, 0
  %v1816 = vsel %vm1298, %v1644, 0
  %v1819 = vsel %vm1298, %v1661, 0
  %v1822 = vsel %vm1298, %v1678, 0
  %v1825 = vsel %vm1298, %v1695, 0
  %v1828 = vsel %vm1298, %v1712, 0
  %v1831 = vsel %vm1298, %v1729, 0
  %v1834 = vsel %vm1298, %v1728, 0
  %1836 = vmatprep.subr.bf16.mxu0 0
  %1837 = vmatpush1.bf16.msra.mxu0 %v1779
  %1838 = vmatprep.subr.bf16.mxu0 0
  %1839 = vmatpush1.bf16.msra.mxu0 %v1780
  %1840 = vmatprep.subr.bf16.mxu0 0
  %1841 = vmatpush1.bf16.msra.mxu0 %v1781
  %1842 = vmatprep.subr.bf16.mxu0 0
  %1843 = vmatpush1.bf16.msra.mxu0 %v1782
  %1844 = vmatprep.subr.bf16.mxu0 0
  %1845 = vmatpush1.bf16.msra.mxu0 %v1783
  %1846 = vmatprep.subr.bf16.mxu0 0
  %1847 = vmatpush1.bf16.msra.mxu0 %v1784
  %1848 = vmatprep.subr.bf16.mxu0 0
  %1849 = vmatpush1.bf16.msra.mxu0 %v1785
  %1850 = vmatprep.subr.bf16.mxu0 0
  %1851 = vmatpush1.bf16.msra.mxu0 %v1786
  %1852 = vmatprep.subr.bf16.mxu0 0
  %1853 = vmatpush1.bf16.msra.mxu0 %v1787
  %1854 = vmatprep.subr.bf16.mxu0 0
  %1855 = vmatpush1.bf16.msra.mxu0 0
  %1856 = vmatprep.subr.bf16.mxu0 0
  %1857 = vmatpush1.bf16.msra.mxu0 0
  %1858 = vmatprep.subr.bf16.mxu0 0
  %1859 = vmatpush1.bf16.msra.mxu0 0
  %1860 = vmatprep.subr.bf16.mxu0 0
  %1861 = vmatpush1.bf16.msra.mxu0 0
  %1862 = vmatprep.subr.bf16.mxu0 0
  %1863 = vmatpush1.bf16.msra.mxu0 0
  %1864 = vmatprep.subr.bf16.mxu0 0
  %1865 = vmatpush1.bf16.msra.mxu0 0
  %1866 = vmatprep.subr.bf16.mxu0 0
  %1867 = vmatpush1.bf16.msra.mxu0 0
  %1868 = vmatprep.mubr.bf16.mxu0 %v1798
  %1869 = vmatmul.mubr.bf16.gmra.mrb[0].mxu0 %v1525
  %v1870 = vpop.f32.mrb[0].mxu0
  %v1871 = vadd.f32 %v1509, %v1870
  %v1872 = vpop.f32.mrb[0].mxu0
  %v1873 = vpop.f32.mrb[0].mxu0
  %v1874 = vadd.f32 %v1509, %v1873
  %v1875 = vpop.f32.mrb[0].mxu0
  %1876 = vmatprep.mubr.bf16.mxu0 %v1801
  %1877 = vmatmul.mubr.bf16.gmra.mrb[0].mxu0 %v1550
  %v1878 = vpop.f32.mrb[0].mxu0
  %v1879 = vadd.f32 %v1509, %v1878
  %v1880 = vpop.f32.mrb[0].mxu0
  %v1881 = vpop.f32.mrb[0].mxu0
  %v1882 = vadd.f32 %v1509, %v1881
  %v1883 = vpop.f32.mrb[0].mxu0
  %1884 = vmatprep.mubr.bf16.mxu0 %v1804
  %1885 = vmatmul.mubr.bf16.gmra.mrb[0].mxu0 %v1567
  %v1886 = vpop.f32.mrb[0].mxu0
  %v1887 = vadd.f32 %v1509, %v1886
  %v1888 = vpop.f32.mrb[0].mxu0
  %v1889 = vpop.f32.mrb[0].mxu0
  %v1890 = vadd.f32 %v1509, %v1889
  %v1891 = vpop.f32.mrb[0].mxu0
  %1892 = vmatprep.mubr.bf16.mxu0 %v1807
  %1893 = vmatmul.mubr.bf16.gmra.mrb[0].mxu0 %v1584
  %v1894 = vpop.f32.mrb[0].mxu0
  %v1895 = vadd.f32 %v1509, %v1894
  %v1896 = vpop.f32.mrb[0].mxu0
  %v1897 = vpop.f32.mrb[0].mxu0
  %v1898 = vadd.f32 %v1509, %v1897
  %v1899 = vpop.f32.mrb[0].mxu0
  %1900 = vmatprep.mubr.bf16.mxu0 %v1810
  %1901 = vmatmul.mubr.bf16.gmra.mrb[0].mxu0 %v1601
  %v1902 = vpop.f32.mrb[0].mxu0
  %v1903 = vadd.f32 %v1509, %v1902
  %v1904 = vpop.f32.mrb[0].mxu0
  %v1905 = vpop.f32.mrb[0].mxu0
  %v1906 = vadd.f32 %v1509, %v1905
  %v1907 = vpop.f32.mrb[0].mxu0
  %1908 = vmatprep.mubr.bf16.mxu0 %v1813
  %1909 = vmatmul.mubr.bf16.gmra.mrb[0].mxu0 %v1618
  %v1910 = vpop.f32.mrb[0].mxu0
  %v1911 = vadd.f32 %v1509, %v1910
  %v1912 = vpop.f32.mrb[0].mxu0
  %v1913 = vpop.f32.mrb[0].mxu0
  %v1914 = vadd.f32 %v1509, %v1913
  %v1915 = vpop.f32.mrb[0].mxu0
  %1916 = vmatprep.mubr.bf16.mxu0 %v1816
  %1917 = vmatmul.mubr.bf16.gmra.mrb[0].mxu0 %v1635
  %v1918 = vpop.f32.mrb[0].mxu0
  %v1919 = vadd.f32 %v1509, %v1918
  %v1920 = vpop.f32.mrb[0].mxu0
  %v1921 = vpop.f32.mrb[0].mxu0
  %v1922 = vadd.f32 %v1509, %v1921
  %v1923 = vpop.f32.mrb[0].mxu0
  %1924 = vmatprep.mubr.bf16.mxu0 %v1819
  %1925 = vmatmul.mubr.bf16.gmra.mrb[0].mxu0 %v1652
  %v1926 = vpop.f32.mrb[0].mxu0
  %v1927 = vadd.f32 %v1509, %v1926
  %v1928 = vpop.f32.mrb[0].mxu0
  %v1929 = vpop.f32.mrb[0].mxu0
  %v1930 = vadd.f32 %v1509, %v1929
  %v1931 = vpop.f32.mrb[0].mxu0
  %1932 = vmatprep.mubr.bf16.mxu0 %v1822
  %1933 = vmatmul.mubr.bf16.gmra.mrb[0].mxu0 %v1669
  %v1934 = vpop.f32.mrb[0].mxu0
  %v1935 = vadd.f32 %v1509, %v1934
  %v1936 = vpop.f32.mrb[0].mxu0
  %v1937 = vpop.f32.mrb[0].mxu0
  %v1938 = vadd.f32 %v1509, %v1937
  %v1939 = vpop.f32.mrb[0].mxu0
  %1940 = vmatprep.mubr.bf16.mxu0 %v1825
  %1941 = vmatmul.mubr.bf16.gmra.mrb[0].mxu0 %v1686
  %v1942 = vpop.f32.mrb[0].mxu0
  %v1943 = vadd.f32 %v1509, %v1942
  %v1944 = vpop.f32.mrb[0].mxu0
  %v1945 = vpop.f32.mrb[0].mxu0
  %v1946 = vadd.f32 %v1509, %v1945
  %v1947 = vpop.f32.mrb[0].mxu0
  %1948 = vmatprep.mubr.bf16.mxu0 %v1828
  %1949 = vmatmul.mubr.bf16.gmra.mrb[0].mxu0 %v1703
  %v1950 = vpop.f32.mrb[0].mxu0
  %v1951 = vadd.f32 %v1509, %v1950
  %v1952 = vpop.f32.mrb[0].mxu0
  %v1953 = vpop.f32.mrb[0].mxu0
  %v1954 = vadd.f32 %v1509, %v1953
  %v1955 = vpop.f32.mrb[0].mxu0
  %1956 = vmatprep.mubr.bf16.mxu0 %v1831
  %1957 = vmatmul.mubr.bf16.gmra.mrb[0].mxu0 %v1720
  %v1958 = vpop.f32.mrb[0].mxu0
  %v1959 = vadd.f32 %v1509, %v1958
  %v1960 = vpop.f32.mrb[0].mxu0
  %v1961 = vpop.f32.mrb[0].mxu0
  %v1962 = vadd.f32 %v1509, %v1961
  %v1963 = vpop.f32.mrb[0].mxu0
  %1964 = vmatprep.mubr.bf16.mxu0 %v1834
  %1965 = vmatmul.mubr.bf16.gmra.mrb[0].mxu0 %v1719
  %v1966 = vpop.f32.mrb[0].mxu0
  %v1967 = vadd.f32 %v1509, %v1966
  %v1968 = vpop.f32.mrb[0].mxu0
  %v1969 = vpop.f32.mrb[0].mxu0
  %v1970 = vpop.f32.mrb[0].mxu0
  %1971 = vdwg.mxu0
  %v1972 = vmax.f32 %v1871, 0.0
  %v1973 = vmax.f32 %v1874, 0.0
  %v1974 = vmax.f32 %v1879, 0.0
  %v1975 = vmax.f32 %v1882, 0.0
  %v1976 = vmax.f32 %v1887, 0.0
  %v1977 = vmax.f32 %v1890, 0.0
  %v1978 = vmax.f32 %v1895, 0.0
  %v1979 = vmax.f32 %v1898, 0.0
  %v1980 = vmax.f32 %v1903, 0.0
  %v1981 = vmax.f32 %v1906, 0.0
  %v1982 = vmax.f32 %v1911, 0.0
  %v1983 = vmax.f32 %v1914, 0.0
  %v1984 = vmax.f32 %v1919, 0.0
  %v1985 = vmax.f32 %v1922, 0.0
  %v1986 = vmax.f32 %v1927, 0.0
  %v1987 = vmax.f32 %v1930, 0.0
  %v1988 = vmax.f32 %v1935, 0.0
  %v1989 = vmax.f32 %v1938, 0.0
  %v1990 = vmax.f32 %v1943, 0.0
  %v1991 = vmax.f32 %v1946, 0.0
  %v1992 = vmax.f32 %v1951, 0.0
  %v1993 = vmax.f32 %v1954, 0.0
  %v1994 = vmax.f32 %v1959, 0.0
  %v1995 = vmax.f32 %v1962, 0.0
  %v1996 = vmax.f32 %v1967, 0.0
  %v1997 = vmin.f32 %v1972, 20.0
  %v1998 = vmin.f32 %v1973, 20.0
  %v1999 = vmin.f32 %v1974, 20.0
  %v2000 = vmin.f32 %v1975, 20.0
  %v2001 = vmin.f32 %v1976, 20.0
  %v2002 = vmin.f32 %v1977, 20.0
  %v2003 = vmin.f32 %v1978, 20.0
  %v2004 = vmin.f32 %v1979, 20.0
  %v2005 = vmin.f32 %v1980, 20.0
  %v2006 = vmin.f32 %v1981, 20.0
  %v2007 = vmin.f32 %v1982, 20.0
  %v2008 = vmin.f32 %v1983, 20.0
  %v2009 = vmin.f32 %v1984, 20.0
  %v2010 = vmin.f32 %v1985, 20.0
  %v2011 = vmin.f32 %v1986, 20.0
  %v2012 = vmin.f32 %v1987, 20.0
  %v2013 = vmin.f32 %v1988, 20.0
  %v2014 = vmin.f32 %v1989, 20.0
  %v2015 = vmin.f32 %v1990, 20.0
  %v2016 = vmin.f32 %v1991, 20.0
  %v2017 = vmin.f32 %v1992, 20.0
  %v2018 = vmin.f32 %v1993, 20.0
  %v2019 = vmin.f32 %v1994, 20.0
  %v2020 = vmin.f32 %v1995, 20.0
  %v2021 = vmin.f32 %v1996, 20.0
  %v2022 = vpack.c.bf16 %v1998, %v1997
  %v2023 = vpack.c.bf16 %v2000, %v1999
  %v2024 = vpack.c.bf16 %v2002, %v2001
  %v2025 = vpack.c.bf16 %v2004, %v2003
  %v2026 = vpack.c.bf16 %v2006, %v2005
  %v2027 = vpack.c.bf16 %v2008, %v2007
  %v2028 = vpack.c.bf16 %v2010, %v2009
  %v2029 = vpack.c.bf16 %v2012, %v2011
  %v2030 = vpack.c.bf16 %v2014, %v2013
  %v2031 = vpack.c.bf16 %v2016, %v2015
  %v2032 = vpack.c.bf16 %v2018, %v2017
  %v2033 = vpack.c.bf16 %v2020, %v2019
  %v2034 = vpack.c.bf16 %v2021, %v2021
  %v2035 = vld [vmem:[%s14] sm:$0xf]
  %v2036 = vld [vmem:[%s14 + $0x4] sm:$0xf]
  %2062 = vrot.lane.b32.xlu0 %v559, 16
  %v2063 = vpop.permute.xlu0 %2062
  %2064 = vrot.lane.b32.xlu0 %v560, 16
  %v2065 = vpop.permute.xlu0 %2064
  %2066 = vrot.lane.b32.xlu0 %v561, 16
  %v2067 = vpop.permute.xlu0 %2066
  %2068 = vrot.lane.b32.xlu0 %v562, 16
  %v2069 = vpop.permute.xlu0 %2068
  %2070 = vrot.lane.b32.xlu0 %v563, 16
  %v2071 = vpop.permute.xlu0 %2070
  %2072 = vrot.lane.b32.xlu0 %v564, 16
  %v2073 = vpop.permute.xlu0 %2072
  %2074 = vrot.lane.b32.xlu0 %v565, 16
  %v2075 = vpop.permute.xlu0 %2074
  %2076 = vrot.lane.b32.xlu0 %v566, 16
  %v2077 = vpop.permute.xlu0 %2076
  %2078 = vrot.lane.b32.xlu0 %v567, 16
  %v2079 = vpop.permute.xlu0 %2078
  %2080 = vrot.lane.b32.xlu0 %v568, 16
  %v2081 = vpop.permute.xlu0 %2080
  %2082 = vrot.lane.b32.xlu0 %v569, 16
  %v2083 = vpop.permute.xlu0 %2082
  %2084 = vrot.lane.b32.xlu0 %v570, 16
  %v2085 = vpop.permute.xlu0 %2084
  %2086 = vrot.lane.b32.xlu0 %v571, 16
  %v2087 = vpop.permute.xlu0 %2086
  %2088 = vrot.lane.b32.xlu0 %v572, 16
  %v2089 = vpop.permute.xlu0 %2088
  %2090 = vrot.lane.b32.xlu0 %v573, 16
  %v2091 = vpop.permute.xlu0 %2090
  %2092 = vrot.lane.b32.xlu0 %v574, 16
  %v2093 = vpop.permute.xlu0 %2092
  %2094 = vrot.lane.b32.xlu0 %v575, 16
  %v2095 = vpop.permute.xlu0 %2094
  %2096 = vrot.lane.b32.xlu0 %v576, 16
  %v2097 = vpop.permute.xlu0 %2096
  %2098 = vrot.lane.b32.xlu0 %v577, 16
  %v2099 = vpop.permute.xlu0 %2098
  %2100 = vrot.lane.b32.xlu0 %v578, 16
  %v2101 = vpop.permute.xlu0 %2100
  %2102 = vrot.lane.b32.xlu0 %v579, 16
  %v2103 = vpop.permute.xlu0 %2102
  %2104 = vrot.lane.b32.xlu0 %v580, 16
  %v2105 = vpop.permute.xlu0 %2104
  %2106 = vrot.lane.b32.xlu0 %v581, 16
  %v2107 = vpop.permute.xlu0 %2106
  %2108 = vrot.lane.b32.xlu0 %v582, 16
  %v2109 = vpop.permute.xlu0 %2108
  %2110 = vrot.lane.b32.xlu0 %v583, 16
  %v2111 = vpop.permute.xlu0 %2110
  %v2137 = vsel %vm1298, %v1997, %v2063
  %v2138 = vsel %vm1298, %v1998, %v2065
  %v2139 = vsel %vm1298, %v1999, %v2067
  %v2140 = vsel %vm1298, %v2000, %v2069
  %v2141 = vsel %vm1298, %v2001, %v2071
  %v2142 = vsel %vm1298, %v2002, %v2073
  %v2143 = vsel %vm1298, %v2003, %v2075
  %v2144 = vsel %vm1298, %v2004, %v2077
  %v2145 = vsel %vm1298, %v2005, %v2079
  %v2146 = vsel %vm1298, %v2006, %v2081
  %v2147 = vsel %vm1298, %v2007, %v2083
  %v2148 = vsel %vm1298, %v2008, %v2085
  %v2149 = vsel %vm1298, %v2009, %v2087
  %v2150 = vsel %vm1298, %v2010, %v2089
  %v2151 = vsel %vm1298, %v2011, %v2091
  %v2152 = vsel %vm1298, %v2012, %v2093
  %v2153 = vsel %vm1298, %v2013, %v2095
  %v2154 = vsel %vm1298, %v2014, %v2097
  %v2155 = vsel %vm1298, %v2015, %v2099
  %v2156 = vsel %vm1298, %v2016, %v2101
  %v2157 = vsel %vm1298, %v2017, %v2103
  %v2158 = vsel %vm1298, %v2018, %v2105
  %v2159 = vsel %vm1298, %v2019, %v2107
  %v2160 = vsel %vm1298, %v2020, %v2109
  %v2161 = vsel %vm1298, %v2021, %v2111
  %v2162 = vpack.c.bf16 %v2138, %v2137
  %v2163 = vpack.c.bf16 %v2140, %v2139
  %v2164 = vpack.c.bf16 %v2142, %v2141
  %v2165 = vpack.c.bf16 %v2144, %v2143
  %v2166 = vpack.c.bf16 %v2146, %v2145
  %v2167 = vpack.c.bf16 %v2148, %v2147
  %v2168 = vpack.c.bf16 %v2150, %v2149
  %v2169 = vpack.c.bf16 %v2152, %v2151
  %v2170 = vpack.c.bf16 %v2154, %v2153
  %v2171 = vpack.c.bf16 %v2156, %v2155
  %v2172 = vpack.c.bf16 %v2158, %v2157
  %v2173 = vpack.c.bf16 %v2160, %v2159
  %v2174 = vpack.c.bf16 %v2161, %v2161
  %v2175 = vld [vmem:[%s8] sm:$0xf]
  %v2176 = vld [vmem:[%s8 + $0x4] sm:$0xf]
  %v2177 = vld [vmem:[%s8 + $0x8] sm:$0xf]
  %v2178 = vld [vmem:[%s8 + $0xc] sm:$0xf]
  %v2179 = vld [vmem:[%s9] sm:$0x1]
  %v2181 = vlaneseq
  %v2182 = vshrl.u32 %v2181, 7
  %v2183 = vsub.s32 0, %v2182
  %v2184 = vrot.slane %v2179, %v2183
  %v2190 = vunpack.c.l.b16 %v2175
  %v2191 = vunpack.c.l.b16 %v2176
  %v2192 = vunpack.c.l.b16 %v2177
  %v2193 = vunpack.c.l.b16 %v2178
  %v2194 = vpack.c.b16 %v2191, %v2190
  %v2195 = vpack.c.b16 %v2193, %v2192
  %v2199 = vsel %vm149, %v2162, 0
  %v2202 = vsel %vm149, %v2163, 0
  %v2205 = vsel %vm149, %v2164, 0
  %v2208 = vsel %vm149, %v2165, 0
  %v2211 = vsel %vm149, %v2166, 0
  %v2214 = vsel %vm149, %v2167, 0
  %v2217 = vsel %vm149, %v2168, 0
  %v2220 = vsel %vm149, %v2169, 0
  %v2223 = vsel %vm149, %v2170, 0
  %v2226 = vsel %vm149, %v2171, 0
  %v2229 = vsel %vm149, %v2172, 0
  %v2232 = vsel %vm149, %v2173, 0
  %v2235 = vsel %vm149, %v2174, 0
  %2237 = vmatprep.subr.bf16.mxu0 0
  %2238 = vmatpush1.bf16.msra.mxu0 %v2194
  %2239 = vmatprep.subr.bf16.mxu0 0
  %2240 = vmatpush1.bf16.msra.mxu0 %v2195
  %2241 = vmatprep.subr.bf16.mxu0 0
  %2242 = vmatpush1.bf16.msra.mxu0 0
  %2243 = vmatprep.subr.bf16.mxu0 0
  %2244 = vmatpush1.bf16.msra.mxu0 0
  %2245 = vmatprep.subr.bf16.mxu0 0
  %2246 = vmatpush1.bf16.msra.mxu0 0
  %2247 = vmatprep.subr.bf16.mxu0 0
  %2248 = vmatpush1.bf16.msra.mxu0 0
  %2249 = vmatprep.subr.bf16.mxu0 0
  %2250 = vmatpush1.bf16.msra.mxu0 0
  %2251 = vmatprep.subr.bf16.mxu0 0
  %2252 = vmatpush1.bf16.msra.mxu0 0
  %2253 = vmatprep.subr.bf16.mxu0 0
  %2254 = vmatpush1.bf16.msra.mxu0 0
  %2255 = vmatprep.subr.bf16.mxu0 0
  %2256 = vmatpush1.bf16.msra.mxu0 0
  %2257 = vmatprep.subr.bf16.mxu0 0
  %2258 = vmatpush1.bf16.msra.mxu0 0
  %2259 = vmatprep.subr.bf16.mxu0 0
  %2260 = vmatpush1.bf16.msra.mxu0 0
  %2261 = vmatprep.subr.bf16.mxu0 0
  %2262 = vmatpush1.bf16.msra.mxu0 0
  %2263 = vmatprep.subr.bf16.mxu0 0
  %2264 = vmatpush1.bf16.msra.mxu0 0
  %2265 = vmatprep.subr.bf16.mxu0 0
  %2266 = vmatpush1.bf16.msra.mxu0 0
  %2267 = vmatprep.subr.bf16.mxu0 0
  %2268 = vmatpush1.bf16.msra.mxu0 0
  %2269 = vmatprep.mubr.bf16.mxu0 0
  %2270 = vmatmul.mubr.bf16.gmra.mrb[0].mxu0 %v2199
  %v2271 = vpop.f32.mrb[0].mxu0
  %v2272 = vadd.f32 %v2184, %v2271
  %v2273 = vpop.f32.mrb[0].mxu0
  %v2274 = vpop.f32.mrb[0].mxu0
  %v2275 = vadd.f32 %v2184, %v2274
  %v2276 = vpop.f32.mrb[0].mxu0
  %2277 = vmatprep.mubr.bf16.mxu0 0
  %2278 = vmatmul.mubr.bf16.gmra.mrb[0].mxu0 %v2202
  %v2279 = vpop.f32.mrb[0].mxu0
  %v2280 = vadd.f32 %v2184, %v2279
  %v2281 = vpop.f32.mrb[0].mxu0
  %v2282 = vpop.f32.mrb[0].mxu0
  %v2283 = vadd.f32 %v2184, %v2282
  %v2284 = vpop.f32.mrb[0].mxu0
  %2285 = vmatprep.mubr.bf16.mxu0 0
  %2286 = vmatmul.mubr.bf16.gmra.mrb[0].mxu0 %v2205
  %v2287 = vpop.f32.mrb[0].mxu0
  %v2288 = vadd.f32 %v2184, %v2287
  %v2289 = vpop.f32.mrb[0].mxu0
  %v2290 = vpop.f32.mrb[0].mxu0
  %v2291 = vadd.f32 %v2184, %v2290
  %v2292 = vpop.f32.mrb[0].mxu0
  %2293 = vmatprep.mubr.bf16.mxu0 0
  %2294 = vmatmul.mubr.bf16.gmra.mrb[0].mxu0 %v2208
  %v2295 = vpop.f32.mrb[0].mxu0
  %v2296 = vadd.f32 %v2184, %v2295
  %v2297 = vpop.f32.mrb[0].mxu0
  %v2298 = vpop.f32.mrb[0].mxu0
  %v2299 = vadd.f32 %v2184, %v2298
  %v2300 = vpop.f32.mrb[0].mxu0
  %2301 = vmatprep.mubr.bf16.mxu0 0
  %2302 = vmatmul.mubr.bf16.gmra.mrb[0].mxu0 %v2211
  %v2303 = vpop.f32.mrb[0].mxu0
  %v2304 = vadd.f32 %v2184, %v2303
  %v2305 = vpop.f32.mrb[0].mxu0
  %v2306 = vpop.f32.mrb[0].mxu0
  %v2307 = vadd.f32 %v2184, %v2306
  %v2308 = vpop.f32.mrb[0].mxu0
  %2309 = vmatprep.mubr.bf16.mxu0 0
  %2310 = vmatmul.mubr.bf16.gmra.mrb[0].mxu0 %v2214
  %v2311 = vpop.f32.mrb[0].mxu0
  %v2312 = vadd.f32 %v2184, %v2311
  %v2313 = vpop.f32.mrb[0].mxu0
  %v2314 = vpop.f32.mrb[0].mxu0
  %v2315 = vadd.f32 %v2184, %v2314
  %v2316 = vpop.f32.mrb[0].mxu0
  %2317 = vmatprep.mubr.bf16.mxu0 0
  %2318 = vmatmul.mubr.bf16.gmra.mrb[0].mxu0 %v2217
  %v2319 = vpop.f32.mrb[0].mxu0
  %v2320 = vadd.f32 %v2184, %v2319
  %v2321 = vpop.f32.mrb[0].mxu0
  %v2322 = vpop.f32.mrb[0].mxu0
  %v2323 = vadd.f32 %v2184, %v2322
  %v2324 = vpop.f32.mrb[0].mxu0
  %2325 = vmatprep.mubr.bf16.mxu0 0
  %2326 = vmatmul.mubr.bf16.gmra.mrb[0].mxu0 %v2220
  %v2327 = vpop.f32.mrb[0].mxu0
  %v2328 = vadd.f32 %v2184, %v2327
  %v2329 = vpop.f32.mrb[0].mxu0
  %v2330 = vpop.f32.mrb[0].mxu0
  %v2331 = vadd.f32 %v2184, %v2330
  %v2332 = vpop.f32.mrb[0].mxu0
  %2333 = vmatprep.mubr.bf16.mxu0 0
  %2334 = vmatmul.mubr.bf16.gmra.mrb[0].mxu0 %v2223
  %v2335 = vpop.f32.mrb[0].mxu0
  %v2336 = vadd.f32 %v2184, %v2335
  %v2337 = vpop.f32.mrb[0].mxu0
  %v2338 = vpop.f32.mrb[0].mxu0
  %v2339 = vadd.f32 %v2184, %v2338
  %v2340 = vpop.f32.mrb[0].mxu0
  %2341 = vmatprep.mubr.bf16.mxu0 0
  %2342 = vmatmul.mubr.bf16.gmra.mrb[0].mxu0 %v2226
  %v2343 = vpop.f32.mrb[0].mxu0
  %v2344 = vadd.f32 %v2184, %v2343
  %v2345 = vpop.f32.mrb[0].mxu0
  %v2346 = vpop.f32.mrb[0].mxu0
  %v2347 = vadd.f32 %v2184, %v2346
  %v2348 = vpop.f32.mrb[0].mxu0
  %2349 = vmatprep.mubr.bf16.mxu0 0
  %2350 = vmatmul.mubr.bf16.gmra.mrb[0].mxu0 %v2229
  %v2351 = vpop.f32.mrb[0].mxu0
  %v2352 = vadd.f32 %v2184, %v2351
  %v2353 = vpop.f32.mrb[0].mxu0
  %v2354 = vpop.f32.mrb[0].mxu0
  %v2355 = vadd.f32 %v2184, %v2354
  %v2356 = vpop.f32.mrb[0].mxu0
  %2357 = vmatprep.mubr.bf16.mxu0 0
  %2358 = vmatmul.mubr.bf16.gmra.mrb[0].mxu0 %v2232
  %v2359 = vpop.f32.mrb[0].mxu0
  %v2360 = vadd.f32 %v2184, %v2359
  %v2361 = vpop.f32.mrb[0].mxu0
  %v2362 = vpop.f32.mrb[0].mxu0
  %v2363 = vadd.f32 %v2184, %v2362
  %v2364 = vpop.f32.mrb[0].mxu0
  %2365 = vmatprep.mubr.bf16.mxu0 0
  %2366 = vmatmul.mubr.bf16.gmra.mrb[0].mxu0 %v2235
  %v2367 = vpop.f32.mrb[0].mxu0
  %v2368 = vadd.f32 %v2184, %v2367
  %v2369 = vpop.f32.mrb[0].mxu0
  %v2370 = vpop.f32.mrb[0].mxu0
  %v2371 = vpop.f32.mrb[0].mxu0
  %2372 = vdwg.mxu0
  %v2373 = vxor.u32 %v2272, 2147483648
  %v2374 = vxor.u32 %v2275, 2147483648
  %v2375 = vxor.u32 %v2280, 2147483648
  %v2376 = vxor.u32 %v2283, 2147483648
  %v2377 = vxor.u32 %v2288, 2147483648
  %v2378 = vxor.u32 %v2291, 2147483648
  %v2379 = vxor.u32 %v2296, 2147483648
  %v2380 = vxor.u32 %v2299, 2147483648
  %v2381 = vxor.u32 %v2304, 2147483648
  %v2382 = vxor.u32 %v2307, 2147483648
  %v2383 = vxor.u32 %v2312, 2147483648
  %v2384 = vxor.u32 %v2315, 2147483648
  %v2385 = vxor.u32 %v2320, 2147483648
  %v2386 = vxor.u32 %v2323, 2147483648
  %v2387 = vxor.u32 %v2328, 2147483648
  %v2388 = vxor.u32 %v2331, 2147483648
  %v2389 = vxor.u32 %v2336, 2147483648
  %v2390 = vxor.u32 %v2339, 2147483648
  %v2391 = vxor.u32 %v2344, 2147483648
  %v2392 = vxor.u32 %v2347, 2147483648
  %v2393 = vxor.u32 %v2352, 2147483648
  %v2394 = vxor.u32 %v2355, 2147483648
  %v2395 = vxor.u32 %v2360, 2147483648
  %v2396 = vxor.u32 %v2363, 2147483648
  %v2397 = vxor.u32 %v2368, 2147483648
  %v2398 = vmul.f32 %v2373, 1.442695
  %v2399 = vpow.pop %v2398
  %v2400 = vmul.f32 %v2374, 1.442695
  %v2401 = vpow.pop %v2400
  %v2402 = vmul.f32 %v2375, 1.442695
  %v2403 = vpow.pop %v2402
  %v2404 = vmul.f32 %v2376, 1.442695
  %v2405 = vpow.pop %v2404
  %v2406 = vmul.f32 %v2377, 1.442695
  %v2407 = vpow.pop %v2406
  %v2408 = vmul.f32 %v2378, 1.442695
  %v2409 = vpow.pop %v2408
  %v2410 = vmul.f32 %v2379, 1.442695
  %v2411 = vpow.pop %v2410
  %v2412 = vmul.f32 %v2380, 1.442695
  %v2413 = vpow.pop %v2412
  %v2414 = vmul.f32 %v2381, 1.442695
  %v2415 = vpow.pop %v2414
  %v2416 = vmul.f32 %v2382, 1.442695
  %v2417 = vpow.pop %v2416
  %v2418 = vmul.f32 %v2383, 1.442695
  %v2419 = vpow.pop %v2418
  %v2420 = vmul.f32 %v2384, 1.442695
  %v2421 = vpow.pop %v2420
  %v2422 = vmul.f32 %v2385, 1.442695
  %v2423 = vpow.pop %v2422
  %v2424 = vmul.f32 %v2386, 1.442695
  %v2425 = vpow.pop %v2424
  %v2426 = vmul.f32 %v2387, 1.442695
  %v2427 = vpow.pop %v2426
  %v2428 = vmul.f32 %v2388, 1.442695
  %v2429 = vpow.pop %v2428
  %v2430 = vmul.f32 %v2389, 1.442695
  %v2431 = vpow.pop %v2430
  %v2432 = vmul.f32 %v2390, 1.442695
  %v2433 = vpow.pop %v2432
  %v2434 = vmul.f32 %v2391, 1.442695
  %v2435 = vpow.pop %v2434
  %v2436 = vmul.f32 %v2392, 1.442695
  %v2437 = vpow.pop %v2436
  %v2438 = vmul.f32 %v2393, 1.442695
  %v2439 = vpow.pop %v2438
  %v2440 = vmul.f32 %v2394, 1.442695
  %v2441 = vpow.pop %v2440
  %v2442 = vmul.f32 %v2395, 1.442695
  %v2443 = vpow.pop %v2442
  %v2444 = vmul.f32 %v2396, 1.442695
  %v2445 = vpow.pop %v2444
  %v2446 = vmul.f32 %v2397, 1.442695
  %v2447 = vpow.pop %v2446
  %v2448 = vadd.f32 %v2399, 1.0
  %v2449 = vadd.f32 %v2401, 1.0
  %v2450 = vadd.f32 %v2403, 1.0
  %v2451 = vadd.f32 %v2405, 1.0
  %v2452 = vadd.f32 %v2407, 1.0
  %v2453 = vadd.f32 %v2409, 1.0
  %v2454 = vadd.f32 %v2411, 1.0
  %v2455 = vadd.f32 %v2413, 1.0
  %v2456 = vadd.f32 %v2415, 1.0
  %v2457 = vadd.f32 %v2417, 1.0
  %v2458 = vadd.f32 %v2419, 1.0
  %v2459 = vadd.f32 %v2421, 1.0
  %v2460 = vadd.f32 %v2423, 1.0
  %v2461 = vadd.f32 %v2425, 1.0
  %v2462 = vadd.f32 %v2427, 1.0
  %v2463 = vadd.f32 %v2429, 1.0
  %v2464 = vadd.f32 %v2431, 1.0
  %v2465 = vadd.f32 %v2433, 1.0
  %v2466 = vadd.f32 %v2435, 1.0
  %v2467 = vadd.f32 %v2437, 1.0
  %v2468 = vadd.f32 %v2439, 1.0
  %v2469 = vadd.f32 %v2441, 1.0
  %v2470 = vadd.f32 %v2443, 1.0
  %v2471 = vadd.f32 %v2445, 1.0
  %v2472 = vadd.f32 %v2447, 1.0
  %v2473 = vrcp.pop %v2448
  %v2474 = vmul.f32 1.0, %v2473
  %v2475 = vrcp.pop %v2449
  %v2476 = vmul.f32 1.0, %v2475
  %v2477 = vrcp.pop %v2450
  %v2478 = vmul.f32 1.0, %v2477
  %v2479 = vrcp.pop %v2451
  %v2480 = vmul.f32 1.0, %v2479
  %v2481 = vrcp.pop %v2452
  %v2482 = vmul.f32 1.0, %v2481
  %v2483 = vrcp.pop %v2453
  %v2484 = vmul.f32 1.0, %v2483
  %v2485 = vrcp.pop %v2454
  %v2486 = vmul.f32 1.0, %v2485
  %v2487 = vrcp.pop %v2455
  %v2488 = vmul.f32 1.0, %v2487
  %v2489 = vrcp.pop %v2456
  %v2490 = vmul.f32 1.0, %v2489
  %v2491 = vrcp.pop %v2457
  %v2492 = vmul.f32 1.0, %v2491
  %v2493 = vrcp.pop %v2458
  %v2494 = vmul.f32 1.0, %v2493
  %v2495 = vrcp.pop %v2459
  %v2496 = vmul.f32 1.0, %v2495
  %v2497 = vrcp.pop %v2460
  %v2498 = vmul.f32 1.0, %v2497
  %v2499 = vrcp.pop %v2461
  %v2500 = vmul.f32 1.0, %v2499
  %v2501 = vrcp.pop %v2462
  %v2502 = vmul.f32 1.0, %v2501
  %v2503 = vrcp.pop %v2463
  %v2504 = vmul.f32 1.0, %v2503
  %v2505 = vrcp.pop %v2464
  %v2506 = vmul.f32 1.0, %v2505
  %v2507 = vrcp.pop %v2465
  %v2508 = vmul.f32 1.0, %v2507
  %v2509 = vrcp.pop %v2466
  %v2510 = vmul.f32 1.0, %v2509
  %v2511 = vrcp.pop %v2467
  %v2512 = vmul.f32 1.0, %v2511
  %v2513 = vrcp.pop %v2468
  %v2514 = vmul.f32 1.0, %v2513
  %v2515 = vrcp.pop %v2469
  %v2516 = vmul.f32 1.0, %v2515
  %v2517 = vrcp.pop %v2470
  %v2518 = vmul.f32 1.0, %v2517
  %v2519 = vrcp.pop %v2471
  %v2520 = vmul.f32 1.0, %v2519
  %v2521 = vrcp.pop %v2472
  %v2522 = vmul.f32 1.0, %v2521
  %v2523 = vmul.f32 %v2272, %v2474
  %v2524 = vmul.f32 %v2275, %v2476
  %v2525 = vmul.f32 %v2280, %v2478
  %v2526 = vmul.f32 %v2283, %v2480
  %v2527 = vmul.f32 %v2288, %v2482
  %v2528 = vmul.f32 %v2291, %v2484
  %v2529 = vmul.f32 %v2296, %v2486
  %v2530 = vmul.f32 %v2299, %v2488
  %v2531 = vmul.f32 %v2304, %v2490
  %v2532 = vmul.f32 %v2307, %v2492
  %v2533 = vmul.f32 %v2312, %v2494
  %v2534 = vmul.f32 %v2315, %v2496
  %v2535 = vmul.f32 %v2320, %v2498
  %v2536 = vmul.f32 %v2323, %v2500
  %v2537 = vmul.f32 %v2328, %v2502
  %v2538 = vmul.f32 %v2331, %v2504
  %v2539 = vmul.f32 %v2336, %v2506
  %v2540 = vmul.f32 %v2339, %v2508
  %v2541 = vmul.f32 %v2344, %v2510
  %v2542 = vmul.f32 %v2347, %v2512
  %v2543 = vmul.f32 %v2352, %v2514
  %v2544 = vmul.f32 %v2355, %v2516
  %v2545 = vmul.f32 %v2360, %v2518
  %v2546 = vmul.f32 %v2363, %v2520
  %v2547 = vmul.f32 %v2368, %v2522
  %v2548 = vpack.c.bf16 %v2524, %v2523
  %v2549 = vpack.c.bf16 %v2526, %v2525
  %v2550 = vpack.c.bf16 %v2528, %v2527
  %v2551 = vpack.c.bf16 %v2530, %v2529
  %v2552 = vpack.c.bf16 %v2532, %v2531
  %v2553 = vpack.c.bf16 %v2534, %v2533
  %v2554 = vpack.c.bf16 %v2536, %v2535
  %v2555 = vpack.c.bf16 %v2538, %v2537
  %v2556 = vpack.c.bf16 %v2540, %v2539
  %v2557 = vpack.c.bf16 %v2542, %v2541
  %v2558 = vpack.c.bf16 %v2544, %v2543
  %v2559 = vpack.c.bf16 %v2546, %v2545
  %v2560 = vpack.c.bf16 %v2547, %v2547
  %v2561 = vld [vmem:[%s10] sm:$0x3]
  %v2562 = vld [vmem:[%s11] sm:$0x1]
  %v2564 = vlaneseq
  %v2565 = vshrl.u32 %v2564, 7
  %v2566 = vsub.s32 0, %v2565
  %v2567 = vrot.slane %v2562, %v2566
  %vm2569 = vcmask 31744
  %v2571 = vsel %vm2569, %v2548, 0
  %v2574 = vsel %vm2569, %v2549, 0
  %v2577 = vsel %vm2569, %v2550, 0
  %v2580 = vsel %vm2569, %v2551, 0
  %v2583 = vsel %vm2569, %v2552, 0
  %v2586 = vsel %vm2569, %v2553, 0
  %v2589 = vsel %vm2569, %v2554, 0
  %v2592 = vsel %vm2569, %v2555, 0
  %v2595 = vsel %vm2569, %v2556, 0
  %v2598 = vsel %vm2569, %v2557, 0
  %v2601 = vsel %vm2569, %v2558, 0
  %v2604 = vsel %vm2569, %v2559, 0
  %v2607 = vsel %vm2569, %v2560, 0
  %vm2609 = vcmask 1041408
  %v2611 = vsel %vm2609, %v2561, 0
  %2613 = vmatprep.subr.bf16.mxu0 0
  %2614 = vmatpush1.bf16.msra.mxu0 %v2611
  %2615 = vmatprep.subr.bf16.mxu0 0
  %2616 = vmatpush1.bf16.msra.mxu0 0
  %2617 = vmatprep.subr.bf16.mxu0 0
  %2618 = vmatpush1.bf16.msra.mxu0 0
  %2619 = vmatprep.subr.bf16.mxu0 0
  %2620 = vmatpush1.bf16.msra.mxu0 0
  %2621 = vmatprep.subr.bf16.mxu0 0
  %2622 = vmatpush1.bf16.msra.mxu0 0
  %2623 = vmatprep.subr.bf16.mxu0 0
  %2624 = vmatpush1.bf16.msra.mxu0 0
  %2625 = vmatprep.subr.bf16.mxu0 0
  %2626 = vmatpush1.bf16.msra.mxu0 0
  %2627 = vmatprep.subr.bf16.mxu0 0
  %2628 = vmatpush1.bf16.msra.mxu0 0
  %2629 = vmatprep.subr.bf16.mxu0 0
  %2630 = vmatpush1.bf16.msra.mxu0 0
  %2631 = vmatprep.subr.bf16.mxu0 0
  %2632 = vmatpush1.bf16.msra.mxu0 0
  %2633 = vmatprep.subr.bf16.mxu0 0
  %2634 = vmatpush1.bf16.msra.mxu0 0
  %2635 = vmatprep.subr.bf16.mxu0 0
  %2636 = vmatpush1.bf16.msra.mxu0 0
  %2637 = vmatprep.subr.bf16.mxu0 0
  %2638 = vmatpush1.bf16.msra.mxu0 0
  %2639 = vmatprep.subr.bf16.mxu0 0
  %2640 = vmatpush1.bf16.msra.mxu0 0
  %2641 = vmatprep.subr.bf16.mxu0 0
  %2642 = vmatpush1.bf16.msra.mxu0 0
  %2643 = vmatprep.subr.bf16.mxu0 0
  %2644 = vmatpush1.bf16.msra.mxu0 0
  %2645 = vmatprep.mubr.bf16.mxu0 0
  %2646 = vmatmul.mubr.bf16.gmra.mrb[0].mxu0 %v2571
  %v2647 = vpop.f32.mrb[0].mxu0
  %v2648 = vadd.f32 %v2567, %v2647
  %v2649 = vpop.f32.mrb[0].mxu0
  %v2650 = vpop.f32.mrb[0].mxu0
  %v2651 = vadd.f32 %v2567, %v2650
  %v2652 = vpop.f32.mrb[0].mxu0
  %2653 = vmatprep.mubr.bf16.mxu0 0
  %2654 = vmatmul.mubr.bf16.gmra.mrb[0].mxu0 %v2574
  %v2655 = vpop.f32.mrb[0].mxu0
  %v2656 = vadd.f32 %v2567, %v2655
  %v2657 = vpop.f32.mrb[0].mxu0
  %v2658 = vpop.f32.mrb[0].mxu0
  %v2659 = vadd.f32 %v2567, %v2658
  %v2660 = vpop.f32.mrb[0].mxu0
  %2661 = vmatprep.mubr.bf16.mxu0 0
  %2662 = vmatmul.mubr.bf16.gmra.mrb[0].mxu0 %v2577
  %v2663 = vpop.f32.mrb[0].mxu0
  %v2664 = vadd.f32 %v2567, %v2663
  %v2665 = vpop.f32.mrb[0].mxu0
  %v2666 = vpop.f32.mrb[0].mxu0
  %v2667 = vadd.f32 %v2567, %v2666
  %v2668 = vpop.f32.mrb[0].mxu0
  %2669 = vmatprep.mubr.bf16.mxu0 0
  %2670 = vmatmul.mubr.bf16.gmra.mrb[0].mxu0 %v2580
  %v2671 = vpop.f32.mrb[0].mxu0
  %v2672 = vadd.f32 %v2567, %v2671
  %v2673 = vpop.f32.mrb[0].mxu0
  %v2674 = vpop.f32.mrb[0].mxu0
  %v2675 = vadd.f32 %v2567, %v2674
  %v2676 = vpop.f32.mrb[0].mxu0
  %2677 = vmatprep.mubr.bf16.mxu0 0
  %2678 = vmatmul.mubr.bf16.gmra.mrb[0].mxu0 %v2583
  %v2679 = vpop.f32.mrb[0].mxu0
  %v2680 = vadd.f32 %v2567, %v2679
  %v2681 = vpop.f32.mrb[0].mxu0
  %v2682 = vpop.f32.mrb[0].mxu0
  %v2683 = vadd.f32 %v2567, %v2682
  %v2684 = vpop.f32.mrb[0].mxu0
  %2685 = vmatprep.mubr.bf16.mxu0 0
  %2686 = vmatmul.mubr.bf16.gmra.mrb[0].mxu0 %v2586
  %v2687 = vpop.f32.mrb[0].mxu0
  %v2688 = vadd.f32 %v2567, %v2687
  %v2689 = vpop.f32.mrb[0].mxu0
  %v2690 = vpop.f32.mrb[0].mxu0
  %v2691 = vadd.f32 %v2567, %v2690
  %v2692 = vpop.f32.mrb[0].mxu0
  %2693 = vmatprep.mubr.bf16.mxu0 0
  %2694 = vmatmul.mubr.bf16.gmra.mrb[0].mxu0 %v2589
  %v2695 = vpop.f32.mrb[0].mxu0
  %v2696 = vadd.f32 %v2567, %v2695
  %v2697 = vpop.f32.mrb[0].mxu0
  %v2698 = vpop.f32.mrb[0].mxu0
  %v2699 = vadd.f32 %v2567, %v2698
  %v2700 = vpop.f32.mrb[0].mxu0
  %2701 = vmatprep.mubr.bf16.mxu0 0
  %2702 = vmatmul.mubr.bf16.gmra.mrb[0].mxu0 %v2592
  %v2703 = vpop.f32.mrb[0].mxu0
  %v2704 = vadd.f32 %v2567, %v2703
  %v2705 = vpop.f32.mrb[0].mxu0
  %v2706 = vpop.f32.mrb[0].mxu0
  %v2707 = vadd.f32 %v2567, %v2706
  %v2708 = vpop.f32.mrb[0].mxu0
  %2709 = vmatprep.mubr.bf16.mxu0 0
  %2710 = vmatmul.mubr.bf16.gmra.mrb[0].mxu0 %v2595
  %v2711 = vpop.f32.mrb[0].mxu0
  %v2712 = vadd.f32 %v2567, %v2711
  %v2713 = vpop.f32.mrb[0].mxu0
  %v2714 = vpop.f32.mrb[0].mxu0
  %v2715 = vadd.f32 %v2567, %v2714
  %v2716 = vpop.f32.mrb[0].mxu0
  %2717 = vmatprep.mubr.bf16.mxu0 0
  %2718 = vmatmul.mubr.bf16.gmra.mrb[0].mxu0 %v2598
  %v2719 = vpop.f32.mrb[0].mxu0
  %v2720 = vadd.f32 %v2567, %v2719
  %v2721 = vpop.f32.mrb[0].mxu0
  %v2722 = vpop.f32.mrb[0].mxu0
  %v2723 = vadd.f32 %v2567, %v2722
  %v2724 = vpop.f32.mrb[0].mxu0
  %2725 = vmatprep.mubr.bf16.mxu0 0
  %2726 = vmatmul.mubr.bf16.gmra.mrb[0].mxu0 %v2601
  %v2727 = vpop.f32.mrb[0].mxu0
  %v2728 = vadd.f32 %v2567, %v2727
  %v2729 = vpop.f32.mrb[0].mxu0
  %v2730 = vpop.f32.mrb[0].mxu0
  %v2731 = vadd.f32 %v2567, %v2730
  %v2732 = vpop.f32.mrb[0].mxu0
  %2733 = vmatprep.mubr.bf16.mxu0 0
  %2734 = vmatmul.mubr.bf16.gmra.mrb[0].mxu0 %v2604
  %v2735 = vpop.f32.mrb[0].mxu0
  %v2736 = vadd.f32 %v2567, %v2735
  %v2737 = vpop.f32.mrb[0].mxu0
  %v2738 = vpop.f32.mrb[0].mxu0
  %v2739 = vadd.f32 %v2567, %v2738
  %v2740 = vpop.f32.mrb[0].mxu0
  %2741 = vmatprep.mubr.bf16.mxu0 0
  %2742 = vmatmul.mubr.bf16.gmra.mrb[0].mxu0 %v2607
  %v2743 = vpop.f32.mrb[0].mxu0
  %v2744 = vadd.f32 %v2567, %v2743
  %v2745 = vpop.f32.mrb[0].mxu0
  %v2746 = vpop.f32.mrb[0].mxu0
  %v2747 = vpop.f32.mrb[0].mxu0
  %2748 = vdwg.mxu0
  %v2749 = vtanh.pop %v2648
  %v2750 = vtanh.pop %v2651
  %v2751 = vtanh.pop %v2656
  %v2752 = vtanh.pop %v2659
  %v2753 = vtanh.pop %v2664
  %v2754 = vtanh.pop %v2667
  %v2755 = vtanh.pop %v2672
  %v2756 = vtanh.pop %v2675
  %v2757 = vtanh.pop %v2680
  %v2758 = vtanh.pop %v2683
  %v2759 = vtanh.pop %v2688
  %v2760 = vtanh.pop %v2691
  %v2761 = vtanh.pop %v2696
  %v2762 = vtanh.pop %v2699
  %v2763 = vtanh.pop %v2704
  %v2764 = vtanh.pop %v2707
  %v2765 = vtanh.pop %v2712
  %v2766 = vtanh.pop %v2715
  %v2767 = vtanh.pop %v2720
  %v2768 = vtanh.pop %v2723
  %v2769 = vtanh.pop %v2728
  %v2770 = vtanh.pop %v2731
  %v2771 = vtanh.pop %v2736
  %v2772 = vtanh.pop %v2739
  %v2773 = vtanh.pop %v2744
  %v2774 = vadd.f32 %v2749, 1.0
  %v2775 = vadd.f32 %v2750, 1.0
  %v2776 = vadd.f32 %v2751, 1.0
  %v2777 = vadd.f32 %v2752, 1.0
  %v2778 = vadd.f32 %v2753, 1.0
  %v2779 = vadd.f32 %v2754, 1.0
  %v2780 = vadd.f32 %v2755, 1.0
  %v2781 = vadd.f32 %v2756, 1.0
  %v2782 = vadd.f32 %v2757, 1.0
  %v2783 = vadd.f32 %v2758, 1.0
  %v2784 = vadd.f32 %v2759, 1.0
  %v2785 = vadd.f32 %v2760, 1.0
  %v2786 = vadd.f32 %v2761, 1.0
  %v2787 = vadd.f32 %v2762, 1.0
  %v2788 = vadd.f32 %v2763, 1.0
  %v2789 = vadd.f32 %v2764, 1.0
  %v2790 = vadd.f32 %v2765, 1.0
  %v2791 = vadd.f32 %v2766, 1.0
  %v2792 = vadd.f32 %v2767, 1.0
  %v2793 = vadd.f32 %v2768, 1.0
  %v2794 = vadd.f32 %v2769, 1.0
  %v2795 = vadd.f32 %v2770, 1.0
  %v2796 = vadd.f32 %v2771, 1.0
  %v2797 = vadd.f32 %v2772, 1.0
  %v2798 = vadd.f32 %v2773, 1.0
  %v2799 = vmul.f32 %v1997, %v2774
  %v2800 = vmul.f32 %v1998, %v2775
  %v2801 = vmul.f32 %v1999, %v2776
  %v2802 = vmul.f32 %v2000, %v2777
  %v2803 = vmul.f32 %v2001, %v2778
  %v2804 = vmul.f32 %v2002, %v2779
  %v2805 = vmul.f32 %v2003, %v2780
  %v2806 = vmul.f32 %v2004, %v2781
  %v2807 = vmul.f32 %v2005, %v2782
  %v2808 = vmul.f32 %v2006, %v2783
  %v2809 = vmul.f32 %v2007, %v2784
  %v2810 = vmul.f32 %v2008, %v2785
  %v2811 = vmul.f32 %v2009, %v2786
  %v2812 = vmul.f32 %v2010, %v2787
  %v2813 = vmul.f32 %v2011, %v2788
  %v2814 = vmul.f32 %v2012, %v2789
  %v2815 = vmul.f32 %v2013, %v2790
  %v2816 = vmul.f32 %v2014, %v2791
  %v2817 = vmul.f32 %v2015, %v2792
  %v2818 = vmul.f32 %v2016, %v2793
  %v2819 = vmul.f32 %v2017, %v2794
  %v2820 = vmul.f32 %v2018, %v2795
  %v2821 = vmul.f32 %v2019, %v2796
  %v2822 = vmul.f32 %v2020, %v2797
  %v2823 = vmul.f32 %v2021, %v2798
  %v2824 = vsub.f32 2.0, %v2774
  %v2825 = vsub.f32 2.0, %v2775
  %v2826 = vsub.f32 2.0, %v2776
  %v2827 = vsub.f32 2.0, %v2777
  %v2828 = vsub.f32 2.0, %v2778
  %v2829 = vsub.f32 2.0, %v2779
  %v2830 = vsub.f32 2.0, %v2780
  %v2831 = vsub.f32 2.0, %v2781
  %v2832 = vsub.f32 2.0, %v2782
  %v2833 = vsub.f32 2.0, %v2783
  %v2834 = vsub.f32 2.0, %v2784
  %v2835 = vsub.f32 2.0, %v2785
  %v2836 = vsub.f32 2.0, %v2786
  %v2837 = vsub.f32 2.0, %v2787
  %v2838 = vsub.f32 2.0, %v2788
  %v2839 = vsub.f32 2.0, %v2789
  %v2840 = vsub.f32 2.0, %v2790
  %v2841 = vsub.f32 2.0, %v2791
  %v2842 = vsub.f32 2.0, %v2792
  %v2843 = vsub.f32 2.0, %v2793
  %v2844 = vsub.f32 2.0, %v2794
  %v2845 = vsub.f32 2.0, %v2795
  %v2846 = vsub.f32 2.0, %v2796
  %v2847 = vsub.f32 2.0, %v2797
  %v2848 = vsub.f32 2.0, %v2798
  %v2849 = vmul.f32 %v559, %v2824
  %v2850 = vmul.f32 %v560, %v2825
  %v2851 = vmul.f32 %v561, %v2826
  %v2852 = vmul.f32 %v562, %v2827
  %v2853 = vmul.f32 %v563, %v2828
  %v2854 = vmul.f32 %v564, %v2829
  %v2855 = vmul.f32 %v565, %v2830
  %v2856 = vmul.f32 %v566, %v2831
  %v2857 = vmul.f32 %v567, %v2832
  %v2858 = vmul.f32 %v568, %v2833
  %v2859 = vmul.f32 %v569, %v2834
  %v2860 = vmul.f32 %v570, %v2835
  %v2861 = vmul.f32 %v571, %v2836
  %v2862 = vmul.f32 %v572, %v2837
  %v2863 = vmul.f32 %v573, %v2838
  %v2864 = vmul.f32 %v574, %v2839
  %v2865 = vmul.f32 %v575, %v2840
  %v2866 = vmul.f32 %v576, %v2841
  %v2867 = vmul.f32 %v577, %v2842
  %v2868 = vmul.f32 %v578, %v2843
  %v2869 = vmul.f32 %v579, %v2844
  %v2870 = vmul.f32 %v580, %v2845
  %v2871 = vmul.f32 %v581, %v2846
  %v2872 = vmul.f32 %v582, %v2847
  %v2873 = vmul.f32 %v583, %v2848
  %v2874 = vadd.f32 %v2799, %v2849
  %v2875 = vadd.f32 %v2800, %v2850
  %v2876 = vadd.f32 %v2801, %v2851
  %v2877 = vadd.f32 %v2802, %v2852
  %v2878 = vadd.f32 %v2803, %v2853
  %v2879 = vadd.f32 %v2804, %v2854
  %v2880 = vadd.f32 %v2805, %v2855
  %v2881 = vadd.f32 %v2806, %v2856
  %v2882 = vadd.f32 %v2807, %v2857
  %v2883 = vadd.f32 %v2808, %v2858
  %v2884 = vadd.f32 %v2809, %v2859
  %v2885 = vadd.f32 %v2810, %v2860
  %v2886 = vadd.f32 %v2811, %v2861
  %v2887 = vadd.f32 %v2812, %v2862
  %v2888 = vadd.f32 %v2813, %v2863
  %v2889 = vadd.f32 %v2814, %v2864
  %v2890 = vadd.f32 %v2815, %v2865
  %v2891 = vadd.f32 %v2816, %v2866
  %v2892 = vadd.f32 %v2817, %v2867
  %v2893 = vadd.f32 %v2818, %v2868
  %v2894 = vadd.f32 %v2819, %v2869
  %v2895 = vadd.f32 %v2820, %v2870
  %v2896 = vadd.f32 %v2821, %v2871
  %v2897 = vadd.f32 %v2822, %v2872
  %v2898 = vadd.f32 %v2823, %v2873
  %v2899 = vmul.f32 %v2874, %v587
  %v2900 = vmul.f32 %v2875, %v592
  %v2901 = vmul.f32 %v2876, %v597
  %v2902 = vmul.f32 %v2877, %v602
  %v2903 = vmul.f32 %v2878, %v607
  %v2904 = vmul.f32 %v2879, %v612
  %v2905 = vmul.f32 %v2880, %v617
  %v2906 = vmul.f32 %v2881, %v622
  %v2907 = vmul.f32 %v2882, %v627
  %v2908 = vmul.f32 %v2883, %v632
  %v2909 = vmul.f32 %v2884, %v637
  %v2910 = vmul.f32 %v2885, %v642
  %v2911 = vmul.f32 %v2886, %v647
  %v2912 = vmul.f32 %v2887, %v652
  %v2913 = vmul.f32 %v2888, %v657
  %v2914 = vmul.f32 %v2889, %v662
  %v2915 = vmul.f32 %v2890, %v667
  %v2916 = vmul.f32 %v2891, %v672
  %v2917 = vmul.f32 %v2892, %v677
  %v2918 = vmul.f32 %v2893, %v682
  %v2919 = vmul.f32 %v2894, %v687
  %v2920 = vmul.f32 %v2895, %v692
  %v2921 = vmul.f32 %v2896, %v697
  %v2922 = vmul.f32 %v2897, %v702
  %v2923 = vmul.f32 %v2898, %v707
  %v2924 = vpack.c.bf16 %v2900, %v2899
  %v2925 = vpack.c.bf16 %v2902, %v2901
  %v2926 = vpack.c.bf16 %v2904, %v2903
  %v2927 = vpack.c.bf16 %v2906, %v2905
  %v2928 = vpack.c.bf16 %v2908, %v2907
  %v2929 = vpack.c.bf16 %v2910, %v2909
  %v2930 = vpack.c.bf16 %v2912, %v2911
  %v2931 = vpack.c.bf16 %v2914, %v2913
  %v2932 = vpack.c.bf16 %v2916, %v2915
  %v2933 = vpack.c.bf16 %v2918, %v2917
  %v2934 = vpack.c.bf16 %v2920, %v2919
  %v2935 = vpack.c.bf16 %v2922, %v2921
  %v2936 = vpack.c.bf16 %v2923, %v2923
  %v2938 = vsel %vm747, %v2936, 0
  %v2940 = vshll.u32 %v2924, 16
  %v2942 = vrot.slane %v2940, 1
  %v2943 = vsel %vm751, %v757, %v2942
  %v2944 = vshrl.u32 %v2924, 16
  %v2946 = vor.u32 %v2944, %v2942
  %v2948 = vshll.u32 %v2925, 16
  %v2950 = vrot.slane %v2948, 1
  %v2951 = vsel %vm751, %v2946, %v2950
  %v2952 = vshrl.u32 %v2925, 16
  %v2954 = vor.u32 %v2952, %v2950
  %v2956 = vshll.u32 %v2926, 16
  %v2958 = vrot.slane %v2956, 1
  %v2959 = vsel %vm751, %v2954, %v2958
  %v2960 = vshrl.u32 %v2926, 16
  %v2962 = vor.u32 %v2960, %v2958
  %v2964 = vshll.u32 %v2927, 16
  %v2966 = vrot.slane %v2964, 1
  %v2967 = vsel %vm751, %v2962, %v2966
  %v2968 = vshrl.u32 %v2927, 16
  %v2970 = vor.u32 %v2968, %v2966
  %v2972 = vshll.u32 %v2928, 16
  %v2974 = vrot.slane %v2972, 1
  %v2975 = vsel %vm751, %v2970, %v2974
  %v2976 = vshrl.u32 %v2928, 16
  %v2978 = vor.u32 %v2976, %v2974
  %v2980 = vshll.u32 %v2929, 16
  %v2982 = vrot.slane %v2980, 1
  %v2983 = vsel %vm751, %v2978, %v2982
  %v2984 = vshrl.u32 %v2929, 16
  %v2986 = vor.u32 %v2984, %v2982
  %v2988 = vshll.u32 %v2930, 16
  %v2990 = vrot.slane %v2988, 1
  %v2991 = vsel %vm751, %v2986, %v2990
  %v2992 = vshrl.u32 %v2930, 16
  %v2994 = vor.u32 %v2992, %v2990
  %v2996 = vshll.u32 %v2931, 16
  %v2998 = vrot.slane %v2996, 1
  %v2999 = vsel %vm751, %v2994, %v2998
  %v3000 = vshrl.u32 %v2931, 16
  %v3002 = vor.u32 %v3000, %v2998
  %v3004 = vshll.u32 %v2932, 16
  %v3006 = vrot.slane %v3004, 1
  %v3007 = vsel %vm751, %v3002, %v3006
  %v3008 = vshrl.u32 %v2932, 16
  %v3010 = vor.u32 %v3008, %v3006
  %v3012 = vshll.u32 %v2933, 16
  %v3014 = vrot.slane %v3012, 1
  %v3015 = vsel %vm751, %v3010, %v3014
  %v3016 = vshrl.u32 %v2933, 16
  %v3018 = vor.u32 %v3016, %v3014
  %v3020 = vshll.u32 %v2934, 16
  %v3022 = vrot.slane %v3020, 1
  %v3023 = vsel %vm751, %v3018, %v3022
  %v3024 = vshrl.u32 %v2934, 16
  %v3026 = vor.u32 %v3024, %v3022
  %v3028 = vshll.u32 %v2935, 16
  %v3030 = vrot.slane %v3028, 1
  %v3031 = vsel %vm751, %v3026, %v3030
  %v3032 = vshrl.u32 %v2935, 16
  %v3034 = vor.u32 %v3032, %v3030
  %3035 = vrot.lane.b32.xlu0 %v2943, 16
  %v3036 = vpop.permute.xlu0 %3035
  %3037 = vrot.lane.b32.xlu0 %v2951, 16
  %v3038 = vpop.permute.xlu0 %3037
  %3039 = vrot.lane.b32.xlu0 %v2959, 16
  %v3040 = vpop.permute.xlu0 %3039
  %3041 = vrot.lane.b32.xlu0 %v2967, 16
  %v3042 = vpop.permute.xlu0 %3041
  %3043 = vrot.lane.b32.xlu0 %v2975, 16
  %v3044 = vpop.permute.xlu0 %3043
  %3045 = vrot.lane.b32.xlu0 %v2983, 16
  %v3046 = vpop.permute.xlu0 %3045
  %3047 = vrot.lane.b32.xlu0 %v2991, 16
  %v3048 = vpop.permute.xlu0 %3047
  %3049 = vrot.lane.b32.xlu0 %v2999, 16
  %v3050 = vpop.permute.xlu0 %3049
  %3051 = vrot.lane.b32.xlu0 %v3007, 16
  %v3052 = vpop.permute.xlu0 %3051
  %3053 = vrot.lane.b32.xlu0 %v3015, 16
  %v3054 = vpop.permute.xlu0 %3053
  %3055 = vrot.lane.b32.xlu0 %v3023, 16
  %v3056 = vpop.permute.xlu0 %3055
  %3057 = vrot.lane.b32.xlu0 %v3031, 16
  %v3058 = vpop.permute.xlu0 %3057
  %3059 = vrot.lane.b32.xlu0 %v3034, 16
  %v3060 = vpop.permute.xlu0 %3059
  %v3073 = vrot.slane %v2924, 1
  %v3074 = vsel %vm893, %v894, %v3073
  %v3075 = vrot.slane %v2925, 1
  %v3076 = vsel %vm893, %v3073, %v3075
  %v3077 = vrot.slane %v2926, 1
  %v3078 = vsel %vm893, %v3075, %v3077
  %v3079 = vrot.slane %v2927, 1
  %v3080 = vsel %vm893, %v3077, %v3079
  %v3081 = vrot.slane %v2928, 1
  %v3082 = vsel %vm893, %v3079, %v3081
  %v3083 = vrot.slane %v2929, 1
  %v3084 = vsel %vm893, %v3081, %v3083
  %v3085 = vrot.slane %v2930, 1
  %v3086 = vsel %vm893, %v3083, %v3085
  %v3087 = vrot.slane %v2931, 1
  %v3088 = vsel %vm893, %v3085, %v3087
  %v3089 = vrot.slane %v2932, 1
  %v3090 = vsel %vm893, %v3087, %v3089
  %v3091 = vrot.slane %v2933, 1
  %v3092 = vsel %vm893, %v3089, %v3091
  %v3093 = vrot.slane %v2934, 1
  %v3094 = vsel %vm893, %v3091, %v3093
  %v3095 = vrot.slane %v2935, 1
  %v3096 = vsel %vm893, %v3093, %v3095
  %3097 = vrot.lane.b32.xlu0 %v3074, 32
  %v3098 = vpop.permute.xlu0 %3097
  %3099 = vrot.lane.b32.xlu0 %v3076, 32
  %v3100 = vpop.permute.xlu0 %3099
  %3101 = vrot.lane.b32.xlu0 %v3078, 32
  %v3102 = vpop.permute.xlu0 %3101
  %3103 = vrot.lane.b32.xlu0 %v3080, 32
  %v3104 = vpop.permute.xlu0 %3103
  %3105 = vrot.lane.b32.xlu0 %v3082, 32
  %v3106 = vpop.permute.xlu0 %3105
  %3107 = vrot.lane.b32.xlu0 %v3084, 32
  %v3108 = vpop.permute.xlu0 %3107
  %3109 = vrot.lane.b32.xlu0 %v3086, 32
  %v3110 = vpop.permute.xlu0 %3109
  %3111 = vrot.lane.b32.xlu0 %v3088, 32
  %v3112 = vpop.permute.xlu0 %3111
  %3113 = vrot.lane.b32.xlu0 %v3090, 32
  %v3114 = vpop.permute.xlu0 %3113
  %3115 = vrot.lane.b32.xlu0 %v3092, 32
  %v3116 = vpop.permute.xlu0 %3115
  %3117 = vrot.lane.b32.xlu0 %v3094, 32
  %v3118 = vpop.permute.xlu0 %3117
  %3119 = vrot.lane.b32.xlu0 %v3096, 32
  %v3120 = vpop.permute.xlu0 %3119
  %3121 = vrot.lane.b32.xlu0 %v3095, 32
  %v3122 = vpop.permute.xlu0 %3121
  %v3124 = vrot.slane %v2924, 5
  %v3125 = vsel %vm946, %v947, %v3124
  %v3126 = vrot.slane %v2925, 5
  %v3127 = vsel %vm946, %v3124, %v3126
  %v3128 = vrot.slane %v2926, 5
  %v3129 = vsel %vm946, %v3126, %v3128
  %v3130 = vrot.slane %v2927, 5
  %v3131 = vsel %vm946, %v3128, %v3130
  %v3132 = vrot.slane %v2928, 5
  %v3133 = vsel %vm946, %v3130, %v3132
  %v3134 = vrot.slane %v2929, 5
  %v3135 = vsel %vm946, %v3132, %v3134
  %v3136 = vrot.slane %v2930, 5
  %v3137 = vsel %vm946, %v3134, %v3136
  %v3138 = vrot.slane %v2931, 5
  %v3139 = vsel %vm946, %v3136, %v3138
  %v3140 = vrot.slane %v2932, 5
  %v3141 = vsel %vm946, %v3138, %v3140
  %v3142 = vrot.slane %v2933, 5
  %v3143 = vsel %vm946, %v3140, %v3142
  %v3144 = vrot.slane %v2934, 5
  %v3145 = vsel %vm946, %v3142, %v3144
  %v3146 = vrot.slane %v2935, 5
  %v3147 = vsel %vm946, %v3144, %v3146
  %v3148 = vrot.slane %v2938, 5
  %v3149 = vsel %vm946, %v3146, %v3148
  %3150 = vrot.lane.b32.xlu0 %v3125, 48
  %v3151 = vpop.permute.xlu0 %3150
  %3152 = vrot.lane.b32.xlu0 %v3127, 48
  %v3153 = vpop.permute.xlu0 %3152
  %3154 = vrot.lane.b32.xlu0 %v3129, 48
  %v3155 = vpop.permute.xlu0 %3154
  %3156 = vrot.lane.b32.xlu0 %v3131, 48
  %v3157 = vpop.permute.xlu0 %3156
  %3158 = vrot.lane.b32.xlu0 %v3133, 48
  %v3159 = vpop.permute.xlu0 %3158
  %3160 = vrot.lane.b32.xlu0 %v3135, 48
  %v3161 = vpop.permute.xlu0 %3160
  %3162 = vrot.lane.b32.xlu0 %v3137, 48
  %v3163 = vpop.permute.xlu0 %3162
  %3164 = vrot.lane.b32.xlu0 %v3139, 48
  %v3165 = vpop.permute.xlu0 %3164
  %3166 = vrot.lane.b32.xlu0 %v3141, 48
  %v3167 = vpop.permute.xlu0 %3166
  %3168 = vrot.lane.b32.xlu0 %v3143, 48
  %v3169 = vpop.permute.xlu0 %3168
  %3170 = vrot.lane.b32.xlu0 %v3145, 48
  %v3171 = vpop.permute.xlu0 %3170
  %3172 = vrot.lane.b32.xlu0 %v3147, 48
  %v3173 = vpop.permute.xlu0 %3172
  %3174 = vrot.lane.b32.xlu0 %v3149, 48
  %v3175 = vpop.permute.xlu0 %3174
  %v3176 = vrot.slane %v2944, 5
  %v3177 = vrot.slane %v2940, 6
  %v3178 = vor.u32 %v3176, %v3177
  %v3179 = vrot.slane %v2952, 5
  %v3180 = vrot.slane %v2948, 6
  %v3181 = vor.u32 %v3179, %v3180
  %v3182 = vsel %vm1000, %v3178, %v3181
  %v3183 = vrot.slane %v2960, 5
  %v3184 = vrot.slane %v2956, 6
  %v3185 = vor.u32 %v3183, %v3184
  %v3186 = vsel %vm1000, %v3181, %v3185
  %v3187 = vrot.slane %v2968, 5
  %v3188 = vrot.slane %v2964, 6
  %v3189 = vor.u32 %v3187, %v3188
  %v3190 = vsel %vm1000, %v3185, %v3189
  %v3191 = vrot.slane %v2976, 5
  %v3192 = vrot.slane %v2972, 6
  %v3193 = vor.u32 %v3191, %v3192
  %v3194 = vsel %vm1000, %v3189, %v3193
  %v3195 = vrot.slane %v2984, 5
  %v3196 = vrot.slane %v2980, 6
  %v3197 = vor.u32 %v3195, %v3196
  %v3198 = vsel %vm1000, %v3193, %v3197
  %v3199 = vrot.slane %v2992, 5
  %v3200 = vrot.slane %v2988, 6
  %v3201 = vor.u32 %v3199, %v3200
  %v3202 = vsel %vm1000, %v3197, %v3201
  %v3203 = vrot.slane %v3000, 5
  %v3204 = vrot.slane %v2996, 6
  %v3205 = vor.u32 %v3203, %v3204
  %v3206 = vsel %vm1000, %v3201, %v3205
  %v3207 = vrot.slane %v3008, 5
  %v3208 = vrot.slane %v3004, 6
  %v3209 = vor.u32 %v3207, %v3208
  %v3210 = vsel %vm1000, %v3205, %v3209
  %v3211 = vrot.slane %v3016, 5
  %v3212 = vrot.slane %v3012, 6
  %v3213 = vor.u32 %v3211, %v3212
  %v3214 = vsel %vm1000, %v3209, %v3213
  %v3215 = vrot.slane %v3024, 5
  %v3216 = vrot.slane %v3020, 6
  %v3217 = vor.u32 %v3215, %v3216
  %v3218 = vsel %vm1000, %v3213, %v3217
  %v3219 = vrot.slane %v3032, 5
  %v3220 = vrot.slane %v3028, 6
  %v3221 = vor.u32 %v3219, %v3220
  %v3222 = vsel %vm1000, %v3217, %v3221
  %v3223 = vshrl.u32 %v2938, 16
  %v3225 = vrot.slane %v3223, 5
  %v3226 = vshll.u32 %v2938, 16
  %v3228 = vrot.slane %v3226, 6
  %v3229 = vor.u32 %v3225, %v3228
  %v3230 = vsel %vm1000, %v3221, %v3229
  %3231 = vrot.lane.b32.xlu0 %v3178, 64
  %v3232 = vpop.permute.xlu0 %3231
  %3233 = vrot.lane.b32.xlu0 %v3182, 64
  %v3234 = vpop.permute.xlu0 %3233
  %3235 = vrot.lane.b32.xlu0 %v3186, 64
  %v3236 = vpop.permute.xlu0 %3235
  %3237 = vrot.lane.b32.xlu0 %v3190, 64
  %v3238 = vpop.permute.xlu0 %3237
  %3239 = vrot.lane.b32.xlu0 %v3194, 64
  %v3240 = vpop.permute.xlu0 %3239
  %3241 = vrot.lane.b32.xlu0 %v3198, 64
  %v3242 = vpop.permute.xlu0 %3241
  %3243 = vrot.lane.b32.xlu0 %v3202, 64
  %v3244 = vpop.permute.xlu0 %3243
  %3245 = vrot.lane.b32.xlu0 %v3206, 64
  %v3246 = vpop.permute.xlu0 %3245
  %3247 = vrot.lane.b32.xlu0 %v3210, 64
  %v3248 = vpop.permute.xlu0 %3247
  %3249 = vrot.lane.b32.xlu0 %v3214, 64
  %v3250 = vpop.permute.xlu0 %3249
  %3251 = vrot.lane.b32.xlu0 %v3218, 64
  %v3252 = vpop.permute.xlu0 %3251
  %3253 = vrot.lane.b32.xlu0 %v3222, 64
  %v3254 = vpop.permute.xlu0 %3253
  %3255 = vrot.lane.b32.xlu0 %v3230, 64
  %v3256 = vpop.permute.xlu0 %3255
  %v3257 = vrot.slane %v2924, 6
  %v3258 = vrot.slane %v2925, 6
  %v3259 = vsel %vm1082, %v3257, %v3258
  %v3260 = vrot.slane %v2926, 6
  %v3261 = vsel %vm1082, %v3258, %v3260
  %v3262 = vrot.slane %v2927, 6
  %v3263 = vsel %vm1082, %v3260, %v3262
  %v3264 = vrot.slane %v2928, 6
  %v3265 = vsel %vm1082, %v3262, %v3264
  %v3266 = vrot.slane %v2929, 6
  %v3267 = vsel %vm1082, %v3264, %v3266
  %v3268 = vrot.slane %v2930, 6
  %v3269 = vsel %vm1082, %v3266, %v3268
  %v3270 = vrot.slane %v2931, 6
  %v3271 = vsel %vm1082, %v3268, %v3270
  %v3272 = vrot.slane %v2932, 6
  %v3273 = vsel %vm1082, %v3270, %v3272
  %v3274 = vrot.slane %v2933, 6
  %v3275 = vsel %vm1082, %v3272, %v3274
  %v3276 = vrot.slane %v2934, 6
  %v3277 = vsel %vm1082, %v3274, %v3276
  %v3278 = vrot.slane %v2935, 6
  %v3279 = vsel %vm1082, %v3276, %v3278
  %v3280 = vrot.slane %v2938, 6
  %v3281 = vsel %vm1082, %v3278, %v3280
  %3282 = vrot.lane.b32.xlu0 %v3257, 80
  %v3283 = vpop.permute.xlu0 %3282
  %3284 = vrot.lane.b32.xlu0 %v3259, 80
  %v3285 = vpop.permute.xlu0 %3284
  %3286 = vrot.lane.b32.xlu0 %v3261, 80
  %v3287 = vpop.permute.xlu0 %3286
  %3288 = vrot.lane.b32.xlu0 %v3263, 80
  %v3289 = vpop.permute.xlu0 %3288
  %3290 = vrot.lane.b32.xlu0 %v3265, 80
  %v3291 = vpop.permute.xlu0 %3290
  %3292 = vrot.lane.b32.xlu0 %v3267, 80
  %v3293 = vpop.permute.xlu0 %3292
  %3294 = vrot.lane.b32.xlu0 %v3269, 80
  %v3295 = vpop.permute.xlu0 %3294
  %3296 = vrot.lane.b32.xlu0 %v3271, 80
  %v3297 = vpop.permute.xlu0 %3296
  %3298 = vrot.lane.b32.xlu0 %v3273, 80
  %v3299 = vpop.permute.xlu0 %3298
  %3300 = vrot.lane.b32.xlu0 %v3275, 80
  %v3301 = vpop.permute.xlu0 %3300
  %3302 = vrot.lane.b32.xlu0 %v3277, 80
  %v3303 = vpop.permute.xlu0 %3302
  %3304 = vrot.lane.b32.xlu0 %v3279, 80
  %v3305 = vpop.permute.xlu0 %3304
  %3306 = vrot.lane.b32.xlu0 %v3281, 80
  %v3307 = vpop.permute.xlu0 %3306
  %v3308 = vrot.slane %v2924, 2
  %v3309 = vrot.slane %v2925, 2
  %v3310 = vsel %vm1134, %v3308, %v3309
  %v3311 = vrot.slane %v2926, 2
  %v3312 = vsel %vm1134, %v3309, %v3311
  %v3313 = vrot.slane %v2927, 2
  %v3314 = vsel %vm1134, %v3311, %v3313
  %v3315 = vrot.slane %v2928, 2
  %v3316 = vsel %vm1134, %v3313, %v3315
  %v3317 = vrot.slane %v2929, 2
  %v3318 = vsel %vm1134, %v3315, %v3317
  %v3319 = vrot.slane %v2930, 2
  %v3320 = vsel %vm1134, %v3317, %v3319
  %v3321 = vrot.slane %v2931, 2
  %v3322 = vsel %vm1134, %v3319, %v3321
  %v3323 = vrot.slane %v2932, 2
  %v3324 = vsel %vm1134, %v3321, %v3323
  %v3325 = vrot.slane %v2933, 2
  %v3326 = vsel %vm1134, %v3323, %v3325
  %v3327 = vrot.slane %v2934, 2
  %v3328 = vsel %vm1134, %v3325, %v3327
  %v3329 = vrot.slane %v2935, 2
  %v3330 = vsel %vm1134, %v3327, %v3329
  %v3331 = vrot.slane %v2938, 2
  %v3332 = vsel %vm1134, %v3329, %v3331
  %v3333 = vsel %vm1134, %v3331, %v1160
  %3334 = vrot.lane.b32.xlu0 %v3310, 96
  %v3335 = vpop.permute.xlu0 %3334
  %3336 = vrot.lane.b32.xlu0 %v3312, 96
  %v3337 = vpop.permute.xlu0 %3336
  %3338 = vrot.lane.b32.xlu0 %v3314, 96
  %v3339 = vpop.permute.xlu0 %3338
  %3340 = vrot.lane.b32.xlu0 %v3316, 96
  %v3341 = vpop.permute.xlu0 %3340
  %3342 = vrot.lane.b32.xlu0 %v3318, 96
  %v3343 = vpop.permute.xlu0 %3342
  %3344 = vrot.lane.b32.xlu0 %v3320, 96
  %v3345 = vpop.permute.xlu0 %3344
  %3346 = vrot.lane.b32.xlu0 %v3322, 96
  %v3347 = vpop.permute.xlu0 %3346
  %3348 = vrot.lane.b32.xlu0 %v3324, 96
  %v3349 = vpop.permute.xlu0 %3348
  %3350 = vrot.lane.b32.xlu0 %v3326, 96
  %v3351 = vpop.permute.xlu0 %3350
  %3352 = vrot.lane.b32.xlu0 %v3328, 96
  %v3353 = vpop.permute.xlu0 %3352
  %3354 = vrot.lane.b32.xlu0 %v3330, 96
  %v3355 = vpop.permute.xlu0 %3354
  %3356 = vrot.lane.b32.xlu0 %v3332, 96
  %v3357 = vpop.permute.xlu0 %3356
  %3358 = vrot.lane.b32.xlu0 %v3333, 96
  %v3359 = vpop.permute.xlu0 %3358
  %v3360 = vrot.slane %v2944, 2
  %v3361 = vrot.slane %v2940, 3
  %v3362 = vor.u32 %v3360, %v3361
  %v3363 = vrot.slane %v2952, 2
  %v3364 = vrot.slane %v2948, 3
  %v3365 = vor.u32 %v3363, %v3364
  %v3366 = vsel %vm1188, %v3362, %v3365
  %v3367 = vrot.slane %v2960, 2
  %v3368 = vrot.slane %v2956, 3
  %v3369 = vor.u32 %v3367, %v3368
  %v3370 = vsel %vm1188, %v3365, %v3369
  %v3371 = vrot.slane %v2968, 2
  %v3372 = vrot.slane %v2964, 3
  %v3373 = vor.u32 %v3371, %v3372
  %v3374 = vsel %vm1188, %v3369, %v3373
  %v3375 = vrot.slane %v2976, 2
  %v3376 = vrot.slane %v2972, 3
  %v3377 = vor.u32 %v3375, %v3376
  %v3378 = vsel %vm1188, %v3373, %v3377
  %v3379 = vrot.slane %v2984, 2
  %v3380 = vrot.slane %v2980, 3
  %v3381 = vor.u32 %v3379, %v3380
  %v3382 = vsel %vm1188, %v3377, %v3381
  %v3383 = vrot.slane %v2992, 2
  %v3384 = vrot.slane %v2988, 3
  %v3385 = vor.u32 %v3383, %v3384
  %v3386 = vsel %vm1188, %v3381, %v3385
  %v3387 = vrot.slane %v3000, 2
  %v3388 = vrot.slane %v2996, 3
  %v3389 = vor.u32 %v3387, %v3388
  %v3390 = vsel %vm1188, %v3385, %v3389
  %v3391 = vrot.slane %v3008, 2
  %v3392 = vrot.slane %v3004, 3
  %v3393 = vor.u32 %v3391, %v3392
  %v3394 = vsel %vm1188, %v3389, %v3393
  %v3395 = vrot.slane %v3016, 2
  %v3396 = vrot.slane %v3012, 3
  %v3397 = vor.u32 %v3395, %v3396
  %v3398 = vsel %vm1188, %v3393, %v3397
  %v3399 = vrot.slane %v3024, 2
  %v3400 = vrot.slane %v3020, 3
  %v3401 = vor.u32 %v3399, %v3400
  %v3402 = vsel %vm1188, %v3397, %v3401
  %v3403 = vrot.slane %v3032, 2
  %v3404 = vrot.slane %v3028, 3
  %v3405 = vor.u32 %v3403, %v3404
  %v3406 = vsel %vm1188, %v3401, %v3405
  %v3407 = vrot.slane %v3223, 2
  %v3408 = vrot.slane %v3226, 3
  %v3409 = vor.u32 %v3407, %v3408
  %v3410 = vsel %vm1188, %v3405, %v3409
  %v3411 = vsel %vm1188, %v3409, %v1242
  %3412 = vrot.lane.b32.xlu0 %v3366, 112
  %v3413 = vpop.permute.xlu0 %3412
  %3414 = vrot.lane.b32.xlu0 %v3370, 112
  %v3415 = vpop.permute.xlu0 %3414
  %3416 = vrot.lane.b32.xlu0 %v3374, 112
  %v3417 = vpop.permute.xlu0 %3416
  %3418 = vrot.lane.b32.xlu0 %v3378, 112
  %v3419 = vpop.permute.xlu0 %3418
  %3420 = vrot.lane.b32.xlu0 %v3382, 112
  %v3421 = vpop.permute.xlu0 %3420
  %3422 = vrot.lane.b32.xlu0 %v3386, 112
  %v3423 = vpop.permute.xlu0 %3422
  %3424 = vrot.lane.b32.xlu0 %v3390, 112
  %v3425 = vpop.permute.xlu0 %3424
  %3426 = vrot.lane.b32.xlu0 %v3394, 112
  %v3427 = vpop.permute.xlu0 %3426
  %3428 = vrot.lane.b32.xlu0 %v3398, 112
  %v3429 = vpop.permute.xlu0 %3428
  %3430 = vrot.lane.b32.xlu0 %v3402, 112
  %v3431 = vpop.permute.xlu0 %3430
  %3432 = vrot.lane.b32.xlu0 %v3406, 112
  %v3433 = vpop.permute.xlu0 %3432
  %3434 = vrot.lane.b32.xlu0 %v3410, 112
  %v3435 = vpop.permute.xlu0 %3434
  %3436 = vrot.lane.b32.xlu0 %v3411, 112
  %v3437 = vpop.permute.xlu0 %3436
  %v3438 = vrot.slane %v2924, 3
  %v3439 = vrot.slane %v2925, 3
  %v3440 = vsel %vm1270, %v3438, %v3439
  %v3441 = vrot.slane %v2926, 3
  %v3442 = vsel %vm1270, %v3439, %v3441
  %v3443 = vrot.slane %v2927, 3
  %v3444 = vsel %vm1270, %v3441, %v3443
  %v3445 = vrot.slane %v2928, 3
  %v3446 = vsel %vm1270, %v3443, %v3445
  %v3447 = vrot.slane %v2929, 3
  %v3448 = vsel %vm1270, %v3445, %v3447
  %v3449 = vrot.slane %v2930, 3
  %v3450 = vsel %vm1270, %v3447, %v3449
  %v3451 = vrot.slane %v2931, 3
  %v3452 = vsel %vm1270, %v3449, %v3451
  %v3453 = vrot.slane %v2932, 3
  %v3454 = vsel %vm1270, %v3451, %v3453
  %v3455 = vrot.slane %v2933, 3
  %v3456 = vsel %vm1270, %v3453, %v3455
  %v3457 = vrot.slane %v2934, 3
  %v3458 = vsel %vm1270, %v3455, %v3457
  %v3459 = vrot.slane %v2935, 3
  %v3460 = vsel %vm1270, %v3457, %v3459
  %v3461 = vrot.slane %v2938, 3
  %v3462 = vsel %vm1270, %v3459, %v3461
  %v3463 = vsel %vm1270, %v3461, %v1296
  %v3465 = vsel %vm1298, 0, %v3036
  %v3467 = vsel %vm1298, %v2924, %v3038
  %v3469 = vsel %vm1298, %v2925, %v3040
  %v3471 = vsel %vm1298, %v2926, %v3042
  %v3473 = vsel %vm1298, %v2927, %v3044
  %v3475 = vsel %vm1298, %v2928, %v3046
  %v3477 = vsel %vm1298, %v2929, %v3048
  %v3479 = vsel %vm1298, %v2930, %v3050
  %v3481 = vsel %vm1298, %v2931, %v3052
  %v3483 = vsel %vm1298, %v2932, %v3054
  %v3485 = vsel %vm1298, %v2933, %v3056
  %v3487 = vsel %vm1298, %v2934, %v3058
  %v3489 = vsel %vm1298, %v2935, %v3060
  %v3491 = vsel %vm149, %v3465, %v3098
  %v3493 = vsel %vm149, %v3467, %v3100
  %v3495 = vsel %vm149, %v3469, %v3102
  %v3497 = vsel %vm149, %v3471, %v3104
  %v3499 = vsel %vm149, %v3473, %v3106
  %v3501 = vsel %vm149, %v3475, %v3108
  %v3503 = vsel %vm149, %v3477, %v3110
  %v3505 = vsel %vm149, %v3479, %v3112
  %v3507 = vsel %vm149, %v3481, %v3114
  %v3509 = vsel %vm149, %v3483, %v3116
  %v3511 = vsel %vm149, %v3485, %v3118
  %v3513 = vsel %vm149, %v3487, %v3120
  %v3515 = vsel %vm149, %v3489, %v3122
  %v3517 = vsel %vm1351, %v3491, %v3151
  %v3519 = vsel %vm1351, %v3493, %v3153
  %v3521 = vsel %vm1351, %v3495, %v3155
  %v3523 = vsel %vm1351, %v3497, %v3157
  %v3525 = vsel %vm1351, %v3499, %v3159
  %v3527 = vsel %vm1351, %v3501, %v3161
  %v3529 = vsel %vm1351, %v3503, %v3163
  %v3531 = vsel %vm1351, %v3505, %v3165
  %v3533 = vsel %vm1351, %v3507, %v3167
  %v3535 = vsel %vm1351, %v3509, %v3169
  %v3537 = vsel %vm1351, %v3511, %v3171
  %v3539 = vsel %vm1351, %v3513, %v3173
  %v3541 = vsel %vm1351, %v3515, %v3175
  %v3543 = vsel %vm1378, %v3517, %v3232
  %v3545 = vsel %vm1378, %v3519, %v3234
  %v3547 = vsel %vm1378, %v3521, %v3236
  %v3549 = vsel %vm1378, %v3523, %v3238
  %v3551 = vsel %vm1378, %v3525, %v3240
  %v3553 = vsel %vm1378, %v3527, %v3242
  %v3555 = vsel %vm1378, %v3529, %v3244
  %v3557 = vsel %vm1378, %v3531, %v3246
  %v3559 = vsel %vm1378, %v3533, %v3248
  %v3561 = vsel %vm1378, %v3535, %v3250
  %v3563 = vsel %vm1378, %v3537, %v3252
  %v3565 = vsel %vm1378, %v3539, %v3254
  %v3567 = vsel %vm1378, %v3541, %v3256
  %v3569 = vsel %vm1405, %v3543, %v3283
  %v3571 = vsel %vm1405, %v3545, %v3285
  %v3573 = vsel %vm1405, %v3547, %v3287
  %v3575 = vsel %vm1405, %v3549, %v3289
  %v3577 = vsel %vm1405, %v3551, %v3291
  %v3579 = vsel %vm1405, %v3553, %v3293
  %v3581 = vsel %vm1405, %v3555, %v3295
  %v3583 = vsel %vm1405, %v3557, %v3297
  %v3585 = vsel %vm1405, %v3559, %v3299
  %v3587 = vsel %vm1405, %v3561, %v3301
  %v3589 = vsel %vm1405, %v3563, %v3303
  %v3591 = vsel %vm1405, %v3565, %v3305
  %v3593 = vsel %vm1405, %v3567, %v3307
  %v3595 = vsel %vm1432, %v3569, %v3335
  %v3597 = vsel %vm1432, %v3571, %v3337
  %v3599 = vsel %vm1432, %v3573, %v3339
  %v3601 = vsel %vm1432, %v3575, %v3341
  %v3603 = vsel %vm1432, %v3577, %v3343
  %v3605 = vsel %vm1432, %v3579, %v3345
  %v3607 = vsel %vm1432, %v3581, %v3347
  %v3609 = vsel %vm1432, %v3583, %v3349
  %v3611 = vsel %vm1432, %v3585, %v3351
  %v3613 = vsel %vm1432, %v3587, %v3353
  %v3615 = vsel %vm1432, %v3589, %v3355
  %v3617 = vsel %vm1432, %v3591, %v3357
  %v3619 = vsel %vm1432, %v3593, %v3359
  %v3621 = vsel %vm1459, %v3595, %v3413
  %v3623 = vsel %vm1459, %v3597, %v3415
  %v3625 = vsel %vm1459, %v3599, %v3417
  %v3627 = vsel %vm1459, %v3601, %v3419
  %v3629 = vsel %vm1459, %v3603, %v3421
  %v3631 = vsel %vm1459, %v3605, %v3423
  %v3633 = vsel %vm1459, %v3607, %v3425
  %v3635 = vsel %vm1459, %v3609, %v3427
  %v3637 = vsel %vm1459, %v3611, %v3429
  %v3639 = vsel %vm1459, %v3613, %v3431
  %v3641 = vsel %vm1459, %v3615, %v3433
  %v3643 = vsel %vm1459, %v3617, %v3435
  %v3645 = vsel %vm1459, %v3619, %v3437
  %v3646 = vld [vmem:[%s12] sm:$0xf]
  %v3647 = vld [vmem:[%s12 + $0x4] sm:$0xf]
  %v3648 = vld [vmem:[%s12 + $0x8] sm:$0xf]
  %v3649 = vld [vmem:[%s12 + $0xc] sm:$0xf]
  %v3650 = vld [vmem:[%s12 + $0x10] sm:$0xf]
  %v3651 = vld [vmem:[%s12 + $0x14] sm:$0xf]
  %v3652 = vld [vmem:[%s12 + $0x18] sm:$0xf]
  %v3653 = vld [vmem:[%s12 + $0x1c] sm:$0xf]
  %v3654 = vld [vmem:[%s12 + $0x20] sm:$0xf]
  %v3655 = vld [vmem:[%s12 + $0x24] sm:$0xf]
  %v3656 = vld [vmem:[%s12 + $0x28] sm:$0xf]
  %v3657 = vld [vmem:[%s12 + $0x2c] sm:$0xf]
  %v3658 = vld [vmem:[%s12 + $0x30] sm:$0xf]
  %v3659 = vld [vmem:[%s12 + $0x34] sm:$0xf]
  %v3660 = vld [vmem:[%s12 + $0x38] sm:$0xf]
  %v3661 = vld [vmem:[%s12 + $0x3c] sm:$0xf]
  %v3662 = vld [vmem:[%s12 + $0x40] sm:$0xf]
  %v3663 = vld [vmem:[%s12 + $0x44] sm:$0xf]
  %v3664 = vld [vmem:[%s13] sm:$0x1]
  %v3666 = vlaneseq
  %v3667 = vshrl.u32 %v3666, 7
  %v3668 = vsub.s32 0, %v3667
  %v3669 = vrot.slane %v3664, %v3668
  %v3671 = vshrl.u32 %v3621, 16
  %v3673 = vrot.slane %v3671, 2
  %v3674 = vshll.u32 %v3621, 16
  %v3676 = vrot.slane %v3674, 3
  %v3677 = vor.u32 %v3673, %v3676
  %v3678 = vshrl.u32 %v3623, 16
  %v3680 = vrot.slane %v3678, 2
  %v3681 = vshll.u32 %v3623, 16
  %v3683 = vrot.slane %v3681, 3
  %v3684 = vor.u32 %v3680, %v3683
  %v3685 = vsel %vm1188, %v3677, %v3684
  %v3687 = vshrl.u32 %v3440, 16
  %v3689 = vrot.slane %v3687, 2
  %v3690 = vshll.u32 %v3440, 16
  %v3692 = vrot.slane %v3690, 3
  %v3693 = vor.u32 %v3689, %v3692
  %v3695 = vshrl.u32 %v3442, 16
  %v3697 = vrot.slane %v3695, 2
  %v3698 = vshll.u32 %v3442, 16
  %v3700 = vrot.slane %v3698, 3
  %v3701 = vor.u32 %v3697, %v3700
  %v3702 = vsel %vm1188, %v3693, %v3701
  %v3703 = vshrl.u32 %v3625, 16
  %v3705 = vrot.slane %v3703, 2
  %v3706 = vshll.u32 %v3625, 16
  %v3708 = vrot.slane %v3706, 3
  %v3709 = vor.u32 %v3705, %v3708
  %v3710 = vsel %vm1188, %v3684, %v3709
  %v3712 = vshrl.u32 %v3444, 16
  %v3714 = vrot.slane %v3712, 2
  %v3715 = vshll.u32 %v3444, 16
  %v3717 = vrot.slane %v3715, 3
  %v3718 = vor.u32 %v3714, %v3717
  %v3719 = vsel %vm1188, %v3701, %v3718
  %v3720 = vshrl.u32 %v3627, 16
  %v3722 = vrot.slane %v3720, 2
  %v3723 = vshll.u32 %v3627, 16
  %v3725 = vrot.slane %v3723, 3
  %v3726 = vor.u32 %v3722, %v3725
  %v3727 = vsel %vm1188, %v3709, %v3726
  %v3729 = vshrl.u32 %v3446, 16
  %v3731 = vrot.slane %v3729, 2
  %v3732 = vshll.u32 %v3446, 16
  %v3734 = vrot.slane %v3732, 3
  %v3735 = vor.u32 %v3731, %v3734
  %v3736 = vsel %vm1188, %v3718, %v3735
  %v3737 = vshrl.u32 %v3629, 16
  %v3739 = vrot.slane %v3737, 2
  %v3740 = vshll.u32 %v3629, 16
  %v3742 = vrot.slane %v3740, 3
  %v3743 = vor.u32 %v3739, %v3742
  %v3744 = vsel %vm1188, %v3726, %v3743
  %v3746 = vshrl.u32 %v3448, 16
  %v3748 = vrot.slane %v3746, 2
  %v3749 = vshll.u32 %v3448, 16
  %v3751 = vrot.slane %v3749, 3
  %v3752 = vor.u32 %v3748, %v3751
  %v3753 = vsel %vm1188, %v3735, %v3752
  %v3754 = vshrl.u32 %v3631, 16
  %v3756 = vrot.slane %v3754, 2
  %v3757 = vshll.u32 %v3631, 16
  %v3759 = vrot.slane %v3757, 3
  %v3760 = vor.u32 %v3756, %v3759
  %v3761 = vsel %vm1188, %v3743, %v3760
  %v3763 = vshrl.u32 %v3450, 16
  %v3765 = vrot.slane %v3763, 2
  %v3766 = vshll.u32 %v3450, 16
  %v3768 = vrot.slane %v3766, 3
  %v3769 = vor.u32 %v3765, %v3768
  %v3770 = vsel %vm1188, %v3752, %v3769
  %v3771 = vshrl.u32 %v3633, 16
  %v3773 = vrot.slane %v3771, 2
  %v3774 = vshll.u32 %v3633, 16
  %v3776 = vrot.slane %v3774, 3
  %v3777 = vor.u32 %v3773, %v3776
  %v3778 = vsel %vm1188, %v3760, %v3777
  %v3780 = vshrl.u32 %v3452, 16
  %v3782 = vrot.slane %v3780, 2
  %v3783 = vshll.u32 %v3452, 16
  %v3785 = vrot.slane %v3783, 3
  %v3786 = vor.u32 %v3782, %v3785
  %v3787 = vsel %vm1188, %v3769, %v3786
  %v3788 = vshrl.u32 %v3635, 16
  %v3790 = vrot.slane %v3788, 2
  %v3791 = vshll.u32 %v3635, 16
  %v3793 = vrot.slane %v3791, 3
  %v3794 = vor.u32 %v3790, %v3793
  %v3795 = vsel %vm1188, %v3777, %v3794
  %v3797 = vshrl.u32 %v3454, 16
  %v3799 = vrot.slane %v3797, 2
  %v3800 = vshll.u32 %v3454, 16
  %v3802 = vrot.slane %v3800, 3
  %v3803 = vor.u32 %v3799, %v3802
  %v3804 = vsel %vm1188, %v3786, %v3803
  %v3805 = vshrl.u32 %v3637, 16
  %v3807 = vrot.slane %v3805, 2
  %v3808 = vshll.u32 %v3637, 16
  %v3810 = vrot.slane %v3808, 3
  %v3811 = vor.u32 %v3807, %v3810
  %v3812 = vsel %vm1188, %v3794, %v3811
  %v3814 = vshrl.u32 %v3456, 16
  %v3816 = vrot.slane %v3814, 2
  %v3817 = vshll.u32 %v3456, 16
  %v3819 = vrot.slane %v3817, 3
  %v3820 = vor.u32 %v3816, %v3819
  %v3821 = vsel %vm1188, %v3803, %v3820
  %v3822 = vshrl.u32 %v3639, 16
  %v3824 = vrot.slane %v3822, 2
  %v3825 = vshll.u32 %v3639, 16
  %v3827 = vrot.slane %v3825, 3
  %v3828 = vor.u32 %v3824, %v3827
  %v3829 = vsel %vm1188, %v3811, %v3828
  %v3831 = vshrl.u32 %v3458, 16
  %v3833 = vrot.slane %v3831, 2
  %v3834 = vshll.u32 %v3458, 16
  %v3836 = vrot.slane %v3834, 3
  %v3837 = vor.u32 %v3833, %v3836
  %v3838 = vsel %vm1188, %v3820, %v3837
  %v3839 = vshrl.u32 %v3641, 16
  %v3841 = vrot.slane %v3839, 2
  %v3842 = vshll.u32 %v3641, 16
  %v3844 = vrot.slane %v3842, 3
  %v3845 = vor.u32 %v3841, %v3844
  %v3846 = vsel %vm1188, %v3828, %v3845
  %v3848 = vshrl.u32 %v3460, 16
  %v3850 = vrot.slane %v3848, 2
  %v3851 = vshll.u32 %v3460, 16
  %v3853 = vrot.slane %v3851, 3
  %v3854 = vor.u32 %v3850, %v3853
  %v3855 = vsel %vm1188, %v3837, %v3854
  %v3856 = vshrl.u32 %v3643, 16
  %v3858 = vrot.slane %v3856, 2
  %v3859 = vshll.u32 %v3643, 16
  %v3861 = vrot.slane %v3859, 3
  %v3862 = vor.u32 %v3858, %v3861
  %v3863 = vsel %vm1188, %v3845, %v3862
  %v3865 = vshrl.u32 %v3462, 16
  %v3867 = vrot.slane %v3865, 2
  %v3868 = vshll.u32 %v3462, 16
  %v3870 = vrot.slane %v3868, 3
  %v3871 = vor.u32 %v3867, %v3870
  %v3872 = vsel %vm1188, %v3854, %v3871
  %v3873 = vshrl.u32 %v3645, 16
  %v3875 = vrot.slane %v3873, 2
  %v3876 = vshll.u32 %v3645, 16
  %v3878 = vrot.slane %v3876, 3
  %v3879 = vor.u32 %v3875, %v3878
  %v3880 = vsel %vm1188, %v3862, %v3879
  %v3882 = vshrl.u32 %v3463, 16
  %v3884 = vrot.slane %v3882, 2
  %v3885 = vshll.u32 %v3463, 16
  %v3887 = vrot.slane %v3885, 3
  %v3888 = vor.u32 %v3884, %v3887
  %v3889 = vsel %vm1188, %v3871, %v3888
  %v3921 = vunpack.c.l.b16 %v3646
  %v3922 = vunpack.c.l.b16 %v3647
  %v3923 = vunpack.c.l.b16 %v3648
  %v3924 = vunpack.c.l.b16 %v3649
  %v3925 = vunpack.c.l.b16 %v3650
  %v3926 = vunpack.c.l.b16 %v3651
  %v3927 = vunpack.c.l.b16 %v3652
  %v3928 = vunpack.c.l.b16 %v3653
  %v3929 = vunpack.c.l.b16 %v3654
  %v3930 = vunpack.c.l.b16 %v3655
  %v3931 = vunpack.c.l.b16 %v3656
  %v3932 = vunpack.c.l.b16 %v3657
  %v3933 = vunpack.c.l.b16 %v3658
  %v3934 = vunpack.c.l.b16 %v3659
  %v3935 = vunpack.c.l.b16 %v3660
  %v3936 = vunpack.c.l.b16 %v3661
  %v3937 = vunpack.c.l.b16 %v3662
  %v3938 = vunpack.c.l.b16 %v3663
  %v3939 = vpack.c.b16 %v3922, %v3921
  %v3940 = vpack.c.b16 %v3924, %v3923
  %v3941 = vpack.c.b16 %v3926, %v3925
  %v3942 = vpack.c.b16 %v3928, %v3927
  %v3943 = vpack.c.b16 %v3930, %v3929
  %v3944 = vpack.c.b16 %v3932, %v3931
  %v3945 = vpack.c.b16 %v3934, %v3933
  %v3946 = vpack.c.b16 %v3936, %v3935
  %v3947 = vpack.c.b16 %v3938, %v3937
  %v3958 = vsel %vm1298, %v3702, 0
  %v3961 = vsel %vm1298, %v3719, 0
  %v3964 = vsel %vm1298, %v3736, 0
  %v3967 = vsel %vm1298, %v3753, 0
  %v3970 = vsel %vm1298, %v3770, 0
  %v3973 = vsel %vm1298, %v3787, 0
  %v3976 = vsel %vm1298, %v3804, 0
  %v3979 = vsel %vm1298, %v3821, 0
  %v3982 = vsel %vm1298, %v3838, 0
  %v3985 = vsel %vm1298, %v3855, 0
  %v3988 = vsel %vm1298, %v3872, 0
  %v3991 = vsel %vm1298, %v3889, 0
  %v3994 = vsel %vm1298, %v3888, 0
  %3996 = vmatprep.subr.bf16.mxu0 0
  %3997 = vmatpush1.bf16.msra.mxu0 %v3939
  %3998 = vmatprep.subr.bf16.mxu0 0
  %3999 = vmatpush1.bf16.msra.mxu0 %v3940
  %4000 = vmatprep.subr.bf16.mxu0 0
  %4001 = vmatpush1.bf16.msra.mxu0 %v3941
  %4002 = vmatprep.subr.bf16.mxu0 0
  %4003 = vmatpush1.bf16.msra.mxu0 %v3942
  %4004 = vmatprep.subr.bf16.mxu0 0
  %4005 = vmatpush1.bf16.msra.mxu0 %v3943
  %4006 = vmatprep.subr.bf16.mxu0 0
  %4007 = vmatpush1.bf16.msra.mxu0 %v3944
  %4008 = vmatprep.subr.bf16.mxu0 0
  %4009 = vmatpush1.bf16.msra.mxu0 %v3945
  %4010 = vmatprep.subr.bf16.mxu0 0
  %4011 = vmatpush1.bf16.msra.mxu0 %v3946
  %4012 = vmatprep.subr.bf16.mxu0 0
  %4013 = vmatpush1.bf16.msra.mxu0 %v3947
  %4014 = vmatprep.subr.bf16.mxu0 0
  %4015 = vmatpush1.bf16.msra.mxu0 0
  %4016 = vmatprep.subr.bf16.mxu0 0
  %4017 = vmatpush1.bf16.msra.mxu0 0
  %4018 = vmatprep.subr.bf16.mxu0 0
  %4019 = vmatpush1.bf16.msra.mxu0 0
  %4020 = vmatprep.subr.bf16.mxu0 0
  %4021 = vmatpush1.bf16.msra.mxu0 0
  %4022 = vmatprep.subr.bf16.mxu0 0
  %4023 = vmatpush1.bf16.msra.mxu0 0
  %4024 = vmatprep.subr.bf16.mxu0 0
  %4025 = vmatpush1.bf16.msra.mxu0 0
  %4026 = vmatprep.subr.bf16.mxu0 0
  %4027 = vmatpush1.bf16.msra.mxu0 0
  %4028 = vmatprep.mubr.bf16.mxu0 %v3958
  %4029 = vmatmul.mubr.bf16.gmra.mrb[0].mxu0 %v3685
  %v4030 = vpop.f32.mrb[0].mxu0
  %v4031 = vadd.f32 %v3669, %v4030
  %v4032 = vpop.f32.mrb[0].mxu0
  %v4033 = vpop.f32.mrb[0].mxu0
  %v4034 = vadd.f32 %v3669, %v4033
  %v4035 = vpop.f32.mrb[0].mxu0
  %4036 = vmatprep.mubr.bf16.mxu0 %v3961
  %4037 = vmatmul.mubr.bf16.gmra.mrb[0].mxu0 %v3710
  %v4038 = vpop.f32.mrb[0].mxu0
  %v4039 = vadd.f32 %v3669, %v4038
  %v4040 = vpop.f32.mrb[0].mxu0
  %v4041 = vpop.f32.mrb[0].mxu0
  %v4042 = vadd.f32 %v3669, %v4041
  %v4043 = vpop.f32.mrb[0].mxu0
  %4044 = vmatprep.mubr.bf16.mxu0 %v3964
  %4045 = vmatmul.mubr.bf16.gmra.mrb[0].mxu0 %v3727
  %v4046 = vpop.f32.mrb[0].mxu0
  %v4047 = vadd.f32 %v3669, %v4046
  %v4048 = vpop.f32.mrb[0].mxu0
  %v4049 = vpop.f32.mrb[0].mxu0
  %v4050 = vadd.f32 %v3669, %v4049
  %v4051 = vpop.f32.mrb[0].mxu0
  %4052 = vmatprep.mubr.bf16.mxu0 %v3967
  %4053 = vmatmul.mubr.bf16.gmra.mrb[0].mxu0 %v3744
  %v4054 = vpop.f32.mrb[0].mxu0
  %v4055 = vadd.f32 %v3669, %v4054
  %v4056 = vpop.f32.mrb[0].mxu0
  %v4057 = vpop.f32.mrb[0].mxu0
  %v4058 = vadd.f32 %v3669, %v4057
  %v4059 = vpop.f32.mrb[0].mxu0
  %4060 = vmatprep.mubr.bf16.mxu0 %v3970
  %4061 = vmatmul.mubr.bf16.gmra.mrb[0].mxu0 %v3761
  %v4062 = vpop.f32.mrb[0].mxu0
  %v4063 = vadd.f32 %v3669, %v4062
  %v4064 = vpop.f32.mrb[0].mxu0
  %v4065 = vpop.f32.mrb[0].mxu0
  %v4066 = vadd.f32 %v3669, %v4065
  %v4067 = vpop.f32.mrb[0].mxu0
  %4068 = vmatprep.mubr.bf16.mxu0 %v3973
  %4069 = vmatmul.mubr.bf16.gmra.mrb[0].mxu0 %v3778
  %v4070 = vpop.f32.mrb[0].mxu0
  %v4071 = vadd.f32 %v3669, %v4070
  %v4072 = vpop.f32.mrb[0].mxu0
  %v4073 = vpop.f32.mrb[0].mxu0
  %v4074 = vadd.f32 %v3669, %v4073
  %v4075 = vpop.f32.mrb[0].mxu0
  %4076 = vmatprep.mubr.bf16.mxu0 %v3976
  %4077 = vmatmul.mubr.bf16.gmra.mrb[0].mxu0 %v3795
  %v4078 = vpop.f32.mrb[0].mxu0
  %v4079 = vadd.f32 %v3669, %v4078
  %v4080 = vpop.f32.mrb[0].mxu0
  %v4081 = vpop.f32.mrb[0].mxu0
  %v4082 = vadd.f32 %v3669, %v4081
  %v4083 = vpop.f32.mrb[0].mxu0
  %4084 = vmatprep.mubr.bf16.mxu0 %v3979
  %4085 = vmatmul.mubr.bf16.gmra.mrb[0].mxu0 %v3812
  %v4086 = vpop.f32.mrb[0].mxu0
  %v4087 = vadd.f32 %v3669, %v4086
  %v4088 = vpop.f32.mrb[0].mxu0
  %v4089 = vpop.f32.mrb[0].mxu0
  %v4090 = vadd.f32 %v3669, %v4089
  %v4091 = vpop.f32.mrb[0].mxu0
  %4092 = vmatprep.mubr.bf16.mxu0 %v3982
  %4093 = vmatmul.mubr.bf16.gmra.mrb[0].mxu0 %v3829
  %v4094 = vpop.f32.mrb[0].mxu0
  %v4095 = vadd.f32 %v3669, %v4094
  %v4096 = vpop.f32.mrb[0].mxu0
  %v4097 = vpop.f32.mrb[0].mxu0
  %v4098 = vadd.f32 %v3669, %v4097
  %v4099 = vpop.f32.mrb[0].mxu0
  %4100 = vmatprep.mubr.bf16.mxu0 %v3985
  %4101 = vmatmul.mubr.bf16.gmra.mrb[0].mxu0 %v3846
  %v4102 = vpop.f32.mrb[0].mxu0
  %v4103 = vadd.f32 %v3669, %v4102
  %v4104 = vpop.f32.mrb[0].mxu0
  %v4105 = vpop.f32.mrb[0].mxu0
  %v4106 = vadd.f32 %v3669, %v4105
  %v4107 = vpop.f32.mrb[0].mxu0
  %4108 = vmatprep.mubr.bf16.mxu0 %v3988
  %4109 = vmatmul.mubr.bf16.gmra.mrb[0].mxu0 %v3863
  %v4110 = vpop.f32.mrb[0].mxu0
  %v4111 = vadd.f32 %v3669, %v4110
  %v4112 = vpop.f32.mrb[0].mxu0
  %v4113 = vpop.f32.mrb[0].mxu0
  %v4114 = vadd.f32 %v3669, %v4113
  %v4115 = vpop.f32.mrb[0].mxu0
  %4116 = vmatprep.mubr.bf16.mxu0 %v3991
  %4117 = vmatmul.mubr.bf16.gmra.mrb[0].mxu0 %v3880
  %v4118 = vpop.f32.mrb[0].mxu0
  %v4119 = vadd.f32 %v3669, %v4118
  %v4120 = vpop.f32.mrb[0].mxu0
  %v4121 = vpop.f32.mrb[0].mxu0
  %v4122 = vadd.f32 %v3669, %v4121
  %v4123 = vpop.f32.mrb[0].mxu0
  %4124 = vmatprep.mubr.bf16.mxu0 %v3994
  %4125 = vmatmul.mubr.bf16.gmra.mrb[0].mxu0 %v3879
  %v4126 = vpop.f32.mrb[0].mxu0
  %v4127 = vadd.f32 %v3669, %v4126
  %v4128 = vpop.f32.mrb[0].mxu0
  %v4129 = vpop.f32.mrb[0].mxu0
  %v4130 = vpop.f32.mrb[0].mxu0
  %4131 = vdwg.mxu0
  %v4132 = vmax.f32 %v4031, 0.0
  %v4133 = vmax.f32 %v4034, 0.0
  %v4134 = vmax.f32 %v4039, 0.0
  %v4135 = vmax.f32 %v4042, 0.0
  %v4136 = vmax.f32 %v4047, 0.0
  %v4137 = vmax.f32 %v4050, 0.0
  %v4138 = vmax.f32 %v4055, 0.0
  %v4139 = vmax.f32 %v4058, 0.0
  %v4140 = vmax.f32 %v4063, 0.0
  %v4141 = vmax.f32 %v4066, 0.0
  %v4142 = vmax.f32 %v4071, 0.0
  %v4143 = vmax.f32 %v4074, 0.0
  %v4144 = vmax.f32 %v4079, 0.0
  %v4145 = vmax.f32 %v4082, 0.0
  %v4146 = vmax.f32 %v4087, 0.0
  %v4147 = vmax.f32 %v4090, 0.0
  %v4148 = vmax.f32 %v4095, 0.0
  %v4149 = vmax.f32 %v4098, 0.0
  %v4150 = vmax.f32 %v4103, 0.0
  %v4151 = vmax.f32 %v4106, 0.0
  %v4152 = vmax.f32 %v4111, 0.0
  %v4153 = vmax.f32 %v4114, 0.0
  %v4154 = vmax.f32 %v4119, 0.0
  %v4155 = vmax.f32 %v4122, 0.0
  %v4156 = vmax.f32 %v4127, 0.0
  %v4157 = vmin.f32 %v4132, 20.0
  %v4158 = vmin.f32 %v4133, 20.0
  %v4159 = vmin.f32 %v4134, 20.0
  %v4160 = vmin.f32 %v4135, 20.0
  %v4161 = vmin.f32 %v4136, 20.0
  %v4162 = vmin.f32 %v4137, 20.0
  %v4163 = vmin.f32 %v4138, 20.0
  %v4164 = vmin.f32 %v4139, 20.0
  %v4165 = vmin.f32 %v4140, 20.0
  %v4166 = vmin.f32 %v4141, 20.0
  %v4167 = vmin.f32 %v4142, 20.0
  %v4168 = vmin.f32 %v4143, 20.0
  %v4169 = vmin.f32 %v4144, 20.0
  %v4170 = vmin.f32 %v4145, 20.0
  %v4171 = vmin.f32 %v4146, 20.0
  %v4172 = vmin.f32 %v4147, 20.0
  %v4173 = vmin.f32 %v4148, 20.0
  %v4174 = vmin.f32 %v4149, 20.0
  %v4175 = vmin.f32 %v4150, 20.0
  %v4176 = vmin.f32 %v4151, 20.0
  %v4177 = vmin.f32 %v4152, 20.0
  %v4178 = vmin.f32 %v4153, 20.0
  %v4179 = vmin.f32 %v4154, 20.0
  %v4180 = vmin.f32 %v4155, 20.0
  %v4181 = vmin.f32 %v4156, 20.0
  %v4182 = vpack.c.bf16 %v4158, %v4157
  %v4183 = vpack.c.bf16 %v4160, %v4159
  %v4184 = vpack.c.bf16 %v4162, %v4161
  %v4185 = vpack.c.bf16 %v4164, %v4163
  %v4186 = vpack.c.bf16 %v4166, %v4165
  %v4187 = vpack.c.bf16 %v4168, %v4167
  %v4188 = vpack.c.bf16 %v4170, %v4169
  %v4189 = vpack.c.bf16 %v4172, %v4171
  %v4190 = vpack.c.bf16 %v4174, %v4173
  %v4191 = vpack.c.bf16 %v4176, %v4175
  %v4192 = vpack.c.bf16 %v4178, %v4177
  %v4193 = vpack.c.bf16 %v4180, %v4179
  %v4194 = vpack.c.bf16 %v4181, %v4181
  %v4195 = vld [vmem:[%s15] sm:$0xf]
  %v4196 = vld [vmem:[%s15 + $0x4] sm:$0xf]
  %v4199 = vunpack.c.l.b16 %v4195
  %v4200 = vunpack.c.l.b16 %v4196
  %v4201 = vpack.c.b16 %v4200, %v4199
  %v4204 = vsel %vm1298, %v4182, 0
  %v4207 = vsel %vm1298, %v4183, 0
  %v4210 = vsel %vm1298, %v4184, 0
  %v4213 = vsel %vm1298, %v4185, 0
  %v4216 = vsel %vm1298, %v4186, 0
  %v4219 = vsel %vm1298, %v4187, 0
  %v4222 = vsel %vm1298, %v4188, 0
  %v4225 = vsel %vm1298, %v4189, 0
  %v4228 = vsel %vm1298, %v4190, 0
  %v4231 = vsel %vm1298, %v4191, 0
  %v4234 = vsel %vm1298, %v4192, 0
  %v4237 = vsel %vm1298, %v4193, 0
  %v4240 = vsel %vm1298, %v4194, 0
  %4242 = vmatprep.subr.bf16.mxu0 0
  %4243 = vmatpush1.bf16.msra.mxu0 %v4201
  %4244 = vmatprep.subr.bf16.mxu0 0
  %4245 = vmatpush1.bf16.msra.mxu0 0
  %4246 = vmatprep.subr.bf16.mxu0 0
  %4247 = vmatpush1.bf16.msra.mxu0 0
  %4248 = vmatprep.subr.bf16.mxu0 0
  %4249 = vmatpush1.bf16.msra.mxu0 0
  %4250 = vmatprep.subr.bf16.mxu0 0
  %4251 = vmatpush1.bf16.msra.mxu0 0
  %4252 = vmatprep.subr.bf16.mxu0 0
  %4253 = vmatpush1.bf16.msra.mxu0 0
  %4254 = vmatprep.subr.bf16.mxu0 0
  %4255 = vmatpush1.bf16.msra.mxu0 0
  %4256 = vmatprep.subr.bf16.mxu0 0
  %4257 = vmatpush1.bf16.msra.mxu0 0
  %4258 = vmatprep.subr.bf16.mxu0 0
  %4259 = vmatpush1.bf16.msra.mxu0 0
  %4260 = vmatprep.subr.bf16.mxu0 0
  %4261 = vmatpush1.bf16.msra.mxu0 0
  %4262 = vmatprep.subr.bf16.mxu0 0
  %4263 = vmatpush1.bf16.msra.mxu0 0
  %4264 = vmatprep.subr.bf16.mxu0 0
  %4265 = vmatpush1.bf16.msra.mxu0 0
  %4266 = vmatprep.subr.bf16.mxu0 0
  %4267 = vmatpush1.bf16.msra.mxu0 0
  %4268 = vmatprep.subr.bf16.mxu0 0
  %4269 = vmatpush1.bf16.msra.mxu0 0
  %4270 = vmatprep.subr.bf16.mxu0 0
  %4271 = vmatpush1.bf16.msra.mxu0 0
  %4272 = vmatprep.subr.bf16.mxu0 0
  %4273 = vmatpush1.bf16.msra.mxu0 0
  %4274 = vmatprep.mubr.bf16.mxu0 0
  %4275 = vmatmul.mubr.bf16.gmra.mrb[0].mxu0 %v4204
  %v4276 = vpop.f32.mrb[0].mxu0
  %v4277 = vadd.f32 0.0, %v4276
  %v4278 = vpop.f32.mrb[0].mxu0
  %v4279 = vpop.f32.mrb[0].mxu0
  %v4280 = vadd.f32 0.0, %v4279
  %v4281 = vpop.f32.mrb[0].mxu0
  %4282 = vmatprep.mubr.bf16.mxu0 0
  %4283 = vmatmul.mubr.bf16.gmra.mrb[0].mxu0 %v4207
  %v4284 = vpop.f32.mrb[0].mxu0
  %v4285 = vadd.f32 0.0, %v4284
  %v4286 = vpop.f32.mrb[0].mxu0
  %v4287 = vpop.f32.mrb[0].mxu0
  %v4288 = vadd.f32 0.0, %v4287
  %v4289 = vpop.f32.mrb[0].mxu0
  %4290 = vmatprep.mubr.bf16.mxu0 0
  %4291 = vmatmul.mubr.bf16.gmra.mrb[0].mxu0 %v4210
  %v4292 = vpop.f32.mrb[0].mxu0
  %v4293 = vadd.f32 0.0, %v4292
  %v4294 = vpop.f32.mrb[0].mxu0
  %v4295 = vpop.f32.mrb[0].mxu0
  %v4296 = vadd.f32 0.0, %v4295
  %v4297 = vpop.f32.mrb[0].mxu0
  %4298 = vmatprep.mubr.bf16.mxu0 0
  %4299 = vmatmul.mubr.bf16.gmra.mrb[0].mxu0 %v4213
  %v4300 = vpop.f32.mrb[0].mxu0
  %v4301 = vadd.f32 0.0, %v4300
  %v4302 = vpop.f32.mrb[0].mxu0
  %v4303 = vpop.f32.mrb[0].mxu0
  %v4304 = vadd.f32 0.0, %v4303
  %v4305 = vpop.f32.mrb[0].mxu0
  %4306 = vmatprep.mubr.bf16.mxu0 0
  %4307 = vmatmul.mubr.bf16.gmra.mrb[0].mxu0 %v4216
  %v4308 = vpop.f32.mrb[0].mxu0
  %v4309 = vadd.f32 0.0, %v4308
  %v4310 = vpop.f32.mrb[0].mxu0
  %v4311 = vpop.f32.mrb[0].mxu0
  %v4312 = vadd.f32 0.0, %v4311
  %v4313 = vpop.f32.mrb[0].mxu0
  %4314 = vmatprep.mubr.bf16.mxu0 0
  %4315 = vmatmul.mubr.bf16.gmra.mrb[0].mxu0 %v4219
  %v4316 = vpop.f32.mrb[0].mxu0
  %v4317 = vadd.f32 0.0, %v4316
  %v4318 = vpop.f32.mrb[0].mxu0
  %v4319 = vpop.f32.mrb[0].mxu0
  %v4320 = vadd.f32 0.0, %v4319
  %v4321 = vpop.f32.mrb[0].mxu0
  %4322 = vmatprep.mubr.bf16.mxu0 0
  %4323 = vmatmul.mubr.bf16.gmra.mrb[0].mxu0 %v4222
  %v4324 = vpop.f32.mrb[0].mxu0
  %v4325 = vadd.f32 0.0, %v4324
  %v4326 = vpop.f32.mrb[0].mxu0
  %v4327 = vpop.f32.mrb[0].mxu0
  %v4328 = vadd.f32 0.0, %v4327
  %v4329 = vpop.f32.mrb[0].mxu0
  %4330 = vmatprep.mubr.bf16.mxu0 0
  %4331 = vmatmul.mubr.bf16.gmra.mrb[0].mxu0 %v4225
  %v4332 = vpop.f32.mrb[0].mxu0
  %v4333 = vadd.f32 0.0, %v4332
  %v4334 = vpop.f32.mrb[0].mxu0
  %v4335 = vpop.f32.mrb[0].mxu0
  %v4336 = vadd.f32 0.0, %v4335
  %v4337 = vpop.f32.mrb[0].mxu0
  %4338 = vmatprep.mubr.bf16.mxu0 0
  %4339 = vmatmul.mubr.bf16.gmra.mrb[0].mxu0 %v4228
  %v4340 = vpop.f32.mrb[0].mxu0
  %v4341 = vadd.f32 0.0, %v4340
  %v4342 = vpop.f32.mrb[0].mxu0
  %v4343 = vpop.f32.mrb[0].mxu0
  %v4344 = vadd.f32 0.0, %v4343
  %v4345 = vpop.f32.mrb[0].mxu0
  %4346 = vmatprep.mubr.bf16.mxu0 0
  %4347 = vmatmul.mubr.bf16.gmra.mrb[0].mxu0 %v4231
  %v4348 = vpop.f32.mrb[0].mxu0
  %v4349 = vadd.f32 0.0, %v4348
  %v4350 = vpop.f32.mrb[0].mxu0
  %v4351 = vpop.f32.mrb[0].mxu0
  %v4352 = vadd.f32 0.0, %v4351
  %v4353 = vpop.f32.mrb[0].mxu0
  %4354 = vmatprep.mubr.bf16.mxu0 0
  %4355 = vmatmul.mubr.bf16.gmra.mrb[0].mxu0 %v4234
  %v4356 = vpop.f32.mrb[0].mxu0
  %v4357 = vadd.f32 0.0, %v4356
  %v4358 = vpop.f32.mrb[0].mxu0
  %v4359 = vpop.f32.mrb[0].mxu0
  %v4360 = vadd.f32 0.0, %v4359
  %v4361 = vpop.f32.mrb[0].mxu0
  %4362 = vmatprep.mubr.bf16.mxu0 0
  %4363 = vmatmul.mubr.bf16.gmra.mrb[0].mxu0 %v4237
  %v4364 = vpop.f32.mrb[0].mxu0
  %v4365 = vadd.f32 0.0, %v4364
  %v4366 = vpop.f32.mrb[0].mxu0
  %v4367 = vpop.f32.mrb[0].mxu0
  %v4368 = vadd.f32 0.0, %v4367
  %v4369 = vpop.f32.mrb[0].mxu0
  %4370 = vmatprep.mubr.bf16.mxu0 0
  %4371 = vmatmul.mubr.bf16.gmra.mrb[0].mxu0 %v4240
  %v4372 = vpop.f32.mrb[0].mxu0
  %v4373 = vadd.f32 0.0, %v4372
  %v4374 = vpop.f32.mrb[0].mxu0
  %v4375 = vpop.f32.mrb[0].mxu0
  %v4376 = vpop.f32.mrb[0].mxu0
  %4377 = vdwg.mxu0
  %v4380 = vunpack.c.l.b16 %v2035
  %v4381 = vunpack.c.l.b16 %v2036
  %v4382 = vpack.c.b16 %v4381, %v4380
  %v4385 = vsel %vm1298, %v2022, 0
  %v4388 = vsel %vm1298, %v2023, 0
  %v4391 = vsel %vm1298, %v2024, 0
  %v4394 = vsel %vm1298, %v2025, 0
  %v4397 = vsel %vm1298, %v2026, 0
  %v4400 = vsel %vm1298, %v2027, 0
  %v4403 = vsel %vm1298, %v2028, 0
  %v4406 = vsel %vm1298, %v2029, 0
  %v4409 = vsel %vm1298, %v2030, 0
  %v4412 = vsel %vm1298, %v2031, 0
  %v4415 = vsel %vm1298, %v2032, 0
  %v4418 = vsel %vm1298, %v2033, 0
  %v4421 = vsel %vm1298, %v2034, 0
  %4423 = vmatprep.subr.bf16.mxu0 0
  %4424 = vmatpush1.bf16.msra.mxu0 %v4382
  %4425 = vmatprep.subr.bf16.mxu0 0
  %4426 = vmatpush1.bf16.msra.mxu0 0
  %4427 = vmatprep.subr.bf16.mxu0 0
  %4428 = vmatpush1.bf16.msra.mxu0 0
  %4429 = vmatprep.subr.bf16.mxu0 0
  %4430 = vmatpush1.bf16.msra.mxu0 0
  %4431 = vmatprep.subr.bf16.mxu0 0
  %4432 = vmatpush1.bf16.msra.mxu0 0
  %4433 = vmatprep.subr.bf16.mxu0 0
  %4434 = vmatpush1.bf16.msra.mxu0 0
  %4435 = vmatprep.subr.bf16.mxu0 0
  %4436 = vmatpush1.bf16.msra.mxu0 0
  %4437 = vmatprep.subr.bf16.mxu0 0
  %4438 = vmatpush1.bf16.msra.mxu0 0
  %4439 = vmatprep.subr.bf16.mxu0 0
  %4440 = vmatpush1.bf16.msra.mxu0 0
  %4441 = vmatprep.subr.bf16.mxu0 0
  %4442 = vmatpush1.bf16.msra.mxu0 0
  %4443 = vmatprep.subr.bf16.mxu0 0
  %4444 = vmatpush1.bf16.msra.mxu0 0
  %4445 = vmatprep.subr.bf16.mxu0 0
  %4446 = vmatpush1.bf16.msra.mxu0 0
  %4447 = vmatprep.subr.bf16.mxu0 0
  %4448 = vmatpush1.bf16.msra.mxu0 0
  %4449 = vmatprep.subr.bf16.mxu0 0
  %4450 = vmatpush1.bf16.msra.mxu0 0
  %4451 = vmatprep.subr.bf16.mxu0 0
  %4452 = vmatpush1.bf16.msra.mxu0 0
  %4453 = vmatprep.subr.bf16.mxu0 0
  %4454 = vmatpush1.bf16.msra.mxu0 0
  %4455 = vmatprep.mubr.bf16.mxu0 0
  %4456 = vmatmul.mubr.bf16.gmra.mrb[0].mxu0 %v4385
  %v4457 = vpop.f32.mrb[0].mxu0
  %v4458 = vadd.f32 %v4277, %v4457
  %v4459 = vpop.f32.mrb[0].mxu0
  %v4460 = vpop.f32.mrb[0].mxu0
  %v4461 = vadd.f32 %v4280, %v4460
  %v4462 = vpop.f32.mrb[0].mxu0
  %4463 = vmatprep.mubr.bf16.mxu0 0
  %4464 = vmatmul.mubr.bf16.gmra.mrb[0].mxu0 %v4388
  %v4465 = vpop.f32.mrb[0].mxu0
  %v4466 = vadd.f32 %v4285, %v4465
  %v4467 = vpop.f32.mrb[0].mxu0
  %v4468 = vpop.f32.mrb[0].mxu0
  %v4469 = vadd.f32 %v4288, %v4468
  %v4470 = vpop.f32.mrb[0].mxu0
  %4471 = vmatprep.mubr.bf16.mxu0 0
  %4472 = vmatmul.mubr.bf16.gmra.mrb[0].mxu0 %v4391
  %v4473 = vpop.f32.mrb[0].mxu0
  %v4474 = vadd.f32 %v4293, %v4473
  %v4475 = vpop.f32.mrb[0].mxu0
  %v4476 = vpop.f32.mrb[0].mxu0
  %v4477 = vadd.f32 %v4296, %v4476
  %v4478 = vpop.f32.mrb[0].mxu0
  %4479 = vmatprep.mubr.bf16.mxu0 0
  %4480 = vmatmul.mubr.bf16.gmra.mrb[0].mxu0 %v4394
  %v4481 = vpop.f32.mrb[0].mxu0
  %v4482 = vadd.f32 %v4301, %v4481
  %v4483 = vpop.f32.mrb[0].mxu0
  %v4484 = vpop.f32.mrb[0].mxu0
  %v4485 = vadd.f32 %v4304, %v4484
  %v4486 = vpop.f32.mrb[0].mxu0
  %4487 = vmatprep.mubr.bf16.mxu0 0
  %4488 = vmatmul.mubr.bf16.gmra.mrb[0].mxu0 %v4397
  %v4489 = vpop.f32.mrb[0].mxu0
  %v4490 = vadd.f32 %v4309, %v4489
  %v4491 = vpop.f32.mrb[0].mxu0
  %v4492 = vpop.f32.mrb[0].mxu0
  %v4493 = vadd.f32 %v4312, %v4492
  %v4494 = vpop.f32.mrb[0].mxu0
  %4495 = vmatprep.mubr.bf16.mxu0 0
  %4496 = vmatmul.mubr.bf16.gmra.mrb[0].mxu0 %v4400
  %v4497 = vpop.f32.mrb[0].mxu0
  %v4498 = vadd.f32 %v4317, %v4497
  %v4499 = vpop.f32.mrb[0].mxu0
  %v4500 = vpop.f32.mrb[0].mxu0
  %v4501 = vadd.f32 %v4320, %v4500
  %v4502 = vpop.f32.mrb[0].mxu0
  %4503 = vmatprep.mubr.bf16.mxu0 0
  %4504 = vmatmul.mubr.bf16.gmra.mrb[0].mxu0 %v4403
  %v4505 = vpop.f32.mrb[0].mxu0
  %v4506 = vadd.f32 %v4325, %v4505
  %v4507 = vpop.f32.mrb[0].mxu0
  %v4508 = vpop.f32.mrb[0].mxu0
  %v4509 = vadd.f32 %v4328, %v4508
  %v4510 = vpop.f32.mrb[0].mxu0
  %4511 = vmatprep.mubr.bf16.mxu0 0
  %4512 = vmatmul.mubr.bf16.gmra.mrb[0].mxu0 %v4406
  %v4513 = vpop.f32.mrb[0].mxu0
  %v4514 = vadd.f32 %v4333, %v4513
  %v4515 = vpop.f32.mrb[0].mxu0
  %v4516 = vpop.f32.mrb[0].mxu0
  %v4517 = vadd.f32 %v4336, %v4516
  %v4518 = vpop.f32.mrb[0].mxu0
  %4519 = vmatprep.mubr.bf16.mxu0 0
  %4520 = vmatmul.mubr.bf16.gmra.mrb[0].mxu0 %v4409
  %v4521 = vpop.f32.mrb[0].mxu0
  %v4522 = vadd.f32 %v4341, %v4521
  %v4523 = vpop.f32.mrb[0].mxu0
  %v4524 = vpop.f32.mrb[0].mxu0
  %v4525 = vadd.f32 %v4344, %v4524
  %v4526 = vpop.f32.mrb[0].mxu0
  %4527 = vmatprep.mubr.bf16.mxu0 0
  %4528 = vmatmul.mubr.bf16.gmra.mrb[0].mxu0 %v4412
  %v4529 = vpop.f32.mrb[0].mxu0
  %v4530 = vadd.f32 %v4349, %v4529
  %v4531 = vpop.f32.mrb[0].mxu0
  %v4532 = vpop.f32.mrb[0].mxu0
  %v4533 = vadd.f32 %v4352, %v4532
  %v4534 = vpop.f32.mrb[0].mxu0
  %4535 = vmatprep.mubr.bf16.mxu0 0
  %4536 = vmatmul.mubr.bf16.gmra.mrb[0].mxu0 %v4415
  %v4537 = vpop.f32.mrb[0].mxu0
  %v4538 = vadd.f32 %v4357, %v4537
  %v4539 = vpop.f32.mrb[0].mxu0
  %v4540 = vpop.f32.mrb[0].mxu0
  %v4541 = vadd.f32 %v4360, %v4540
  %v4542 = vpop.f32.mrb[0].mxu0
  %4543 = vmatprep.mubr.bf16.mxu0 0
  %4544 = vmatmul.mubr.bf16.gmra.mrb[0].mxu0 %v4418
  %v4545 = vpop.f32.mrb[0].mxu0
  %v4546 = vadd.f32 %v4365, %v4545
  %v4547 = vpop.f32.mrb[0].mxu0
  %v4548 = vpop.f32.mrb[0].mxu0
  %v4549 = vadd.f32 %v4368, %v4548
  %v4550 = vpop.f32.mrb[0].mxu0
  %4551 = vmatprep.mubr.bf16.mxu0 0
  %4552 = vmatmul.mubr.bf16.gmra.mrb[0].mxu0 %v4421
  %v4553 = vpop.f32.mrb[0].mxu0
  %v4554 = vadd.f32 %v4373, %v4553
  %v4555 = vpop.f32.mrb[0].mxu0
  %v4556 = vpop.f32.mrb[0].mxu0
  %v4557 = vpop.f32.mrb[0].mxu0
  %4558 = vdwg.mxu0
  %v4559 = vld [vmem:[%s16] sm:$0x1]
  %v4561 = vlaneseq
  %v4562 = vshrl.u32 %v4561, 7
  %v4563 = vsub.s32 0, %v4562
  %v4564 = vrot.slane %v4559, %v4563
  %v4566 = vadd.f32 %v4458, %v4564
  %v4567 = vadd.f32 %v4461, %v4564
  %v4568 = vadd.f32 %v4466, %v4564
  %v4569 = vadd.f32 %v4469, %v4564
  %v4570 = vadd.f32 %v4474, %v4564
  %v4571 = vadd.f32 %v4477, %v4564
  %v4572 = vadd.f32 %v4482, %v4564
  %v4573 = vadd.f32 %v4485, %v4564
  %v4574 = vadd.f32 %v4490, %v4564
  %v4575 = vadd.f32 %v4493, %v4564
  %v4576 = vadd.f32 %v4498, %v4564
  %v4577 = vadd.f32 %v4501, %v4564
  %v4578 = vadd.f32 %v4506, %v4564
  %v4579 = vadd.f32 %v4509, %v4564
  %v4580 = vadd.f32 %v4514, %v4564
  %v4581 = vadd.f32 %v4517, %v4564
  %v4582 = vadd.f32 %v4522, %v4564
  %v4583 = vadd.f32 %v4525, %v4564
  %v4584 = vadd.f32 %v4530, %v4564
  %v4585 = vadd.f32 %v4533, %v4564
  %v4586 = vadd.f32 %v4538, %v4564
  %v4587 = vadd.f32 %v4541, %v4564
  %v4588 = vadd.f32 %v4546, %v4564
  %v4589 = vadd.f32 %v4549, %v4564
  %v4590 = vadd.f32 %v4554, %v4564
  %v4591 = vld [vmem:[%s17] sm:$0xf]
  %v4592 = vld [vmem:[%s17 + $0x4] sm:$0xf]
  %v4593 = vld [vmem:[%s17 + $0x8] sm:$0xf]
  %v4594 = vld [vmem:[%s17 + $0xc] sm:$0xf]
  %v4595 = vld [vmem:[%s18] sm:$0x1]
  %v4597 = vlaneseq
  %v4598 = vshrl.u32 %v4597, 7
  %v4599 = vsub.s32 0, %v4598
  %v4600 = vrot.slane %v4595, %v4599
  %v4606 = vunpack.c.l.b16 %v4591
  %v4607 = vunpack.c.l.b16 %v4592
  %v4608 = vunpack.c.l.b16 %v4593
  %v4609 = vunpack.c.l.b16 %v4594
  %v4610 = vpack.c.b16 %v4607, %v4606
  %v4611 = vpack.c.b16 %v4609, %v4608
  %4614 = vmatprep.subr.bf16.mxu0 0
  %4615 = vmatpush1.bf16.msra.mxu0 %v4610
  %4616 = vmatprep.subr.bf16.mxu0 0
  %4617 = vmatpush1.bf16.msra.mxu0 %v4611
  %4618 = vmatprep.subr.bf16.mxu0 0
  %4619 = vmatpush1.bf16.msra.mxu0 0
  %4620 = vmatprep.subr.bf16.mxu0 0
  %4621 = vmatpush1.bf16.msra.mxu0 0
  %4622 = vmatprep.subr.bf16.mxu0 0
  %4623 = vmatpush1.bf16.msra.mxu0 0
  %4624 = vmatprep.subr.bf16.mxu0 0
  %4625 = vmatpush1.bf16.msra.mxu0 0
  %4626 = vmatprep.subr.bf16.mxu0 0
  %4627 = vmatpush1.bf16.msra.mxu0 0
  %4628 = vmatprep.subr.bf16.mxu0 0
  %4629 = vmatpush1.bf16.msra.mxu0 0
  %4630 = vmatprep.subr.bf16.mxu0 0
  %4631 = vmatpush1.bf16.msra.mxu0 0
  %4632 = vmatprep.subr.bf16.mxu0 0
  %4633 = vmatpush1.bf16.msra.mxu0 0
  %4634 = vmatprep.subr.bf16.mxu0 0
  %4635 = vmatpush1.bf16.msra.mxu0 0
  %4636 = vmatprep.subr.bf16.mxu0 0
  %4637 = vmatpush1.bf16.msra.mxu0 0
  %4638 = vmatprep.subr.bf16.mxu0 0
  %4639 = vmatpush1.bf16.msra.mxu0 0
  %4640 = vmatprep.subr.bf16.mxu0 0
  %4641 = vmatpush1.bf16.msra.mxu0 0
  %4642 = vmatprep.subr.bf16.mxu0 0
  %4643 = vmatpush1.bf16.msra.mxu0 0
  %4644 = vmatprep.subr.bf16.mxu0 0
  %4645 = vmatpush1.bf16.msra.mxu0 0
  %4646 = vmatprep.mubr.bf16.mxu0 0
  %4647 = vmatmul.mubr.bf16.gmra.mrb[0].mxu0 %v151
  %v4648 = vpop.f32.mrb[0].mxu0
  %v4649 = vadd.f32 %v4600, %v4648
  %v4650 = vpop.f32.mrb[0].mxu0
  %v4651 = vpop.f32.mrb[0].mxu0
  %v4652 = vadd.f32 %v4600, %v4651
  %v4653 = vpop.f32.mrb[0].mxu0
  %4654 = vmatprep.mubr.bf16.mxu0 0
  %4655 = vmatmul.mubr.bf16.gmra.mrb[0].mxu0 %v154
  %v4656 = vpop.f32.mrb[0].mxu0
  %v4657 = vadd.f32 %v4600, %v4656
  %v4658 = vpop.f32.mrb[0].mxu0
  %v4659 = vpop.f32.mrb[0].mxu0
  %v4660 = vadd.f32 %v4600, %v4659
  %v4661 = vpop.f32.mrb[0].mxu0
  %4662 = vmatprep.mubr.bf16.mxu0 0
  %4663 = vmatmul.mubr.bf16.gmra.mrb[0].mxu0 %v157
  %v4664 = vpop.f32.mrb[0].mxu0
  %v4665 = vadd.f32 %v4600, %v4664
  %v4666 = vpop.f32.mrb[0].mxu0
  %v4667 = vpop.f32.mrb[0].mxu0
  %v4668 = vadd.f32 %v4600, %v4667
  %v4669 = vpop.f32.mrb[0].mxu0
  %4670 = vmatprep.mubr.bf16.mxu0 0
  %4671 = vmatmul.mubr.bf16.gmra.mrb[0].mxu0 %v160
  %v4672 = vpop.f32.mrb[0].mxu0
  %v4673 = vadd.f32 %v4600, %v4672
  %v4674 = vpop.f32.mrb[0].mxu0
  %v4675 = vpop.f32.mrb[0].mxu0
  %v4676 = vadd.f32 %v4600, %v4675
  %v4677 = vpop.f32.mrb[0].mxu0
  %4678 = vmatprep.mubr.bf16.mxu0 0
  %4679 = vmatmul.mubr.bf16.gmra.mrb[0].mxu0 %v163
  %v4680 = vpop.f32.mrb[0].mxu0
  %v4681 = vadd.f32 %v4600, %v4680
  %v4682 = vpop.f32.mrb[0].mxu0
  %v4683 = vpop.f32.mrb[0].mxu0
  %v4684 = vadd.f32 %v4600, %v4683
  %v4685 = vpop.f32.mrb[0].mxu0
  %4686 = vmatprep.mubr.bf16.mxu0 0
  %4687 = vmatmul.mubr.bf16.gmra.mrb[0].mxu0 %v166
  %v4688 = vpop.f32.mrb[0].mxu0
  %v4689 = vadd.f32 %v4600, %v4688
  %v4690 = vpop.f32.mrb[0].mxu0
  %v4691 = vpop.f32.mrb[0].mxu0
  %v4692 = vadd.f32 %v4600, %v4691
  %v4693 = vpop.f32.mrb[0].mxu0
  %4694 = vmatprep.mubr.bf16.mxu0 0
  %4695 = vmatmul.mubr.bf16.gmra.mrb[0].mxu0 %v169
  %v4696 = vpop.f32.mrb[0].mxu0
  %v4697 = vadd.f32 %v4600, %v4696
  %v4698 = vpop.f32.mrb[0].mxu0
  %v4699 = vpop.f32.mrb[0].mxu0
  %v4700 = vadd.f32 %v4600, %v4699
  %v4701 = vpop.f32.mrb[0].mxu0
  %4702 = vmatprep.mubr.bf16.mxu0 0
  %4703 = vmatmul.mubr.bf16.gmra.mrb[0].mxu0 %v172
  %v4704 = vpop.f32.mrb[0].mxu0
  %v4705 = vadd.f32 %v4600, %v4704
  %v4706 = vpop.f32.mrb[0].mxu0
  %v4707 = vpop.f32.mrb[0].mxu0
  %v4708 = vadd.f32 %v4600, %v4707
  %v4709 = vpop.f32.mrb[0].mxu0
  %4710 = vmatprep.mubr.bf16.mxu0 0
  %4711 = vmatmul.mubr.bf16.gmra.mrb[0].mxu0 %v175
  %v4712 = vpop.f32.mrb[0].mxu0
  %v4713 = vadd.f32 %v4600, %v4712
  %v4714 = vpop.f32.mrb[0].mxu0
  %v4715 = vpop.f32.mrb[0].mxu0
  %v4716 = vadd.f32 %v4600, %v4715
  %v4717 = vpop.f32.mrb[0].mxu0
  %4718 = vmatprep.mubr.bf16.mxu0 0
  %4719 = vmatmul.mubr.bf16.gmra.mrb[0].mxu0 %v178
  %v4720 = vpop.f32.mrb[0].mxu0
  %v4721 = vadd.f32 %v4600, %v4720
  %v4722 = vpop.f32.mrb[0].mxu0
  %v4723 = vpop.f32.mrb[0].mxu0
  %v4724 = vadd.f32 %v4600, %v4723
  %v4725 = vpop.f32.mrb[0].mxu0
  %4726 = vmatprep.mubr.bf16.mxu0 0
  %4727 = vmatmul.mubr.bf16.gmra.mrb[0].mxu0 %v181
  %v4728 = vpop.f32.mrb[0].mxu0
  %v4729 = vadd.f32 %v4600, %v4728
  %v4730 = vpop.f32.mrb[0].mxu0
  %v4731 = vpop.f32.mrb[0].mxu0
  %v4732 = vadd.f32 %v4600, %v4731
  %v4733 = vpop.f32.mrb[0].mxu0
  %4734 = vmatprep.mubr.bf16.mxu0 0
  %4735 = vmatmul.mubr.bf16.gmra.mrb[0].mxu0 %v184
  %v4736 = vpop.f32.mrb[0].mxu0
  %v4737 = vadd.f32 %v4600, %v4736
  %v4738 = vpop.f32.mrb[0].mxu0
  %v4739 = vpop.f32.mrb[0].mxu0
  %v4740 = vadd.f32 %v4600, %v4739
  %v4741 = vpop.f32.mrb[0].mxu0
  %4742 = vmatprep.mubr.bf16.mxu0 0
  %4743 = vmatmul.mubr.bf16.gmra.mrb[0].mxu0 %v187
  %v4744 = vpop.f32.mrb[0].mxu0
  %v4745 = vadd.f32 %v4600, %v4744
  %v4746 = vpop.f32.mrb[0].mxu0
  %v4747 = vpop.f32.mrb[0].mxu0
  %v4748 = vpop.f32.mrb[0].mxu0
  %4749 = vdwg.mxu0
  %v4750 = vadd.f32 %v4566, %v4649
  %v4751 = vadd.f32 %v4567, %v4652
  %v4752 = vadd.f32 %v4568, %v4657
  %v4753 = vadd.f32 %v4569, %v4660
  %v4754 = vadd.f32 %v4570, %v4665
  %v4755 = vadd.f32 %v4571, %v4668
  %v4756 = vadd.f32 %v4572, %v4673
  %v4757 = vadd.f32 %v4573, %v4676
  %v4758 = vadd.f32 %v4574, %v4681
  %v4759 = vadd.f32 %v4575, %v4684
  %v4760 = vadd.f32 %v4576, %v4689
  %v4761 = vadd.f32 %v4577, %v4692
  %v4762 = vadd.f32 %v4578, %v4697
  %v4763 = vadd.f32 %v4579, %v4700
  %v4764 = vadd.f32 %v4580, %v4705
  %v4765 = vadd.f32 %v4581, %v4708
  %v4766 = vadd.f32 %v4582, %v4713
  %v4767 = vadd.f32 %v4583, %v4716
  %v4768 = vadd.f32 %v4584, %v4721
  %v4769 = vadd.f32 %v4585, %v4724
  %v4770 = vadd.f32 %v4586, %v4729
  %v4771 = vadd.f32 %v4587, %v4732
  %v4772 = vadd.f32 %v4588, %v4737
  %v4773 = vadd.f32 %v4589, %v4740
  %v4774 = vadd.f32 %v4590, %v4745
  %v4775 = vmax.f32 %v4750, 0.0
  %v4776 = vmax.f32 %v4751, 0.0
  %v4777 = vmax.f32 %v4752, 0.0
  %v4778 = vmax.f32 %v4753, 0.0
  %v4779 = vmax.f32 %v4754, 0.0
  %v4780 = vmax.f32 %v4755, 0.0
  %v4781 = vmax.f32 %v4756, 0.0
  %v4782 = vmax.f32 %v4757, 0.0
  %v4783 = vmax.f32 %v4758, 0.0
  %v4784 = vmax.f32 %v4759, 0.0
  %v4785 = vmax.f32 %v4760, 0.0
  %v4786 = vmax.f32 %v4761, 0.0
  %v4787 = vmax.f32 %v4762, 0.0
  %v4788 = vmax.f32 %v4763, 0.0
  %v4789 = vmax.f32 %v4764, 0.0
  %v4790 = vmax.f32 %v4765, 0.0
  %v4791 = vmax.f32 %v4766, 0.0
  %v4792 = vmax.f32 %v4767, 0.0
  %v4793 = vmax.f32 %v4768, 0.0
  %v4794 = vmax.f32 %v4769, 0.0
  %v4795 = vmax.f32 %v4770, 0.0
  %v4796 = vmax.f32 %v4771, 0.0
  %v4797 = vmax.f32 %v4772, 0.0
  %v4798 = vmax.f32 %v4773, 0.0
  %v4799 = vmax.f32 %v4774, 0.0
  %v4800 = vmin.f32 %v4775, 20.0
  %v4801 = vmin.f32 %v4776, 20.0
  %v4802 = vmin.f32 %v4777, 20.0
  %v4803 = vmin.f32 %v4778, 20.0
  %v4804 = vmin.f32 %v4779, 20.0
  %v4805 = vmin.f32 %v4780, 20.0
  %v4806 = vmin.f32 %v4781, 20.0
  %v4807 = vmin.f32 %v4782, 20.0
  %v4808 = vmin.f32 %v4783, 20.0
  %v4809 = vmin.f32 %v4784, 20.0
  %v4810 = vmin.f32 %v4785, 20.0
  %v4811 = vmin.f32 %v4786, 20.0
  %v4812 = vmin.f32 %v4787, 20.0
  %v4813 = vmin.f32 %v4788, 20.0
  %v4814 = vmin.f32 %v4789, 20.0
  %v4815 = vmin.f32 %v4790, 20.0
  %v4816 = vmin.f32 %v4791, 20.0
  %v4817 = vmin.f32 %v4792, 20.0
  %v4818 = vmin.f32 %v4793, 20.0
  %v4819 = vmin.f32 %v4794, 20.0
  %v4820 = vmin.f32 %v4795, 20.0
  %v4821 = vmin.f32 %v4796, 20.0
  %v4822 = vmin.f32 %v4797, 20.0
  %v4823 = vmin.f32 %v4798, 20.0
  %v4824 = vmin.f32 %v4799, 20.0
  %4825 = vst.msk [vmem:[%s19] sm:$0xff] %vm1378, %v4800
  %4826 = vst.msk [vmem:[%s19 + $0x8] sm:$0xff] %vm1378, %v4801
  %4827 = vst.msk [vmem:[%s19 + $0x10] sm:$0xff] %vm1378, %v4802
  %4828 = vst.msk [vmem:[%s19 + $0x18] sm:$0xff] %vm1378, %v4803
  %4829 = vst.msk [vmem:[%s19 + $0x20] sm:$0xff] %vm1378, %v4804
  %4830 = vst.msk [vmem:[%s19 + $0x28] sm:$0xff] %vm1378, %v4805
  %4831 = vst.msk [vmem:[%s19 + $0x30] sm:$0xff] %vm1378, %v4806
  %4832 = vst.msk [vmem:[%s19 + $0x38] sm:$0xff] %vm1378, %v4807
  %4833 = vst.msk [vmem:[%s19 + $0x40] sm:$0xff] %vm1378, %v4808
  %4834 = vst.msk [vmem:[%s19 + $0x48] sm:$0xff] %vm1378, %v4809
  %4835 = vst.msk [vmem:[%s19 + $0x50] sm:$0xff] %vm1378, %v4810
  %4836 = vst.msk [vmem:[%s19 + $0x58] sm:$0xff] %vm1378, %v4811
  %4837 = vst.msk [vmem:[%s19 + $0x60] sm:$0xff] %vm1378, %v4812
  %4838 = vst.msk [vmem:[%s19 + $0x68] sm:$0xff] %vm1378, %v4813
  %4839 = vst.msk [vmem:[%s19 + $0x70] sm:$0xff] %vm1378, %v4814
  %4840 = vst.msk [vmem:[%s19 + $0x78] sm:$0xff] %vm1378, %v4815
  %4841 = vst.msk [vmem:[%s19 + $0x80] sm:$0xff] %vm1378, %v4816
  %4842 = vst.msk [vmem:[%s19 + $0x88] sm:$0xff] %vm1378, %v4817
  %4843 = vst.msk [vmem:[%s19 + $0x90] sm:$0xff] %vm1378, %v4818
  %4844 = vst.msk [vmem:[%s19 + $0x98] sm:$0xff] %vm1378, %v4819
  %4845 = vst.msk [vmem:[%s19 + $0xa0] sm:$0xff] %vm1378, %v4820
  %4846 = vst.msk [vmem:[%s19 + $0xa8] sm:$0xff] %vm1378, %v4821
  %4847 = vst.msk [vmem:[%s19 + $0xb0] sm:$0xff] %vm1378, %v4822
  %4848 = vst.msk [vmem:[%s19 + $0xb8] sm:$0xff] %vm1378, %v4823
  %4849 = vst.msk [vmem:[%s19 + $0xc0] sm:$0xff] %vm1378, %v4824
  // Predicated region
  $region78: #{pallas_forward.1} parent=0 // pred_check
    _
  $region79: #{pallas_forward.1} parent=0 // pred_check_branch
    %4851 = sbr.rel (0) target = $region81
  $region80: #{pallas_forward.1} parent=0 // pred_region
    _
  $region81: #{pallas_forward.1} parent=0 // pred_fallthru
    _
  // Predicated region
  $region82: #{pallas_forward.1} parent=0 // pred_check
    _
  $region83: #{pallas_forward.1} parent=0 // pred_check_branch
    %4853 = sbr.rel (0) target = $region85
  $region84: #{pallas_forward.1} parent=0 // pred_region
    _
  $region85: #{pallas_forward.1} parent=0 // pred_fallthru
    _

</llo_original>
